<compile_context>
chip_gen: v7x
topology: tpu7x:2x2x1
jax: 0.10.0
libtpu: 0.0.40
codegen_flags: <defaults>
</compile_context>

<pallas_src>
import functools

import jax
import jax.numpy as jnp
from jax.experimental import pallas as pl
from jax.experimental.pallas import tpu as pltpu

EPS_BN = 1e-5


def _pick_tile(n, target, step):
    """Largest t <= target that divides n and is a multiple of step; fallback n."""
    if n <= target:
        return n
    t = (target // step) * step
    while t >= step:
        if n % t == 0:
            return t
        t -= step
    return n


# --------------------------------------------------------------------------
# Kernel 0: pairwise (negative squared) distances for kNN, row-tiled.
#   d[i, j] = 2 * <x_i, x_j> - |x_i|^2 - |x_j|^2
# --------------------------------------------------------------------------
def _pdist_kernel(xt_ref, x_ref, d_ref):
    xt = xt_ref[...]                                            # [TM, 3]
    x = x_ref[...]                                              # [3,  N]
    g = jnp.dot(xt, x, preferred_element_type=jnp.float32)      # [TM, N] Gram tile
    xx_rows = jnp.sum(xt * xt, axis=1, keepdims=True)           # [TM, 1]  |x_i|^2
    xx_cols = jnp.sum(x * x, axis=0, keepdims=True)             # [1,  N]  |x_j|^2
    d_ref[...] = 2.0 * g - xx_rows - xx_cols


# --------------------------------------------------------------------------
# Kernel A: fused 1x1 Conv + BN + ReLU on lane-folded neighbor tensors,
#           max over K, concatenated into f_encoding [C, N] per batch element.
#           One big matmul per branch (contraction over Cin, lanes = K*N).
# --------------------------------------------------------------------------
def _edge_kernel(nx_ref, nf_ref,
                 w1_ref, b1_ref, s1_ref, t1_ref,
                 w2_ref, b2_ref, s2_ref, t2_ref,
                 out_ref, *, k, n):
    def branch(w, b, s, t, data):
        z = jnp.dot(w, data, preferred_element_type=jnp.float32)   # [C2, K*N]
        h = jnp.maximum((z + b) * s + t, 0.0)                      # bias + BN + ReLU
        acc = h[:, 0:n]
        for kk in range(1, k):                                     # max over K slabs
            acc = jnp.maximum(acc, h[:, kk * n:(kk + 1) * n])
        return acc

    h1 = branch(w1_ref[...], b1_ref[...], s1_ref[...], t1_ref[...], nx_ref[...])
    h2 = branch(w2_ref[...], b2_ref[...], s2_ref[...], t2_ref[...], nf_ref[...])
    c2 = h1.shape[0]
    out_ref[:c2, :] = h1                                           # cat along channels
    out_ref[c2:, :] = h2


# --------------------------------------------------------------------------
# Kernel "base": the batch-0-only mean path (torch `[0]` quirk), computed ONCE.
#   base = sqrt(mean_N(relu(wd1 @ fe0)) * mean_C8(relu(wd2 @ fe0)) + 1e-12)
# --------------------------------------------------------------------------
def _base_kernel(fe0_ref, wd1_ref, wd2_ref, base_ref):
    fe0 = fe0_ref[...]                                             # [C, N] (batch 0)
    f1_0 = jnp.maximum(
        jnp.dot(wd1_ref[...], fe0, preferred_element_type=jnp.float32), 0.0)
    f2_0 = jnp.maximum(
        jnp.dot(wd2_ref[...], fe0, preferred_element_type=jnp.float32), 0.0)
    ch = jnp.mean(f1_0, axis=1, keepdims=True)                     # [C8, 1]
    sp = jnp.mean(f2_0, axis=0, keepdims=True)                     # [1,  N]
    base_ref[...] = jnp.sqrt(ch * sp + 1e-12)                      # [C8, N]


# --------------------------------------------------------------------------
# Kernel B: per (batch, point-tile) bottleneck:
#   conv_down1/2 + ReLU, add shared base, conv_up + BN + ReLU, residual, Mish.
# --------------------------------------------------------------------------
def _bottleneck_kernel(fe_ref, base_ref, wd1_ref, wd2_ref,
                       wu_ref, bu_ref, su_ref, tu_ref, out_ref):
    relu = lambda v: jnp.maximum(v, 0.0)
    fe = fe_ref[...]                                               # [C, TN]
    f1 = relu(jnp.dot(wd1_ref[...], fe, preferred_element_type=jnp.float32))  # [C8, TN]
    f2 = relu(jnp.dot(wd2_ref[...], fe, preferred_element_type=jnp.float32))  # [C8, TN]
    fin = base_ref[...] + f1 + f2                                  # [C8, TN]

    up = jnp.dot(wu_ref[...], fin, preferred_element_type=jnp.float32) + bu_ref[...]
    up = relu(up * su_ref[...] + tu_ref[...])                      # BN_up + ReLU

    o = fe - up
    # Mish: x * tanh(softplus(x)), softplus computed stably with log1p
    sp_o = jnp.maximum(o, 0.0) + jnp.log1p(jnp.exp(-jnp.abs(o)))
    out_ref[...] = o * jnp.tanh(sp_o)


# --------------------------------------------------------------------------
# Wrapper
# --------------------------------------------------------------------------
def pnp3d_forward(xyz, features, params, *, k):
    B, _, N = xyz.shape
    C = features.shape[1]
    C2, C8 = C // 2, C // 8
    f32 = jnp.float32

    # ---- kNN: row-tiled pairwise distances in Pallas, top-k in plain JAX glue
    TM = _pick_tile(N, 256, 8)
    xt = jnp.transpose(xyz, (0, 2, 1))                             # [B, N, 3] (tiny)
    pdist = pl.pallas_call(
        _pdist_kernel,
        out_shape=jax.ShapeDtypeStruct((B, N, N), f32),
        grid=(B, N // TM),
        in_specs=[pl.BlockSpec((None, TM, 3), lambda b, m: (b, m, 0)),
                  pl.BlockSpec((None, 3, N), lambda b, m: (b, 0, 0))],
        out_specs=pl.BlockSpec((None, TM, N), lambda b, m: (b, m, 0)),
        compiler_params=pltpu.CompilerParams(
            dimension_semantics=("parallel", "parallel")),
    )(xt, xyz)
    # TODO(synk): top-k has no clean Pallas TPU equivalent; stays in JAX.
    _, idx = jax.lax.top_k(pdist, k)                               # [B, N, K] (incl. self)

    # ---- neighbor gather directly in channel-major order (no [B,N,K,C] relayouts)
    #      lane ordering: kk*N + n
    idx_kn = jnp.transpose(idx, (0, 2, 1)).reshape(B, 1, k * N)    # [B, 1, K*N]
    nbr_x = jnp.take_along_axis(xyz, idx_kn, axis=2)               # [B, 3,  K*N]
    nbr_f = jnp.take_along_axis(features, idx_kn, axis=2)          # [B, C,  K*N]
    ctr_x = jnp.tile(xyz, (1, 1, k))                               # [B, 3,  K*N]
    ctr_f = jnp.tile(features, (1, 1, k))                          # [B, C,  K*N]
    nx = jnp.concatenate([nbr_x - ctr_x, ctr_x], axis=1)           # [B, 6,  K*N]
    nf = jnp.concatenate([nbr_f - ctr_f, ctr_f], axis=1)           # [B, 2C, K*N]

    # ---- Kernel A: fused edge MLPs + max over K -> f_encoding [B, C, N]
    wspec = lambda r, c: pl.BlockSpec((r, c), lambda b: (0, 0))
    f_enc = pl.pallas_call(
        functools.partial(_edge_kernel, k=k, n=N),
        out_shape=jax.ShapeDtypeStruct((B, C, N), f32),
        grid=(B,),
        in_specs=[
            pl.BlockSpec((None, 6, k * N), lambda b: (b, 0, 0)),
            pl.BlockSpec((None, 2 * C, k * N), lambda b: (b, 0, 0)),
            wspec(C2, 6), wspec(C2, 1), wspec(C2, 1), wspec(C2, 1),
            wspec(C2, 2 * C), wspec(C2, 1), wspec(C2, 1), wspec(C2, 1),
        ],
        out_specs=pl.BlockSpec((None, C, N), lambda b: (b, 0, 0)),
        compiler_params=pltpu.CompilerParams(
            dimension_semantics=("parallel",)),
    )(nx, nf,
      params["w1"], params["b1"], params["s1"], params["t1"],
      params["w2"], params["b2"], params["s2"], params["t2"])

    # ---- batch-0 mean path (torch `[0]` quirk) hoisted: computed once, not per batch
    base = pl.pallas_call(
        _base_kernel,
        out_shape=jax.ShapeDtypeStruct((C8, N), f32),
    )(f_enc[0], params["wd1"], params["wd2"])

    # ---- Kernel B: per-batch, per-point-tile bottleneck + Mish
    TN = _pick_tile(N, 512, 128)
    wspec2 = lambda r, c: pl.BlockSpec((r, c), lambda b, t: (0, 0))
    f_out = pl.pallas_call(
        _bottleneck_kernel,
        out_shape=jax.ShapeDtypeStruct((B, C, N), f32),
        grid=(B, N // TN),
        in_specs=[
            pl.BlockSpec((None, C, TN), lambda b, t: (b, 0, t)),
            pl.BlockSpec((C8, TN), lambda b, t: (0, t)),
            wspec2(C8, C), wspec2(C8, C),
            wspec2(C, C8), wspec2(C, 1), wspec2(C, 1), wspec2(C, 1),
        ],
        out_specs=pl.BlockSpec((None, C, TN), lambda b, t: (b, 0, t)),
        compiler_params=pltpu.CompilerParams(
            dimension_semantics=("parallel", "parallel")),
    )(f_enc, base,
      params["wd1"], params["wd2"],
      params["wu"], params["bu"], params["su"], params["tu"])
    return f_out


# --------------------------------------------------------------------------
# Deterministic synthetic parameters (shapes from PnP3D.__init__)
# --------------------------------------------------------------------------
def init_params(key, C):
    C2, C8 = C // 2, C // 8
    ks = jax.random.split(key, 11)
    f32 = jnp.float32

    def conv_w(k_, co, ci):
        return 0.1 * jax.random.normal(k_, (co, ci), f32)

    def bn(k_, c):
        kg, kb, km, kv = jax.random.split(k_, 4)
        gamma = 1.0 + 0.1 * jax.random.normal(kg, (c, 1), f32)
        beta = 0.1 * jax.random.normal(kb, (c, 1), f32)
        mean = 0.1 * jax.random.normal(km, (c, 1), f32)
        var = 1.0 + 0.1 * jax.random.uniform(kv, (c, 1), f32)
        scale = gamma / jnp.sqrt(var + EPS_BN)
        shift = beta - mean * scale
        return scale, shift

    s1, t1 = bn(ks[2], C2)
    s2, t2 = bn(ks[5], C2)
    su, tu = bn(ks[10], C)
    return dict(
        w1=conv_w(ks[0], C2, 6),
        b1=0.05 * jax.random.normal(ks[1], (C2, 1), f32),
        s1=s1, t1=t1,
        w2=conv_w(ks[3], C2, 2 * C),
        b2=0.05 * jax.random.normal(ks[4], (C2, 1), f32),
        s2=s2, t2=t2,
        wd1=conv_w(ks[6], C8, C),        # conv_down1 (bias=False)
        wd2=conv_w(ks[7], C8, C),        # conv_down2 (bias=False)
        wu=conv_w(ks[8], C, C8),         # conv_up
        bu=0.05 * jax.random.normal(ks[9], (C, 1), f32),
        su=su, tu=tu,
    )


if __name__ == "__main__":
    B, C, N, K = 2, 32, 64, 8            # input_features_dim = 32
    key = jax.random.PRNGKey(0)
    kx, kf, kp = jax.random.split(key, 3)
    xyz = jax.random.normal(kx, (B, 3, N), jnp.float32)
    features = jax.random.normal(kf, (B, C, N), jnp.float32)
    params = init_params(kp, C)

    fwd = jax.jit(functools.partial(pnp3d_forward, k=K))
    out = fwd(xyz, features, params)
    out = jax.block_until_ready(out)
    assert out.shape == (B, C, N) and out.dtype == jnp.float32
    assert bool(jnp.all(jnp.isfinite(out)))
    print("KERNEL_OK")
</pallas_src>

<mosaic_0001>
module attributes {stable_mosaic.version = 11 : i64} {
  func.func @_pdist_kernel(%arg0: i32, %arg1: i32, %arg2: memref<1x64x3xf32, #tpu.memory_space<vmem>>, %arg3: memref<1x3x64xf32, #tpu.memory_space<vmem>>, %arg4: memref<1x64x64xf32, #tpu.memory_space<vmem>>) attributes {dimension_semantics = [#tpu.dimension_semantics<parallel>, #tpu.dimension_semantics<parallel>], iteration_bounds = array<i64: 2, 1>, scalar_prefetch = 0 : i64, scratch_operands = 0 : i64, tpu.core_type = #tpu.core_type<tc>, window_params = [{transform_indices = @transform_0, window_bounds = array<i64: 1, 64, 3>}, {transform_indices = @transform_1, window_bounds = array<i64: 1, 3, 64>}, {transform_indices = @transform_2, window_bounds = array<i64: 1, 64, 64>}]} {
    %c0 = arith.constant 0 : index
    %c0_0 = arith.constant 0 : index
    %c0_1 = arith.constant 0 : index
    %0 = vector.load %arg2[%c0, %c0_0, %c0_1] : memref<1x64x3xf32, #tpu.memory_space<vmem>>, vector<1x64x3xf32>
    %1 = vector.shape_cast %0 : vector<1x64x3xf32> to vector<64x3xf32>
    %c0_2 = arith.constant 0 : index
    %c0_3 = arith.constant 0 : index
    %c0_4 = arith.constant 0 : index
    %2 = vector.load %arg3[%c0_2, %c0_3, %c0_4] : memref<1x3x64xf32, #tpu.memory_space<vmem>>, vector<1x3x64xf32>
    %3 = vector.shape_cast %2 : vector<1x3x64xf32> to vector<3x64xf32>
    %cst = arith.constant dense<0.000000e+00> : vector<64x64xf32>
    %4 = tpu.matmul %1, %3, %cst {dimension_numbers = #tpu.dot_dimension_numbers<[1], [0], [0], [1], [0, 0, 1, 1], [], []>} : vector<64x3xf32>, vector<3x64xf32>, vector<64x64xf32> -> vector<64x64xf32>
    %5 = arith.mulf %1, %1 : vector<64x3xf32>
    %cst_5 = arith.constant dense<0.000000e+00> : vector<64xf32>
    %6 = vector.multi_reduction <add>, %5, %cst_5 [1] : vector<64x3xf32> to vector<64xf32>
    %7 = vector.shape_cast %6 : vector<64xf32> to vector<64x1xf32>
    %8 = arith.mulf %3, %3 : vector<3x64xf32>
    %cst_6 = arith.constant dense<0.000000e+00> : vector<64xf32>
    %9 = vector.multi_reduction <add>, %8, %cst_6 [0] : vector<3x64xf32> to vector<64xf32>
    %10 = vector.shape_cast %9 : vector<64xf32> to vector<1x64xf32>
    %cst_7 = arith.constant 2.000000e+00 : f32
    %11 = vector.broadcast %cst_7 : f32 to vector<64x64xf32>
    %12 = arith.mulf %11, %4 : vector<64x64xf32>
    %13 = vector.broadcast %7 : vector<64x1xf32> to vector<64x64xf32>
    %14 = arith.subf %12, %13 : vector<64x64xf32>
    %15 = vector.broadcast %10 : vector<1x64xf32> to vector<64x64xf32>
    %16 = arith.subf %14, %15 : vector<64x64xf32>
    %c0_8 = arith.constant 0 : index
    %c0_9 = arith.constant 0 : index
    %c0_10 = arith.constant 0 : index
    %17 = vector.load %arg4[%c0_8, %c0_9, %c0_10] : memref<1x64x64xf32, #tpu.memory_space<vmem>>, vector<1x64x64xf32>
    %18 = vector.shape_cast %17 : vector<1x64x64xf32> to vector<64x64xf32>
    %19 = vector.shape_cast %16 : vector<64x64xf32> to vector<1x64x64xf32>
    tpu.vector_store %arg4[%c0_8, %c0_9, %c0_10], %19 {strides = array<i32>} : memref<1x64x64xf32, #tpu.memory_space<vmem>>, vector<1x64x64xf32>,
    return
  }
  func.func @transform_0(%arg0: i32, %arg1: i32) -> (i32, i32, i32) {
    %c0_i32 = arith.constant 0 : i32
    %c0_i32_0 = arith.constant 0 : i32
    return %arg0, %arg1, %c0_i32 : i32, i32, i32
  }
  func.func @transform_1(%arg0: i32, %arg1: i32) -> (i32, i32, i32) {
    %c0_i32 = arith.constant 0 : i32
    %c0_i32_0 = arith.constant 0 : i32
    %c0_i32_1 = arith.constant 0 : i32
    return %arg0, %c0_i32, %c0_i32_0 : i32, i32, i32
  }
  func.func @transform_2(%arg0: i32, %arg1: i32) -> (i32, i32, i32) {
    %c0_i32 = arith.constant 0 : i32
    %c0_i32_0 = arith.constant 0 : i32
    return %arg0, %arg1, %c0_i32 : i32, i32, i32
  }
}

module attributes {stable_mosaic.version = 11 : i64} {
  func.func @_base_kernel(%arg0: memref<32x64xf32, #tpu.memory_space<vmem>>, %arg1: memref<4x32xf32, #tpu.memory_space<vmem>>, %arg2: memref<4x32xf32, #tpu.memory_space<vmem>>, %arg3: memref<4x64xf32, #tpu.memory_space<vmem>>) attributes {dimension_semantics = [], scalar_prefetch = 0 : i64, scratch_operands = 0 : i64, tpu.core_type = #tpu.core_type<tc>} {
    %c0 = arith.constant 0 : index
    %c0_0 = arith.constant 0 : index
    %0 = vector.load %arg0[%c0, %c0_0] : memref<32x64xf32, #tpu.memory_space<vmem>>, vector<32x64xf32>
    %c0_1 = arith.constant 0 : index
    %c0_2 = arith.constant 0 : index
    %1 = vector.load %arg1[%c0_1, %c0_2] : memref<4x32xf32, #tpu.memory_space<vmem>>, vector<4x32xf32>
    %cst = arith.constant dense<0.000000e+00> : vector<4x64xf32>
    %2 = tpu.matmul %1, %0, %cst {dimension_numbers = #tpu.dot_dimension_numbers<[1], [0], [0], [1], [0, 0, 1, 1], [], []>} : vector<4x32xf32>, vector<32x64xf32>, vector<4x64xf32> -> vector<4x64xf32>
    %cst_3 = arith.constant 0.000000e+00 : f32
    %3 = vector.broadcast %cst_3 : f32 to vector<4x64xf32>
    %4 = arith.maximumf %2, %3 : vector<4x64xf32>
    %c0_4 = arith.constant 0 : index
    %c0_5 = arith.constant 0 : index
    %5 = vector.load %arg2[%c0_4, %c0_5] : memref<4x32xf32, #tpu.memory_space<vmem>>, vector<4x32xf32>
    %cst_6 = arith.constant dense<0.000000e+00> : vector<4x64xf32>
    %6 = tpu.matmul %5, %0, %cst_6 {dimension_numbers = #tpu.dot_dimension_numbers<[1], [0], [0], [1], [0, 0, 1, 1], [], []>} : vector<4x32xf32>, vector<32x64xf32>, vector<4x64xf32> -> vector<4x64xf32>
    %cst_7 = arith.constant 0.000000e+00 : f32
    %7 = vector.broadcast %cst_7 : f32 to vector<4x64xf32>
    %8 = arith.maximumf %6, %7 : vector<4x64xf32>
    %cst_8 = arith.constant dense<0.000000e+00> : vector<4xf32>
    %9 = vector.multi_reduction <add>, %4, %cst_8 [1] : vector<4x64xf32> to vector<4xf32>
    %10 = vector.shape_cast %9 : vector<4xf32> to vector<4x1xf32>
    %cst_9 = arith.constant 6.400000e+01 : f32
    %11 = vector.broadcast %cst_9 : f32 to vector<4x1xf32>
    %12 = arith.divf %10, %11 : vector<4x1xf32>
    %cst_10 = arith.constant dense<0.000000e+00> : vector<64xf32>
    %13 = vector.multi_reduction <add>, %8, %cst_10 [0] : vector<4x64xf32> to vector<64xf32>
    %14 = vector.shape_cast %13 : vector<64xf32> to vector<1x64xf32>
    %cst_11 = arith.constant 4.000000e+00 : f32
    %15 = vector.broadcast %cst_11 : f32 to vector<1x64xf32>
    %16 = arith.divf %14, %15 : vector<1x64xf32>
    %17 = vector.broadcast %12 : vector<4x1xf32> to vector<4x64xf32>
    %18 = vector.broadcast %16 : vector<1x64xf32> to vector<4x64xf32>
    %19 = arith.mulf %17, %18 : vector<4x64xf32>
    %cst_12 = arith.constant 9.99999996E-13 : f32
    %20 = vector.broadcast %cst_12 : f32 to vector<4x64xf32>
    %21 = arith.addf %19, %20 : vector<4x64xf32>
    %22 = math.sqrt %21 : vector<4x64xf32>
    %c0_13 = arith.constant 0 : index
    %c0_14 = arith.constant 0 : index
    %23 = vector.load %arg3[%c0_13, %c0_14] : memref<4x64xf32, #tpu.memory_space<vmem>>, vector<4x64xf32>
    tpu.vector_store %arg3[%c0_13, %c0_14], %22 {strides = array<i32>} : memref<4x64xf32, #tpu.memory_space<vmem>>, vector<4x64xf32>,
    return
  }
}

module attributes {stable_mosaic.version = 11 : i64} {
  func.func @_edge_kernel(%arg0: i32, %arg1: memref<1x6x512xf32, #tpu.memory_space<vmem>>, %arg2: memref<1x64x512xf32, #tpu.memory_space<vmem>>, %arg3: memref<16x6xf32, #tpu.memory_space<vmem>>, %arg4: memref<16x1xf32, #tpu.memory_space<vmem>>, %arg5: memref<16x1xf32, #tpu.memory_space<vmem>>, %arg6: memref<16x1xf32, #tpu.memory_space<vmem>>, %arg7: memref<16x64xf32, #tpu.memory_space<vmem>>, %arg8: memref<16x1xf32, #tpu.memory_space<vmem>>, %arg9: memref<16x1xf32, #tpu.memory_space<vmem>>, %arg10: memref<16x1xf32, #tpu.memory_space<vmem>>, %arg11: memref<1x32x64xf32, #tpu.memory_space<vmem>>) attributes {dimension_semantics = [#tpu.dimension_semantics<parallel>], iteration_bounds = array<i64: 2>, scalar_prefetch = 0 : i64, scratch_operands = 0 : i64, tpu.core_type = #tpu.core_type<tc>, window_params = [{transform_indices = @transform_0, window_bounds = array<i64: 1, 6, 512>}, {transform_indices = @transform_1, window_bounds = array<i64: 1, 64, 512>}, {pipeline_mode = #tpu.pipeline_mode<synchronous>, transform_indices = @transform_2, window_bounds = array<i64: 16, 6>}, {pipeline_mode = #tpu.pipeline_mode<synchronous>, transform_indices = @transform_3, window_bounds = array<i64: 16, 1>}, {pipeline_mode = #tpu.pipeline_mode<synchronous>, transform_indices = @transform_4, window_bounds = array<i64: 16, 1>}, {pipeline_mode = #tpu.pipeline_mode<synchronous>, transform_indices = @transform_5, window_bounds = array<i64: 16, 1>}, {pipeline_mode = #tpu.pipeline_mode<synchronous>, transform_indices = @transform_6, window_bounds = array<i64: 16, 64>}, {pipeline_mode = #tpu.pipeline_mode<synchronous>, transform_indices = @transform_7, window_bounds = array<i64: 16, 1>}, {pipeline_mode = #tpu.pipeline_mode<synchronous>, transform_indices = @transform_8, window_bounds = array<i64: 16, 1>}, {pipeline_mode = #tpu.pipeline_mode<synchronous>, transform_indices = @transform_9, window_bounds = array<i64: 16, 1>}, {transform_indices = @transform_10, window_bounds = array<i64: 1, 32, 64>}]} {
    %c0 = arith.constant 0 : index
    %c0_0 = arith.constant 0 : index
    %0 = vector.load %arg3[%c0, %c0_0] : memref<16x6xf32, #tpu.memory_space<vmem>>, vector<16x6xf32>
    %c0_1 = arith.constant 0 : index
    %c0_2 = arith.constant 0 : index
    %1 = vector.load %arg4[%c0_1, %c0_2] : memref<16x1xf32, #tpu.memory_space<vmem>>, vector<16x1xf32>
    %c0_3 = arith.constant 0 : index
    %c0_4 = arith.constant 0 : index
    %2 = vector.load %arg5[%c0_3, %c0_4] : memref<16x1xf32, #tpu.memory_space<vmem>>, vector<16x1xf32>
    %c0_5 = arith.constant 0 : index
    %c0_6 = arith.constant 0 : index
    %3 = vector.load %arg6[%c0_5, %c0_6] : memref<16x1xf32, #tpu.memory_space<vmem>>, vector<16x1xf32>
    %c0_7 = arith.constant 0 : index
    %c0_8 = arith.constant 0 : index
    %c0_9 = arith.constant 0 : index
    %4 = vector.load %arg1[%c0_7, %c0_8, %c0_9] : memref<1x6x512xf32, #tpu.memory_space<vmem>>, vector<1x6x512xf32>
    %5 = vector.shape_cast %4 : vector<1x6x512xf32> to vector<6x512xf32>
    %cst = arith.constant dense<0.000000e+00> : vector<16x512xf32>
    %6 = tpu.matmul %0, %5, %cst {dimension_numbers = #tpu.dot_dimension_numbers<[1], [0], [0], [1], [0, 0, 1, 1], [], []>} : vector<16x6xf32>, vector<6x512xf32>, vector<16x512xf32> -> vector<16x512xf32>
    %7 = vector.broadcast %1 : vector<16x1xf32> to vector<16x512xf32>
    %8 = arith.addf %6, %7 : vector<16x512xf32>
    %9 = vector.broadcast %2 : vector<16x1xf32> to vector<16x512xf32>
    %10 = arith.mulf %8, %9 : vector<16x512xf32>
    %11 = vector.broadcast %3 : vector<16x1xf32> to vector<16x512xf32>
    %12 = arith.addf %10, %11 : vector<16x512xf32>
    %cst_10 = arith.constant 0.000000e+00 : f32
    %13 = vector.broadcast %cst_10 : f32 to vector<16x512xf32>
    %14 = arith.maximumf %12, %13 : vector<16x512xf32>
    %15 = vector.extract_strided_slice %14 {offsets = [0, 0], sizes = [16, 64], strides = [1, 1]} : vector<16x512xf32> to vector<16x64xf32>
    %16 = vector.extract_strided_slice %14 {offsets = [0, 64], sizes = [16, 64], strides = [1, 1]} : vector<16x512xf32> to vector<16x64xf32>
    %17 = arith.maximumf %15, %16 : vector<16x64xf32>
    %18 = vector.extract_strided_slice %14 {offsets = [0, 128], sizes = [16, 64], strides = [1, 1]} : vector<16x512xf32> to vector<16x64xf32>
    %19 = arith.maximumf %17, %18 : vector<16x64xf32>
    %20 = vector.extract_strided_slice %14 {offsets = [0, 192], sizes = [16, 64], strides = [1, 1]} : vector<16x512xf32> to vector<16x64xf32>
    %21 = arith.maximumf %19, %20 : vector<16x64xf32>
    %22 = vector.extract_strided_slice %14 {offsets = [0, 256], sizes = [16, 64], strides = [1, 1]} : vector<16x512xf32> to vector<16x64xf32>
    %23 = arith.maximumf %21, %22 : vector<16x64xf32>
    %24 = vector.extract_strided_slice %14 {offsets = [0, 320], sizes = [16, 64], strides = [1, 1]} : vector<16x512xf32> to vector<16x64xf32>
    %25 = arith.maximumf %23, %24 : vector<16x64xf32>
    %26 = vector.extract_strided_slice %14 {offsets = [0, 384], sizes = [16, 64], strides = [1, 1]} : vector<16x512xf32> to vector<16x64xf32>
    %27 = arith.maximumf %25, %26 : vector<16x64xf32>
    %28 = vector.extract_strided_slice %14 {offsets = [0, 448], sizes = [16, 64], strides = [1, 1]} : vector<16x512xf32> to vector<16x64xf32>
    %29 = arith.maximumf %27, %28 : vector<16x64xf32>
    %c0_11 = arith.constant 0 : index
    %c0_12 = arith.constant 0 : index
    %30 = vector.load %arg7[%c0_11, %c0_12] : memref<16x64xf32, #tpu.memory_space<vmem>>, vector<16x64xf32>
    %c0_13 = arith.constant 0 : index
    %c0_14 = arith.constant 0 : index
    %31 = vector.load %arg8[%c0_13, %c0_14] : memref<16x1xf32, #tpu.memory_space<vmem>>, vector<16x1xf32>
    %c0_15 = arith.constant 0 : index
    %c0_16 = arith.constant 0 : index
    %32 = vector.load %arg9[%c0_15, %c0_16] : memref<16x1xf32, #tpu.memory_space<vmem>>, vector<16x1xf32>
    %c0_17 = arith.constant 0 : index
    %c0_18 = arith.constant 0 : index
    %33 = vector.load %arg10[%c0_17, %c0_18] : memref<16x1xf32, #tpu.memory_space<vmem>>, vector<16x1xf32>
    %c0_19 = arith.constant 0 : index
    %c0_20 = arith.constant 0 : index
    %c0_21 = arith.constant 0 : index
    %34 = vector.load %arg2[%c0_19, %c0_20, %c0_21] : memref<1x64x512xf32, #tpu.memory_space<vmem>>, vector<1x64x512xf32>
    %35 = vector.shape_cast %34 : vector<1x64x512xf32> to vector<64x512xf32>
    %cst_22 = arith.constant dense<0.000000e+00> : vector<16x512xf32>
    %36 = tpu.matmul %30, %35, %cst_22 {dimension_numbers = #tpu.dot_dimension_numbers<[1], [0], [0], [1], [0, 0, 1, 1], [], []>} : vector<16x64xf32>, vector<64x512xf32>, vector<16x512xf32> -> vector<16x512xf32>
    %37 = vector.broadcast %31 : vector<16x1xf32> to vector<16x512xf32>
    %38 = arith.addf %36, %37 : vector<16x512xf32>
    %39 = vector.broadcast %32 : vector<16x1xf32> to vector<16x512xf32>
    %40 = arith.mulf %38, %39 : vector<16x512xf32>
    %41 = vector.broadcast %33 : vector<16x1xf32> to vector<16x512xf32>
    %42 = arith.addf %40, %41 : vector<16x512xf32>
    %cst_23 = arith.constant 0.000000e+00 : f32
    %43 = vector.broadcast %cst_23 : f32 to vector<16x512xf32>
    %44 = arith.maximumf %42, %43 : vector<16x512xf32>
    %45 = vector.extract_strided_slice %44 {offsets = [0, 0], sizes = [16, 64], strides = [1, 1]} : vector<16x512xf32> to vector<16x64xf32>
    %46 = vector.extract_strided_slice %44 {offsets = [0, 64], sizes = [16, 64], strides = [1, 1]} : vector<16x512xf32> to vector<16x64xf32>
    %47 = arith.maximumf %45, %46 : vector<16x64xf32>
    %48 = vector.extract_strided_slice %44 {offsets = [0, 128], sizes = [16, 64], strides = [1, 1]} : vector<16x512xf32> to vector<16x64xf32>
    %49 = arith.maximumf %47, %48 : vector<16x64xf32>
    %50 = vector.extract_strided_slice %44 {offsets = [0, 192], sizes = [16, 64], strides = [1, 1]} : vector<16x512xf32> to vector<16x64xf32>
    %51 = arith.maximumf %49, %50 : vector<16x64xf32>
    %52 = vector.extract_strided_slice %44 {offsets = [0, 256], sizes = [16, 64], strides = [1, 1]} : vector<16x512xf32> to vector<16x64xf32>
    %53 = arith.maximumf %51, %52 : vector<16x64xf32>
    %54 = vector.extract_strided_slice %44 {offsets = [0, 320], sizes = [16, 64], strides = [1, 1]} : vector<16x512xf32> to vector<16x64xf32>
    %55 = arith.maximumf %53, %54 : vector<16x64xf32>
    %56 = vector.extract_strided_slice %44 {offsets = [0, 384], sizes = [16, 64], strides = [1, 1]} : vector<16x512xf32> to vector<16x64xf32>
    %57 = arith.maximumf %55, %56 : vector<16x64xf32>
    %58 = vector.extract_strided_slice %44 {offsets = [0, 448], sizes = [16, 64], strides = [1, 1]} : vector<16x512xf32> to vector<16x64xf32>
    %59 = arith.maximumf %57, %58 : vector<16x64xf32>
    %c0_24 = arith.constant 0 : index
    %c0_25 = arith.constant 0 : index
    %c0_26 = arith.constant 0 : index
    %60 = vector.load %arg11[%c0_24, %c0_25, %c0_26] : memref<1x32x64xf32, #tpu.memory_space<vmem>>, vector<1x16x64xf32>
    %61 = vector.shape_cast %60 : vector<1x16x64xf32> to vector<16x64xf32>
    %62 = vector.shape_cast %29 : vector<16x64xf32> to vector<1x16x64xf32>
    tpu.vector_store %arg11[%c0_24, %c0_25, %c0_26], %62 {strides = array<i32>} : memref<1x32x64xf32, #tpu.memory_space<vmem>>, vector<1x16x64xf32>,
    %c0_27 = arith.constant 0 : index
    %c16 = arith.constant 16 : index
    %c0_28 = arith.constant 0 : index
    %63 = vector.load %arg11[%c0_27, %c16, %c0_28] : memref<1x32x64xf32, #tpu.memory_space<vmem>>, vector<1x16x64xf32>
    %64 = vector.shape_cast %63 : vector<1x16x64xf32> to vector<16x64xf32>
    %65 = vector.shape_cast %59 : vector<16x64xf32> to vector<1x16x64xf32>
    tpu.vector_store %arg11[%c0_27, %c16, %c0_28], %65 {strides = array<i32>} : memref<1x32x64xf32, #tpu.memory_space<vmem>>, vector<1x16x64xf32>,
    return
  }
  func.func @transform_0(%arg0: i32) -> (i32, i32, i32) {
    %c0_i32 = arith.constant 0 : i32
    %c0_i32_0 = arith.constant 0 : i32
    %c0_i32_1 = arith.constant 0 : i32
    return %arg0, %c0_i32, %c0_i32_0 : i32, i32, i32
  }
  func.func @transform_1(%arg0: i32) -> (i32, i32, i32) {
    %c0_i32 = arith.constant 0 : i32
    %c0_i32_0 = arith.constant 0 : i32
    %c0_i32_1 = arith.constant 0 : i32
    return %arg0, %c0_i32, %c0_i32_0 : i32, i32, i32
  }
  func.func @transform_2(%arg0: i32) -> (i32, i32) {
    %c0_i32 = arith.constant 0 : i32
    %c0_i32_0 = arith.constant 0 : i32
    %c0_i32_1 = arith.constant 0 : i32
    return %c0_i32, %c0_i32_0 : i32, i32
  }
  func.func @transform_3(%arg0: i32) -> (i32, i32) {
    %c0_i32 = arith.constant 0 : i32
    %c0_i32_0 = arith.constant 0 : i32
    %c0_i32_1 = arith.constant 0 : i32
    return %c0_i32, %c0_i32_0 : i32, i32
  }
  func.func @transform_4(%arg0: i32) -> (i32, i32) {
    %c0_i32 = arith.constant 0 : i32
    %c0_i32_0 = arith.constant 0 : i32
    %c0_i32_1 = arith.constant 0 : i32
    return %c0_i32, %c0_i32_0 : i32, i32
  }
  func.func @transform_5(%arg0: i32) -> (i32, i32) {
    %c0_i32 = arith.constant 0 : i32
    %c0_i32_0 = arith.constant 0 : i32
    %c0_i32_1 = arith.constant 0 : i32
    return %c0_i32, %c0_i32_0 : i32, i32
  }
  func.func @transform_6(%arg0: i32) -> (i32, i32) {
    %c0_i32 = arith.constant 0 : i32
    %c0_i32_0 = arith.constant 0 : i32
    %c0_i32_1 = arith.constant 0 : i32
    return %c0_i32, %c0_i32_0 : i32, i32
  }
  func.func @transform_7(%arg0: i32) -> (i32, i32) {
    %c0_i32 = arith.constant 0 : i32
    %c0_i32_0 = arith.constant 0 : i32
    %c0_i32_1 = arith.constant 0 : i32
    return %c0_i32, %c0_i32_0 : i32, i32
  }
  func.func @transform_8(%arg0: i32) -> (i32, i32) {
    %c0_i32 = arith.constant 0 : i32
    %c0_i32_0 = arith.constant 0 : i32
    %c0_i32_1 = arith.constant 0 : i32
    return %c0_i32, %c0_i32_0 : i32, i32
  }
  func.func @transform_9(%arg0: i32) -> (i32, i32) {
    %c0_i32 = arith.constant 0 : i32
    %c0_i32_0 = arith.constant 0 : i32
    %c0_i32_1 = arith.constant 0 : i32
    return %c0_i32, %c0_i32_0 : i32, i32
  }
  func.func @transform_10(%arg0: i32) -> (i32, i32, i32) {
    %c0_i32 = arith.constant 0 : i32
    %c0_i32_0 = arith.constant 0 : i32
    %c0_i32_1 = arith.constant 0 : i32
    return %arg0, %c0_i32, %c0_i32_0 : i32, i32, i32
  }
}

module attributes {stable_mosaic.version = 11 : i64} {
  func.func @_bottleneck_kernel(%arg0: i32, %arg1: i32, %arg2: memref<1x32x64xf32, #tpu.memory_space<vmem>>, %arg3: memref<4x64xf32, #tpu.memory_space<vmem>>, %arg4: memref<4x32xf32, #tpu.memory_space<vmem>>, %arg5: memref<4x32xf32, #tpu.memory_space<vmem>>, %arg6: memref<32x4xf32, #tpu.memory_space<vmem>>, %arg7: memref<32x1xf32, #tpu.memory_space<vmem>>, %arg8: memref<32x1xf32, #tpu.memory_space<vmem>>, %arg9: memref<32x1xf32, #tpu.memory_space<vmem>>, %arg10: memref<1x32x64xf32, #tpu.memory_space<vmem>>) attributes {dimension_semantics = [#tpu.dimension_semantics<parallel>, #tpu.dimension_semantics<parallel>], iteration_bounds = array<i64: 2, 1>, scalar_prefetch = 0 : i64, scratch_operands = 0 : i64, tpu.core_type = #tpu.core_type<tc>, window_params = [{transform_indices = @transform_0, window_bounds = array<i64: 1, 32, 64>}, {transform_indices = @transform_1, window_bounds = array<i64: 4, 64>}, {pipeline_mode = #tpu.pipeline_mode<synchronous>, transform_indices = @transform_2, window_bounds = array<i64: 4, 32>}, {pipeline_mode = #tpu.pipeline_mode<synchronous>, transform_indices = @transform_3, window_bounds = array<i64: 4, 32>}, {pipeline_mode = #tpu.pipeline_mode<synchronous>, transform_indices = @transform_4, window_bounds = array<i64: 32, 4>}, {pipeline_mode = #tpu.pipeline_mode<synchronous>, transform_indices = @transform_5, window_bounds = array<i64: 32, 1>}, {pipeline_mode = #tpu.pipeline_mode<synchronous>, transform_indices = @transform_6, window_bounds = array<i64: 32, 1>}, {pipeline_mode = #tpu.pipeline_mode<synchronous>, transform_indices = @transform_7, window_bounds = array<i64: 32, 1>}, {transform_indices = @transform_8, window_bounds = array<i64: 1, 32, 64>}]} {
    %c0 = arith.constant 0 : index
    %c0_0 = arith.constant 0 : index
    %c0_1 = arith.constant 0 : index
    %0 = vector.load %arg2[%c0, %c0_0, %c0_1] : memref<1x32x64xf32, #tpu.memory_space<vmem>>, vector<1x32x64xf32>
    %1 = vector.shape_cast %0 : vector<1x32x64xf32> to vector<32x64xf32>
    %c0_2 = arith.constant 0 : index
    %c0_3 = arith.constant 0 : index
    %2 = vector.load %arg4[%c0_2, %c0_3] : memref<4x32xf32, #tpu.memory_space<vmem>>, vector<4x32xf32>
    %cst = arith.constant dense<0.000000e+00> : vector<4x64xf32>
    %3 = tpu.matmul %2, %1, %cst {dimension_numbers = #tpu.dot_dimension_numbers<[1], [0], [0], [1], [0, 0, 1, 1], [], []>} : vector<4x32xf32>, vector<32x64xf32>, vector<4x64xf32> -> vector<4x64xf32>
    %cst_4 = arith.constant 0.000000e+00 : f32
    %4 = vector.broadcast %cst_4 : f32 to vector<4x64xf32>
    %5 = arith.maximumf %3, %4 : vector<4x64xf32>
    %c0_5 = arith.constant 0 : index
    %c0_6 = arith.constant 0 : index
    %6 = vector.load %arg5[%c0_5, %c0_6] : memref<4x32xf32, #tpu.memory_space<vmem>>, vector<4x32xf32>
    %cst_7 = arith.constant dense<0.000000e+00> : vector<4x64xf32>
    %7 = tpu.matmul %6, %1, %cst_7 {dimension_numbers = #tpu.dot_dimension_numbers<[1], [0], [0], [1], [0, 0, 1, 1], [], []>} : vector<4x32xf32>, vector<32x64xf32>, vector<4x64xf32> -> vector<4x64xf32>
    %cst_8 = arith.constant 0.000000e+00 : f32
    %8 = vector.broadcast %cst_8 : f32 to vector<4x64xf32>
    %9 = arith.maximumf %7, %8 : vector<4x64xf32>
    %c0_9 = arith.constant 0 : index
    %c0_10 = arith.constant 0 : index
    %10 = vector.load %arg3[%c0_9, %c0_10] : memref<4x64xf32, #tpu.memory_space<vmem>>, vector<4x64xf32>
    %11 = arith.addf %10, %5 : vector<4x64xf32>
    %12 = arith.addf %11, %9 : vector<4x64xf32>
    %c0_11 = arith.constant 0 : index
    %c0_12 = arith.constant 0 : index
    %13 = vector.load %arg6[%c0_11, %c0_12] : memref<32x4xf32, #tpu.memory_space<vmem>>, vector<32x4xf32>
    %cst_13 = arith.constant dense<0.000000e+00> : vector<32x64xf32>
    %14 = tpu.matmul %13, %12, %cst_13 {dimension_numbers = #tpu.dot_dimension_numbers<[1], [0], [0], [1], [0, 0, 1, 1], [], []>} : vector<32x4xf32>, vector<4x64xf32>, vector<32x64xf32> -> vector<32x64xf32>
    %c0_14 = arith.constant 0 : index
    %c0_15 = arith.constant 0 : index
    %15 = vector.load %arg7[%c0_14, %c0_15] : memref<32x1xf32, #tpu.memory_space<vmem>>, vector<32x1xf32>
    %16 = vector.broadcast %15 : vector<32x1xf32> to vector<32x64xf32>
    %17 = arith.addf %14, %16 : vector<32x64xf32>
    %c0_16 = arith.constant 0 : index
    %c0_17 = arith.constant 0 : index
    %18 = vector.load %arg8[%c0_16, %c0_17] : memref<32x1xf32, #tpu.memory_space<vmem>>, vector<32x1xf32>
    %19 = vector.broadcast %18 : vector<32x1xf32> to vector<32x64xf32>
    %20 = arith.mulf %17, %19 : vector<32x64xf32>
    %c0_18 = arith.constant 0 : index
    %c0_19 = arith.constant 0 : index
    %21 = vector.load %arg9[%c0_18, %c0_19] : memref<32x1xf32, #tpu.memory_space<vmem>>, vector<32x1xf32>
    %22 = vector.broadcast %21 : vector<32x1xf32> to vector<32x64xf32>
    %23 = arith.addf %20, %22 : vector<32x64xf32>
    %cst_20 = arith.constant 0.000000e+00 : f32
    %24 = vector.broadcast %cst_20 : f32 to vector<32x64xf32>
    %25 = arith.maximumf %23, %24 : vector<32x64xf32>
    %26 = arith.subf %1, %25 : vector<32x64xf32>
    %cst_21 = arith.constant 0.000000e+00 : f32
    %27 = vector.broadcast %cst_21 : f32 to vector<32x64xf32>
    %28 = arith.maximumf %26, %27 : vector<32x64xf32>
    %29 = math.absf %26 : vector<32x64xf32>
    %cst_22 = arith.constant 0.000000e+00 : f32
    %30 = vector.broadcast %cst_22 : f32 to vector<32x64xf32>
    %31 = arith.subf %30, %29 : vector<32x64xf32>
    %32 = math.exp %31 : vector<32x64xf32>
    %33 = math.log1p %32 : vector<32x64xf32>
    %34 = arith.addf %28, %33 : vector<32x64xf32>
    %35 = math.tanh %34 : vector<32x64xf32>
    %36 = arith.mulf %26, %35 : vector<32x64xf32>
    %c0_23 = arith.constant 0 : index
    %c0_24 = arith.constant 0 : index
    %c0_25 = arith.constant 0 : index
    %37 = vector.load %arg10[%c0_23, %c0_24, %c0_25] : memref<1x32x64xf32, #tpu.memory_space<vmem>>, vector<1x32x64xf32>
    %38 = vector.shape_cast %37 : vector<1x32x64xf32> to vector<32x64xf32>
    %39 = vector.shape_cast %36 : vector<32x64xf32> to vector<1x32x64xf32>
    tpu.vector_store %arg10[%c0_23, %c0_24, %c0_25], %39 {strides = array<i32>} : memref<1x32x64xf32, #tpu.memory_space<vmem>>, vector<1x32x64xf32>,
    return
  }
  func.func @transform_0(%arg0: i32, %arg1: i32) -> (i32, i32, i32) {
    %c0_i32 = arith.constant 0 : i32
    %c0_i32_0 = arith.constant 0 : i32
    return %arg0, %c0_i32, %arg1 : i32, i32, i32
  }
  func.func @transform_1(%arg0: i32, %arg1: i32) -> (i32, i32) {
    %c0_i32 = arith.constant 0 : i32
    %c0_i32_0 = arith.constant 0 : i32
    return %c0_i32, %arg1 : i32, i32
  }
  func.func @transform_2(%arg0: i32, %arg1: i32) -> (i32, i32) {
    %c0_i32 = arith.constant 0 : i32
    %c0_i32_0 = arith.constant 0 : i32
    %c0_i32_1 = arith.constant 0 : i32
    return %c0_i32, %c0_i32_0 : i32, i32
  }
  func.func @transform_3(%arg0: i32, %arg1: i32) -> (i32, i32) {
    %c0_i32 = arith.constant 0 : i32
    %c0_i32_0 = arith.constant 0 : i32
    %c0_i32_1 = arith.constant 0 : i32
    return %c0_i32, %c0_i32_0 : i32, i32
  }
  func.func @transform_4(%arg0: i32, %arg1: i32) -> (i32, i32) {
    %c0_i32 = arith.constant 0 : i32
    %c0_i32_0 = arith.constant 0 : i32
    %c0_i32_1 = arith.constant 0 : i32
    return %c0_i32, %c0_i32_0 : i32, i32
  }
  func.func @transform_5(%arg0: i32, %arg1: i32) -> (i32, i32) {
    %c0_i32 = arith.constant 0 : i32
    %c0_i32_0 = arith.constant 0 : i32
    %c0_i32_1 = arith.constant 0 : i32
    return %c0_i32, %c0_i32_0 : i32, i32
  }
  func.func @transform_6(%arg0: i32, %arg1: i32) -> (i32, i32) {
    %c0_i32 = arith.constant 0 : i32
    %c0_i32_0 = arith.constant 0 : i32
    %c0_i32_1 = arith.constant 0 : i32
    return %c0_i32, %c0_i32_0 : i32, i32
  }
  func.func @transform_7(%arg0: i32, %arg1: i32) -> (i32, i32) {
    %c0_i32 = arith.constant 0 : i32
    %c0_i32_0 = arith.constant 0 : i32
    %c0_i32_1 = arith.constant 0 : i32
    return %c0_i32, %c0_i32_0 : i32, i32
  }
  func.func @transform_8(%arg0: i32, %arg1: i32) -> (i32, i32, i32) {
    %c0_i32 = arith.constant 0 : i32
    %c0_i32_0 = arith.constant 0 : i32
    return %arg0, %c0_i32, %arg1 : i32, i32, i32
  }
}

</mosaic_0001>

<llo_original>
// kernel: tile.14
$region0: #{tile.14}
  %s0 = inlined_call_operand.vmem [shape: f32[2,3,8,64], index: 0, kind: input, shape index: {}]
  %s1 = inlined_call_operand.vmem [shape: f32[2,3,512], index: 1, kind: output, shape index: {}]
  $region1: #{tile.14} parent=0
    #allocation0 [shape = 'u8[49152]{0}', space=vmem, size = 0xc000, scoped, tag = 'scoped mem for output reshape']
    %v2 = vld [vmem:[%s0] ss:$2 sm:$0xff]
    %vm3 = vcmask 523264
    %4 = vst.msk [vmem:[#allocation0] ss:$8 sm:$0xf] %vm3, %v2
    %s5 = scalar_lea.vmem [#allocation0], 4294967265
    %6 = vst.msk [vmem:[%s5] ss:$8 sm:$0xf0] %vm3, %v2
    %s7 = scalar_lea.vmem %s0, 16
    %v8 = vld [vmem:[%s7] ss:$2 sm:$0xff]
    %vm9 = vcmask 523264
    %s10 = scalar_lea.vmem [#allocation0], 32
    %11 = vst.msk [vmem:[%s10] ss:$8 sm:$0xf] %vm9, %v8
    %s12 = scalar_lea.vmem [#allocation0], 1
    %13 = vst.msk [vmem:[%s12] ss:$8 sm:$0xf0] %vm9, %v8
    %s14 = scalar_lea.vmem %s0, 32
    %v15 = vld [vmem:[%s14] ss:$2 sm:$0xff]
    %vm16 = vcmask 523264
    %s17 = scalar_lea.vmem [#allocation0], 64
    %18 = vst.msk [vmem:[%s17] ss:$8 sm:$0xf] %vm16, %v15
    %s19 = scalar_lea.vmem [#allocation0], 33
    %20 = vst.msk [vmem:[%s19] ss:$8 sm:$0xf0] %vm16, %v15
    %s21 = scalar_lea.vmem %s0, 1
    %v22 = vld.sshfl [vmem:[%s21] sm:$0xff pattern:$0xe6c4a280]
    %23 = vrot.lane.b32.xlu0 %v22, 64
    %v24 = vpop.permute.xlu0 %23
    %vm25 = vcmask 1048064
    %26 = vst.msk [vmem:[#allocation0] sm:$0x3] %vm25, %v24
    %s27 = scalar_lea.vmem [#allocation0], 6
    %28 = vst.msk [vmem:[%s27] sm:$0xc] %vm25, %v24
    %s29 = scalar_lea.vmem [#allocation0], 12
    %30 = vst.msk [vmem:[%s29] sm:$0x30] %vm25, %v24
    %s31 = scalar_lea.vmem [#allocation0], 18
    %32 = vst.msk [vmem:[%s31] sm:$0xc0] %vm25, %v24
    %s33 = scalar_lea.vmem %s0, 17
    %v34 = vld.sshfl [vmem:[%s33] sm:$0xff pattern:$0xe6c4a280]
    %35 = vrot.lane.b32.xlu0 %v34, 64
    %v36 = vpop.permute.xlu0 %35
    %vm37 = vcmask 1048064
    %s38 = scalar_lea.vmem [#allocation0], 32
    %39 = vst.msk [vmem:[%s38] sm:$0x3] %vm37, %v36
    %s40 = scalar_lea.vmem [#allocation0], 38
    %41 = vst.msk [vmem:[%s40] sm:$0xc] %vm37, %v36
    %s42 = scalar_lea.vmem [#allocation0], 44
    %43 = vst.msk [vmem:[%s42] sm:$0x30] %vm37, %v36
    %s44 = scalar_lea.vmem [#allocation0], 50
    %45 = vst.msk [vmem:[%s44] sm:$0xc0] %vm37, %v36
    %s46 = scalar_lea.vmem %s0, 33
    %v47 = vld.sshfl [vmem:[%s46] sm:$0xff pattern:$0xe6c4a280]
    %48 = vrot.lane.b32.xlu0 %v47, 64
    %v49 = vpop.permute.xlu0 %48
    %vm50 = vcmask 1048064
    %s51 = scalar_lea.vmem [#allocation0], 64
    %52 = vst.msk [vmem:[%s51] sm:$0x3] %vm50, %v49
    %s53 = scalar_lea.vmem [#allocation0], 70
    %54 = vst.msk [vmem:[%s53] sm:$0xc] %vm50, %v49
    %s55 = scalar_lea.vmem [#allocation0], 76
    %56 = vst.msk [vmem:[%s55] sm:$0x30] %vm50, %v49
    %s57 = scalar_lea.vmem [#allocation0], 82
    %58 = vst.msk [vmem:[%s57] sm:$0xc0] %vm50, %v49
    %s60 = sshllo.u32 0, 2
    %v62 = vld [vmem:[#allocation0] sm:%s60]
    %s63 = sshllo.u32 0, 2
    %64 = vst [vmem:[%s1] sm:%s63] %v62
    %s65 = scalar_lea.vmem [#allocation0], 8
    %v66 = vld [vmem:[%s65] sm:%s60]
    %s67 = sshllo.u32 0, 2
    %s68 = scalar_lea.vmem %s1, 2
    %69 = vst [vmem:[%s68] sm:%s67] %v66
    %s70 = scalar_lea.vmem [#allocation0], 16
    %v71 = vld [vmem:[%s70] sm:%s60]
    %s72 = sshllo.u32 0, 2
    %s73 = smul.addr 2, 2
    %s74 = scalar_lea.vmem %s1, %s73
    %75 = vst [vmem:[%s74] sm:%s72] %v71
    %s76 = scalar_lea.vmem [#allocation0], 24
    %v77 = vld [vmem:[%s76] sm:%s60]
    %s78 = sshllo.u32 0, 2
    %s79 = smul.addr 2, 3
    %s80 = scalar_lea.vmem %s1, %s79
    %81 = vst [vmem:[%s80] sm:%s78] %v77
    %s82 = scalar_lea.vmem [#allocation0], 32
    %v83 = vld [vmem:[%s82] sm:%s60]
    %s84 = sshllo.u32 0, 2
    %s85 = smul.addr 2, 4
    %s86 = scalar_lea.vmem %s1, %s85
    %87 = vst [vmem:[%s86] sm:%s84] %v83
    %s88 = scalar_lea.vmem [#allocation0], 40
    %v89 = vld [vmem:[%s88] sm:%s60]
    %s90 = sshllo.u32 0, 2
    %s91 = smul.addr 2, 5
    %s92 = scalar_lea.vmem %s1, %s91
    %93 = vst [vmem:[%s92] sm:%s90] %v89
    %s94 = scalar_lea.vmem [#allocation0], 48
    %v95 = vld [vmem:[%s94] sm:%s60]
    %s96 = sshllo.u32 0, 2
    %s97 = smul.addr 2, 6
    %s98 = scalar_lea.vmem %s1, %s97
    %99 = vst [vmem:[%s98] sm:%s96] %v95
    %s100 = scalar_lea.vmem [#allocation0], 56
    %v101 = vld [vmem:[%s100] sm:%s60]
    %s102 = sshllo.u32 0, 2
    %s103 = smul.addr 2, 7
    %s104 = scalar_lea.vmem %s1, %s103
    %105 = vst [vmem:[%s104] sm:%s102] %v101
    %s106 = scalar_lea.vmem [#allocation0], 64
    %v107 = vld [vmem:[%s106] sm:%s60]
    %s108 = sshllo.u32 0, 2
    %s109 = smul.addr 2, 8
    %s110 = scalar_lea.vmem %s1, %s109
    %111 = vst [vmem:[%s110] sm:%s108] %v107
    %s112 = scalar_lea.vmem [#allocation0], 72
    %v113 = vld [vmem:[%s112] sm:%s60]
    %s114 = sshllo.u32 0, 2
    %s115 = smul.addr 2, 9
    %s116 = scalar_lea.vmem %s1, %s115
    %117 = vst [vmem:[%s116] sm:%s114] %v113
    %s118 = scalar_lea.vmem [#allocation0], 80
    %v119 = vld [vmem:[%s118] sm:%s60]
    %s120 = sshllo.u32 0, 2
    %s121 = smul.addr 2, 10
    %s122 = scalar_lea.vmem %s1, %s121
    %123 = vst [vmem:[%s122] sm:%s120] %v119
    %s124 = scalar_lea.vmem [#allocation0], 88
    %v125 = vld [vmem:[%s124] sm:%s60]
    %s126 = sshllo.u32 0, 2
    %s127 = smul.addr 2, 11
    %s128 = scalar_lea.vmem %s1, %s127
    %129 = vst [vmem:[%s128] sm:%s126] %v125

// kernel: pnp3d_forward.4
$region0: #{pnp3d_forward.4}
  #allocation0 [shape = 'u32[]', space=smem, size = 0x4, offset = 0x4, fixed_abs, tag = 'smem constant byte address 0x4 - core index']
  #allocation1 [shape = 'u32[144,128]{1,0:T(1,128)}', space=vmem, size = 0x12000, scoped, tag = 'internal scratch']
  %s0 = inlined_call_operand.vmem [shape: f32[2,64,3], index: 0, kind: input, shape index: {}]
  %s1 = inlined_call_operand.vmem [shape: f32[2,3,64], index: 1, kind: input, shape index: {}]
  %s2 = inlined_call_operand.vmem [shape: f32[2,64,64], index: 2, kind: output, shape index: {}]
  %s3 = sld [smem:[#allocation0]]
  $region41: #{pnp3d_forward.4} parent=0
    _
  %s5 = ssub.s32 1, %s3
  %s6 = scalar_select 0, %s5, %s3
  loop: start=0, step=1, limit=4
  $region2: #{pnp3d_forward.4} parent=0 // loop_pre_header
    _
  $region3: #{pnp3d_forward.4} parent=0 // loop_header
    %s8 = sphi 0, %s12
    %p9 = scmp.ge.s32.totalorder %s8, 4
    %s15 = sphi 0, %s27
    %s16 = sphi 0, %s23
    %s17 = sphi 0, %s15
    %s18 = sphi 0, %s16
    %s19 = sphi 0, %s17
    %s20 = sphi 0, %s18
    %s32 = sphi 0, %s34
    %s35 = sphi 0, %s32
    %s36 = sphi 0, %s35
    %s52 = sphi 0, %s36
    %s58 = sphi 0, %s60
    %s61 = sphi 0, %s58
    %s62 = sphi 0, %s61
    %s78 = sphi 0, %s62
    %s86 = sphi 0, %s88
    %s89 = sphi 0, %s86
    %s90 = sphi 0, %s89
    %s106 = sphi 0, %s90
  $region4: #{pnp3d_forward.4} parent=0 // loop_header_branch
    %11 = sbr.rel (%p9) target = $region8
  $region5: #{pnp3d_forward.4} parent=0 // loop_body
    %s13 = ssub.s32 %s8, 1
    %s14 = ssub.s32 %s8, 2
    %s21 = sadd.s32 1, %s16
    %p22 = scmp.ge.s32.totalorder %s21, 1
    %s23 = scalar_select %p22, 0, %s21
    %s24 = sadd.s32 1, %s15
    %s25 = scalar_select %p22, %s24, %s15
    %p26 = scmp.ge.s32.totalorder %s25, 2
    %s27 = scalar_select %p26, 0, %s25
    %s28 = ssub.s32 %s15, %s27
    %s29 = ssub.s32 %s16, %s23
    %s30 = sor.u32 %s28, %s29
    %p31 = scmp.eq.s32.totalorder %s30, 0
    %s33 = sadd.s32 %s32, 1
    %s34 = scalar_select %p31, %s32, %s33
    %p37 = pneg %p31
    %p38 = scmp.eq.s32.totalorder %s8, 1
    %p39 = por %p37, %p38
    %p40 = scmp.ne.s32.totalorder %s32, %s35
    %p41 = scmp.eq.s32.totalorder %s8, 0
    %p42 = por %p40, %p41
    %p43 = scmp.ne.s32.totalorder %s32, %s35
    %p44 = scmp.eq.s32.totalorder %s13, 1
    %p45 = por %p43, %p44
    %p46 = scmp.ne.s32.totalorder %s35, %s36
    %p47 = scmp.eq.s32.totalorder %s13, 0
    %p48 = por %p46, %p47
    %p49 = scmp.ne.s32.totalorder %s35, %s36
    %p50 = scmp.eq.s32.totalorder %s14, 1
    %p51 = por %p49, %p50
    %p53 = scmp.ne.s32.totalorder %s36, %s52
    %p54 = scmp.eq.s32.totalorder %s14, 0
    %p55 = por %p53, %p54
    %s56 = ssub.s32 %s15, %s27
    %p57 = scmp.eq.s32.totalorder %s56, 0
    %s59 = sadd.s32 %s58, 1
    %s60 = scalar_select %p57, %s58, %s59
    %p63 = pneg %p57
    %p64 = scmp.eq.s32.totalorder %s8, 1
    %p65 = por %p63, %p64
    %p66 = scmp.ne.s32.totalorder %s58, %s61
    %p67 = scmp.eq.s32.totalorder %s8, 0
    %p68 = por %p66, %p67
    %p69 = scmp.ne.s32.totalorder %s58, %s61
    %p70 = scmp.eq.s32.totalorder %s13, 1
    %p71 = por %p69, %p70
    %p72 = scmp.ne.s32.totalorder %s61, %s62
    %p73 = scmp.eq.s32.totalorder %s13, 0
    %p74 = por %p72, %p73
    %p75 = scmp.ne.s32.totalorder %s61, %s62
    %p76 = scmp.eq.s32.totalorder %s14, 1
    %p77 = por %p75, %p76
    %p79 = scmp.ne.s32.totalorder %s62, %s78
    %p80 = scmp.eq.s32.totalorder %s14, 0
    %p81 = por %p79, %p80
    %s82 = ssub.s32 %s15, %s27
    %s83 = ssub.s32 %s16, %s23
    %s84 = sor.u32 %s82, %s83
    %p85 = scmp.eq.s32.totalorder %s84, 0
    %s87 = sadd.s32 %s86, 1
    %s88 = scalar_select %p85, %s86, %s87
    %p91 = pneg %p85
    %p92 = scmp.eq.s32.totalorder %s8, 1
    %p93 = por %p91, %p92
    %p94 = scmp.ne.s32.totalorder %s86, %s89
    %p95 = scmp.eq.s32.totalorder %s8, 0
    %p96 = por %p94, %p95
    %p97 = scmp.ne.s32.totalorder %s86, %s89
    %p98 = scmp.eq.s32.totalorder %s13, 1
    %p99 = por %p97, %p98
    %p100 = scmp.ne.s32.totalorder %s89, %s90
    %p101 = scmp.eq.s32.totalorder %s13, 0
    %p102 = por %p100, %p101
    %p103 = scmp.ne.s32.totalorder %s89, %s90
    %p104 = scmp.eq.s32.totalorder %s14, 1
    %p105 = por %p103, %p104
    %p107 = scmp.ne.s32.totalorder %s90, %s106
    %p108 = scmp.eq.s32.totalorder %s14, 0
    %p109 = por %p107, %p108
    %p110 = scmp.le.s32.totalorder 1, %s8
    %p111 = scmp.lt.s32.totalorder %s8, 3
    %p112 = pnand %p110, %p111
    %p113 = pneg %p112
    // Predicated region
    $region9: #{pnp3d_forward.4} parent=5 // pred_check
      _
    $region10: #{pnp3d_forward.4} parent=5 // pred_check_branch
      %115 = sbr.rel (%p112) target = $region12
    $region11: #{pnp3d_forward.4} parent=5 // pred_region
      %s116 = ssub.s32 %s8, 1
    $region12: #{pnp3d_forward.4} parent=5 // pred_fallthru
      _
    %p117 = scmp.lt.s32.totalorder %s8, 2
    // Predicated region
    $region13: #{pnp3d_forward.4} parent=5 // pred_check
      %p118 = pneg %p117
    $region14: #{pnp3d_forward.4} parent=5 // pred_check_branch
      %120 = sbr.rel (%p118) target = $region16
    $region15: #{pnp3d_forward.4} parent=5 // pred_region
      // Predicated region
      $region17: #{pnp3d_forward.4} parent=15 // pred_check
        %p121 = pneg %p42
      $region18: #{pnp3d_forward.4} parent=15 // pred_check_branch
        %123 = sbr.rel (%p121) target = $region20
      $region19: #{pnp3d_forward.4} parent=15 // pred_region
        %s124 = smul.u32 8, %s16
        %p125 = scmp.lt.s32.totalorder %s15, 1
        %s126 = scalar_select %p125, %s15, 1
        %p127 = scmp.lt.s32.totalorder %s124, 7
        %s128 = scalar_select %p127, %s124, 7
        %s129 = smul.addr %s126, 8
        %s130 = sadd.s32 %s128, %s129
        %s131 = smul.addr %s130, 8
        %s132 = scalar_lea.vmem %s0, %s131
        %s133 = smul.u32 8, %s16
      $region20: #{pnp3d_forward.4} parent=15 // pred_fallthru
        _
      // Predicated region
      $region21: #{pnp3d_forward.4} parent=15 // pred_check
        %p134 = pneg %p68
      $region22: #{pnp3d_forward.4} parent=15 // pred_check_branch
        %136 = sbr.rel (%p134) target = $region24
      $region23: #{pnp3d_forward.4} parent=15 // pred_region
        %p137 = scmp.lt.s32.totalorder %s15, 1
        %s138 = scalar_select %p137, %s15, 1
        %s139 = smul.addr %s138, 4
        %s140 = scalar_lea.vmem %s1, %s139
      $region24: #{pnp3d_forward.4} parent=15 // pred_fallthru
        _
    $region16: #{pnp3d_forward.4} parent=5 // pred_fallthru
      _
    %p141 = scmp.le.s32.totalorder 1, %s8
    %p142 = scmp.lt.s32.totalorder %s8, 3
    %p143 = pnand %p141, %p142
    %p144 = pneg %p143
    // Predicated region
    $region25: #{pnp3d_forward.4} parent=5 // pred_check
      _
    $region26: #{pnp3d_forward.4} parent=5 // pred_check_branch
      %146 = sbr.rel (%p143) target = $region28
    $region27: #{pnp3d_forward.4} parent=5 // pred_region
      %s147 = ssub.s32 %s8, 1
      %s148 = smul.u32 8, %s18
      %p149 = scmp.lt.s32.totalorder %s17, 1
      %s150 = scalar_select %p149, %s17, 1
      %p151 = scmp.lt.s32.totalorder %s148, 7
      %s152 = scalar_select %p151, %s148, 7
      %s153 = smul.addr %s150, 8
      %s154 = sadd.s32 %s152, %s153
      %s155 = smul.addr %s154, 8
      %s156 = scalar_lea.vmem %s0, %s155
      %p157 = pneg %p48
      %p158 = pneg %p45
      %p159 = scmp.lt.s32.totalorder %s17, 1
      %s160 = scalar_select %p159, %s17, 1
      %s161 = smul.addr %s160, 4
      %s162 = scalar_lea.vmem %s1, %s161
      %p163 = pneg %p74
      %p164 = pneg %p71
      %p165 = pneg %p102
      %p166 = pneg %p99
      %s167 = smul.u32 8, %s18
      %p168 = scmp.lt.s32.totalorder %s17, 1
      %s169 = scalar_select %p168, %s17, 1
      %p170 = scmp.lt.s32.totalorder %s167, 7
      %s171 = scalar_select %p170, %s167, 7
      %s172 = smul.addr %s169, 8
      %s173 = sadd.s32 %s171, %s172
      %s174 = smul.addr %s173, 8
      %s175 = scalar_lea.vmem %s2, %s174
      %s176 = smul.u32 8, %s18
      %p177 = scmp.lt.s32.totalorder %s17, 1
      %s178 = scalar_select %p177, %s17, 1
      %p179 = scmp.lt.s32.totalorder %s176, 7
      %s180 = scalar_select %p179, %s176, 7
      %s181 = smul.addr %s178, 8
      %s182 = sadd.s32 %s180, %s181
      %s183 = smul.addr %s182, 8
      %s184 = scalar_lea.vmem %s0, %s183
      %s185 = smul.u32 8, %s18
      %p186 = scmp.lt.s32.totalorder %s17, 1
      %s187 = scalar_select %p186, %s17, 1
      %s188 = smul.addr %s187, 4
      %s189 = scalar_lea.vmem %s1, %s188
      %s190 = smul.u32 8, %s18
      %p191 = scmp.lt.s32.totalorder %s17, 1
      %s192 = scalar_select %p191, %s17, 1
      %p193 = scmp.lt.s32.totalorder %s190, 7
      %s194 = scalar_select %p193, %s190, 7
      %s195 = smul.addr %s192, 8
      %s196 = sadd.s32 %s194, %s195
      %s197 = smul.addr %s196, 8
      %s198 = scalar_lea.vmem %s2, %s197
      %s199 = smul.u32 8, %s18
      %v200 = vld [vmem:[%s184] sm:$0xff]
      %v201 = vld [vmem:[%s184 + $0x8] sm:$0xff]
      %v202 = vld [vmem:[%s184 + $0x10] sm:$0xff]
      %v203 = vld [vmem:[%s184 + $0x18] sm:$0xff]
      %v204 = vld [vmem:[%s184 + $0x20] sm:$0xff]
      %v205 = vld [vmem:[%s184 + $0x28] sm:$0xff]
      %v206 = vld [vmem:[%s184 + $0x30] sm:$0xff]
      %v207 = vld [vmem:[%s184 + $0x38] sm:$0xff]
      %v208 = vld [vmem:[%s189] sm:$0x7]
      %vm209 = vcmask 23552
      %v211 = vsel %vm209, %v200, 0
      %v214 = vsel %vm209, %v201, 0
      %v217 = vsel %vm209, %v202, 0
      %v220 = vsel %vm209, %v203, 0
      %v223 = vsel %vm209, %v204, 0
      %v226 = vsel %vm209, %v205, 0
      %v229 = vsel %vm209, %v206, 0
      %v232 = vsel %vm209, %v207, 0
      %vm234 = vcmask 1042432
      %v236 = vsel %vm234, %v208, 0
      %238 = vmatprep.subr.mxu0 0.0
      %239 = vmatpush1.msra.mxu0 %v236
      %240 = vmatprep.subr.mxu0 0.0
      %241 = vmatpush1.msra.mxu0 0.0
      %242 = vmatprep.subr.mxu0 0.0
      %243 = vmatpush1.msra.mxu0 0.0
      %244 = vmatprep.subr.mxu0 0.0
      %245 = vmatpush1.msra.mxu0 0.0
      %246 = vmatprep.subr.mxu0 0.0
      %247 = vmatpush1.msra.mxu0 0.0
      %248 = vmatprep.subr.mxu0 0.0
      %249 = vmatpush1.msra.mxu0 0.0
      %250 = vmatprep.subr.mxu0 0.0
      %251 = vmatpush1.msra.mxu0 0.0
      %252 = vmatprep.subr.mxu0 0.0
      %253 = vmatpush1.msra.mxu0 0.0
      %254 = vmatprep.subr.mxu0 0.0
      %255 = vmatpush1.msra.mxu0 0.0
      %256 = vmatprep.subr.mxu0 0.0
      %257 = vmatpush1.msra.mxu0 0.0
      %258 = vmatprep.subr.mxu0 0.0
      %259 = vmatpush1.msra.mxu0 0.0
      %260 = vmatprep.subr.mxu0 0.0
      %261 = vmatpush1.msra.mxu0 0.0
      %262 = vmatprep.subr.mxu0 0.0
      %263 = vmatpush1.msra.mxu0 0.0
      %264 = vmatprep.subr.mxu0 0.0
      %265 = vmatpush1.msra.mxu0 0.0
      %266 = vmatprep.subr.mxu0 0.0
      %267 = vmatpush1.msra.mxu0 0.0
      %268 = vmatprep.subr.mxu0 0.0
      %269 = vmatpush1.msra.mxu0 0.0
      %270 = vmatprep.subr.mxu0 0.0
      %271 = vmatpush1.msra.mxu0 0.0
      %272 = vmatprep.subr.mxu0 0.0
      %273 = vmatpush1.msra.mxu0 0.0
      %274 = vmatprep.subr.mxu0 0.0
      %275 = vmatpush1.msra.mxu0 0.0
      %276 = vmatprep.subr.mxu0 0.0
      %277 = vmatpush1.msra.mxu0 0.0
      %278 = vmatprep.subr.mxu0 0.0
      %279 = vmatpush1.msra.mxu0 0.0
      %280 = vmatprep.subr.mxu0 0.0
      %281 = vmatpush1.msra.mxu0 0.0
      %282 = vmatprep.subr.mxu0 0.0
      %283 = vmatpush1.msra.mxu0 0.0
      %284 = vmatprep.subr.mxu0 0.0
      %285 = vmatpush1.msra.mxu0 0.0
      %286 = vmatprep.subr.mxu0 0.0
      %287 = vmatpush1.msra.mxu0 0.0
      %288 = vmatprep.subr.mxu0 0.0
      %289 = vmatpush1.msra.mxu0 0.0
      %290 = vmatprep.subr.mxu0 0.0
      %291 = vmatpush1.msra.mxu0 0.0
      %292 = vmatprep.subr.mxu0 0.0
      %293 = vmatpush1.msra.mxu0 0.0
      %294 = vmatprep.subr.mxu0 0.0
      %295 = vmatpush1.msra.mxu0 0.0
      %296 = vmatprep.subr.mxu0 0.0
      %297 = vmatpush1.msra.mxu0 0.0
      %298 = vmatprep.subr.mxu0 0.0
      %299 = vmatpush1.msra.mxu0 0.0
      %300 = vmatprep.subr.mxu0 0.0
      %301 = vmatpush1.msra.mxu0 0.0
      %302 = vmatprep.mubr.f32.mxu0 0.0
      %303 = vmatmul.mubr.f32.gmra.mrb[0].mxu0 %v211
      %v304 = vpop.f32.mrb[0].mxu0
      %v305 = vadd.f32 0.0, %v304
      %v306 = vpop.f32.mrb[0].mxu0
      %307 = vmatprep.mubr.f32.mxu0 0.0
      %308 = vmatmul.mubr.f32.gmra.mrb[0].mxu0 %v214
      %v309 = vpop.f32.mrb[0].mxu0
      %v310 = vadd.f32 0.0, %v309
      %v311 = vpop.f32.mrb[0].mxu0
      %312 = vmatprep.mubr.f32.mxu0 0.0
      %313 = vmatmul.mubr.f32.gmra.mrb[0].mxu0 %v217
      %v314 = vpop.f32.mrb[0].mxu0
      %v315 = vadd.f32 0.0, %v314
      %v316 = vpop.f32.mrb[0].mxu0
      %317 = vmatprep.mubr.f32.mxu0 0.0
      %318 = vmatmul.mubr.f32.gmra.mrb[0].mxu0 %v220
      %v319 = vpop.f32.mrb[0].mxu0
      %v320 = vadd.f32 0.0, %v319
      %v321 = vpop.f32.mrb[0].mxu0
      %322 = vmatprep.mubr.f32.mxu0 0.0
      %323 = vmatmul.mubr.f32.gmra.mrb[0].mxu0 %v223
      %v324 = vpop.f32.mrb[0].mxu0
      %v325 = vadd.f32 0.0, %v324
      %v326 = vpop.f32.mrb[0].mxu0
      %327 = vmatprep.mubr.f32.mxu0 0.0
      %328 = vmatmul.mubr.f32.gmra.mrb[0].mxu0 %v226
      %v329 = vpop.f32.mrb[0].mxu0
      %v330 = vadd.f32 0.0, %v329
      %v331 = vpop.f32.mrb[0].mxu0
      %332 = vmatprep.mubr.f32.mxu0 0.0
      %333 = vmatmul.mubr.f32.gmra.mrb[0].mxu0 %v229
      %v334 = vpop.f32.mrb[0].mxu0
      %v335 = vadd.f32 0.0, %v334
      %v336 = vpop.f32.mrb[0].mxu0
      %337 = vmatprep.mubr.f32.mxu0 0.0
      %338 = vmatmul.mubr.f32.gmra.mrb[0].mxu0 %v232
      %v339 = vpop.f32.mrb[0].mxu0
      %v340 = vadd.f32 0.0, %v339
      %v341 = vpop.f32.mrb[0].mxu0
      %342 = vdwg.mxu0
      %v343 = vmul.f32 %v200, %v200
      %v344 = vmul.f32 %v201, %v201
      %v345 = vmul.f32 %v202, %v202
      %v346 = vmul.f32 %v203, %v203
      %v347 = vmul.f32 %v204, %v204
      %v348 = vmul.f32 %v205, %v205
      %v349 = vmul.f32 %v206, %v206
      %v350 = vmul.f32 %v207, %v207
      %v351 = vsel %vm209, %v343, 0.0
      %352 = vadd.xlane.f32.xlu0 %v351
      %v353 = vpop.xlane.xlu0 %352
      %v354 = vsel %vm209, %v344, 0.0
      %355 = vadd.xlane.f32.xlu0 %v354
      %v356 = vpop.xlane.xlu0 %355
      %v357 = vsel %vm209, %v345, 0.0
      %358 = vadd.xlane.f32.xlu0 %v357
      %v359 = vpop.xlane.xlu0 %358
      %v360 = vsel %vm209, %v346, 0.0
      %361 = vadd.xlane.f32.xlu0 %v360
      %v362 = vpop.xlane.xlu0 %361
      %v363 = vsel %vm209, %v347, 0.0
      %364 = vadd.xlane.f32.xlu0 %v363
      %v365 = vpop.xlane.xlu0 %364
      %v366 = vsel %vm209, %v348, 0.0
      %367 = vadd.xlane.f32.xlu0 %v366
      %v368 = vpop.xlane.xlu0 %367
      %v369 = vsel %vm209, %v349, 0.0
      %370 = vadd.xlane.f32.xlu0 %v369
      %v371 = vpop.xlane.xlu0 %370
      %v372 = vsel %vm209, %v350, 0.0
      %373 = vadd.xlane.f32.xlu0 %v372
      %v374 = vpop.xlane.xlu0 %373
      %v375 = vmul.f32 %v208, %v208
      %vm376 = vcmask 518144
      %v377 = vsel %vm376, %v375, 0.0
      %v378 = vrot.slane %v377, 4
      %v379 = vadd.f32 %v377, %v378
      %v380 = vrot.slane %v379, 2
      %v381 = vadd.f32 %v379, %v380
      %v382 = vrot.slane %v381, 1
      %v383 = vadd.f32 %v381, %v382
      %v384 = vmul.f32 %v305, 2.0
      %v385 = vmul.f32 %v310, 2.0
      %v386 = vmul.f32 %v315, 2.0
      %v387 = vmul.f32 %v320, 2.0
      %v388 = vmul.f32 %v325, 2.0
      %v389 = vmul.f32 %v330, 2.0
      %v390 = vmul.f32 %v335, 2.0
      %v391 = vmul.f32 %v340, 2.0
      %v392 = vsub.f32 %v384, %v353
      %v393 = vsub.f32 %v385, %v356
      %v394 = vsub.f32 %v386, %v359
      %v395 = vsub.f32 %v387, %v362
      %v396 = vsub.f32 %v388, %v365
      %v397 = vsub.f32 %v389, %v368
      %v398 = vsub.f32 %v390, %v371
      %v399 = vsub.f32 %v391, %v374
      %v400 = vsub.f32 %v392, %v383
      %v401 = vsub.f32 %v393, %v383
      %v402 = vsub.f32 %v394, %v383
      %v403 = vsub.f32 %v395, %v383
      %v404 = vsub.f32 %v396, %v383
      %v405 = vsub.f32 %v397, %v383
      %v406 = vsub.f32 %v398, %v383
      %v407 = vsub.f32 %v399, %v383
      %vm408 = vcmask 523264
      %409 = vst.msk [vmem:[%s198] sm:$0xff] %vm408, %v400
      %410 = vst.msk [vmem:[%s198 + $0x8] sm:$0xff] %vm408, %v401
      %411 = vst.msk [vmem:[%s198 + $0x10] sm:$0xff] %vm408, %v402
      %412 = vst.msk [vmem:[%s198 + $0x18] sm:$0xff] %vm408, %v403
      %413 = vst.msk [vmem:[%s198 + $0x20] sm:$0xff] %vm408, %v404
      %414 = vst.msk [vmem:[%s198 + $0x28] sm:$0xff] %vm408, %v405
      %415 = vst.msk [vmem:[%s198 + $0x30] sm:$0xff] %vm408, %v406
      %416 = vst.msk [vmem:[%s198 + $0x38] sm:$0xff] %vm408, %v407
      %s417 = smul.u32 8, %s18
      %p418 = scmp.lt.s32.totalorder %s17, 1
      %s419 = scalar_select %p418, %s17, 1
      %p420 = scmp.lt.s32.totalorder %s417, 7
      %s421 = scalar_select %p420, %s417, 7
      %s422 = smul.addr %s419, 8
      %s423 = sadd.s32 %s421, %s422
      %s424 = smul.addr %s423, 8
      %s425 = scalar_lea.vmem %s2, %s424
      // Predicated region
      $region29: #{pnp3d_forward.4} parent=27 // pred_check
        %p426 = pneg %p99
      $region30: #{pnp3d_forward.4} parent=27 // pred_check_branch
        %428 = sbr.rel (%p426) target = $region32
      $region31: #{pnp3d_forward.4} parent=27 // pred_region
        %s429 = smul.u32 8, %s18
      $region32: #{pnp3d_forward.4} parent=27 // pred_fallthru
        _
    $region28: #{pnp3d_forward.4} parent=5 // pred_fallthru
      _
    %p430 = scmp.le.s32.totalorder 2, %s8
    // Predicated region
    $region33: #{pnp3d_forward.4} parent=5 // pred_check
      %p431 = pneg %p430
    $region34: #{pnp3d_forward.4} parent=5 // pred_check_branch
      %433 = sbr.rel (%p431) target = $region36
    $region35: #{pnp3d_forward.4} parent=5 // pred_region
      %s434 = ssub.s32 %s8, 2
      // Predicated region
      $region37: #{pnp3d_forward.4} parent=35 // pred_check
        %p435 = pneg %p105
      $region38: #{pnp3d_forward.4} parent=35 // pred_check_branch
        %437 = sbr.rel (%p435) target = $region40
      $region39: #{pnp3d_forward.4} parent=35 // pred_region
        %s438 = smul.u32 8, %s20
        %p439 = scmp.lt.s32.totalorder %s19, 1
        %s440 = scalar_select %p439, %s19, 1
        %p441 = scmp.lt.s32.totalorder %s438, 7
        %s442 = scalar_select %p441, %s438, 7
        %s443 = smul.addr %s440, 8
        %s444 = sadd.s32 %s442, %s443
        %s445 = smul.addr %s444, 8
        %s446 = scalar_lea.vmem %s2, %s445
      $region40: #{pnp3d_forward.4} parent=35 // pred_fallthru
        _
    $region36: #{pnp3d_forward.4} parent=5 // pred_fallthru
      _
  $region6: #{pnp3d_forward.4} parent=0 // loop_footer
    %s12 = sadd.s32 1, %s8
  $region7: #{pnp3d_forward.4} parent=0 // loop_footer_branch
    %7 = sbr.rel target = $region3
  $region8: #{pnp3d_forward.4} parent=0 // loop_exit
    _

// kernel: tile.19
$region0: #{tile.19}
  %s0 = inlined_call_operand.vmem [shape: f32[2,32,8,64], index: 0, kind: input, shape index: {}]
  %s1 = inlined_call_operand.vmem [shape: f32[2,32,512], index: 1, kind: output, shape index: {}]
  %v2 = vld [vmem:[%s0] ss:$2 sm:$0xff]
  %vm3 = vcmask 523264
  %4 = vst.msk [vmem:[%s1] ss:$8 sm:$0xf] %vm3, %v2
  %s5 = scalar_lea.vmem %s1, 4294967265
  %6 = vst.msk [vmem:[%s5] ss:$8 sm:$0xf0] %vm3, %v2
  %s7 = scalar_lea.vmem %s0, 16
  %v8 = vld [vmem:[%s7] ss:$2 sm:$0xff]
  %vm9 = vcmask 523264
  %s10 = scalar_lea.vmem %s1, 2
  %11 = vst.msk [vmem:[%s10] ss:$8 sm:$0xf] %vm9, %v8
  %s12 = scalar_lea.vmem %s1, 4294967267
  %13 = vst.msk [vmem:[%s12] ss:$8 sm:$0xf0] %vm9, %v8
  %s14 = scalar_lea.vmem %s0, 32
  %v15 = vld [vmem:[%s14] ss:$2 sm:$0xff]
  %vm16 = vcmask 523264
  %s17 = scalar_lea.vmem %s1, 4
  %18 = vst.msk [vmem:[%s17] ss:$8 sm:$0xf] %vm16, %v15
  %s19 = scalar_lea.vmem %s1, 4294967269
  %20 = vst.msk [vmem:[%s19] ss:$8 sm:$0xf0] %vm16, %v15
  %s21 = scalar_lea.vmem %s0, 48
  %v22 = vld [vmem:[%s21] ss:$2 sm:$0xff]
  %vm23 = vcmask 523264
  %s24 = scalar_lea.vmem %s1, 6
  %25 = vst.msk [vmem:[%s24] ss:$8 sm:$0xf] %vm23, %v22
  %s26 = scalar_lea.vmem %s1, 4294967271
  %27 = vst.msk [vmem:[%s26] ss:$8 sm:$0xf0] %vm23, %v22
  %s28 = scalar_lea.vmem %s0, 64
  %v29 = vld [vmem:[%s28] ss:$2 sm:$0xff]
  %vm30 = vcmask 523264
  %s31 = scalar_lea.vmem %s1, 32
  %32 = vst.msk [vmem:[%s31] ss:$8 sm:$0xf] %vm30, %v29
  %s33 = scalar_lea.vmem %s1, 1
  %34 = vst.msk [vmem:[%s33] ss:$8 sm:$0xf0] %vm30, %v29
  %s35 = scalar_lea.vmem %s0, 80
  %v36 = vld [vmem:[%s35] ss:$2 sm:$0xff]
  %vm37 = vcmask 523264
  %s38 = scalar_lea.vmem %s1, 34
  %39 = vst.msk [vmem:[%s38] ss:$8 sm:$0xf] %vm37, %v36
  %s40 = scalar_lea.vmem %s1, 3
  %41 = vst.msk [vmem:[%s40] ss:$8 sm:$0xf0] %vm37, %v36
  %s42 = scalar_lea.vmem %s0, 96
  %v43 = vld [vmem:[%s42] ss:$2 sm:$0xff]
  %vm44 = vcmask 523264
  %s45 = scalar_lea.vmem %s1, 36
  %46 = vst.msk [vmem:[%s45] ss:$8 sm:$0xf] %vm44, %v43
  %s47 = scalar_lea.vmem %s1, 5
  %48 = vst.msk [vmem:[%s47] ss:$8 sm:$0xf0] %vm44, %v43
  %s49 = scalar_lea.vmem %s0, 112
  %v50 = vld [vmem:[%s49] ss:$2 sm:$0xff]
  %vm51 = vcmask 523264
  %s52 = scalar_lea.vmem %s1, 38
  %53 = vst.msk [vmem:[%s52] ss:$8 sm:$0xf] %vm51, %v50
  %s54 = scalar_lea.vmem %s1, 7
  %55 = vst.msk [vmem:[%s54] ss:$8 sm:$0xf0] %vm51, %v50
  %s56 = scalar_lea.vmem %s0, 128
  %v57 = vld [vmem:[%s56] ss:$2 sm:$0xff]
  %vm58 = vcmask 523264
  %s59 = scalar_lea.vmem %s1, 64
  %60 = vst.msk [vmem:[%s59] ss:$8 sm:$0xf] %vm58, %v57
  %s61 = scalar_lea.vmem %s1, 33
  %62 = vst.msk [vmem:[%s61] ss:$8 sm:$0xf0] %vm58, %v57
  %s63 = scalar_lea.vmem %s0, 144
  %v64 = vld [vmem:[%s63] ss:$2 sm:$0xff]
  %vm65 = vcmask 523264
  %s66 = scalar_lea.vmem %s1, 66
  %67 = vst.msk [vmem:[%s66] ss:$8 sm:$0xf] %vm65, %v64
  %s68 = scalar_lea.vmem %s1, 35
  %69 = vst.msk [vmem:[%s68] ss:$8 sm:$0xf0] %vm65, %v64
  %s70 = scalar_lea.vmem %s0, 160
  %v71 = vld [vmem:[%s70] ss:$2 sm:$0xff]
  %vm72 = vcmask 523264
  %s73 = scalar_lea.vmem %s1, 68
  %74 = vst.msk [vmem:[%s73] ss:$8 sm:$0xf] %vm72, %v71
  %s75 = scalar_lea.vmem %s1, 37
  %76 = vst.msk [vmem:[%s75] ss:$8 sm:$0xf0] %vm72, %v71
  %s77 = scalar_lea.vmem %s0, 176
  %v78 = vld [vmem:[%s77] ss:$2 sm:$0xff]
  %vm79 = vcmask 523264
  %s80 = scalar_lea.vmem %s1, 70
  %81 = vst.msk [vmem:[%s80] ss:$8 sm:$0xf] %vm79, %v78
  %s82 = scalar_lea.vmem %s1, 39
  %83 = vst.msk [vmem:[%s82] ss:$8 sm:$0xf0] %vm79, %v78
  %s84 = scalar_lea.vmem %s0, 192
  %v85 = vld [vmem:[%s84] ss:$2 sm:$0xff]
  %vm86 = vcmask 523264
  %s87 = scalar_lea.vmem %s1, 96
  %88 = vst.msk [vmem:[%s87] ss:$8 sm:$0xf] %vm86, %v85
  %s89 = scalar_lea.vmem %s1, 65
  %90 = vst.msk [vmem:[%s89] ss:$8 sm:$0xf0] %vm86, %v85
  %s91 = scalar_lea.vmem %s0, 208
  %v92 = vld [vmem:[%s91] ss:$2 sm:$0xff]
  %vm93 = vcmask 523264
  %s94 = scalar_lea.vmem %s1, 98
  %95 = vst.msk [vmem:[%s94] ss:$8 sm:$0xf] %vm93, %v92
  %s96 = scalar_lea.vmem %s1, 67
  %97 = vst.msk [vmem:[%s96] ss:$8 sm:$0xf0] %vm93, %v92
  %s98 = scalar_lea.vmem %s0, 224
  %v99 = vld [vmem:[%s98] ss:$2 sm:$0xff]
  %vm100 = vcmask 523264
  %s101 = scalar_lea.vmem %s1, 100
  %102 = vst.msk [vmem:[%s101] ss:$8 sm:$0xf] %vm100, %v99
  %s103 = scalar_lea.vmem %s1, 69
  %104 = vst.msk [vmem:[%s103] ss:$8 sm:$0xf0] %vm100, %v99
  %s105 = scalar_lea.vmem %s0, 240
  %v106 = vld [vmem:[%s105] ss:$2 sm:$0xff]
  %vm107 = vcmask 523264
  %s108 = scalar_lea.vmem %s1, 102
  %109 = vst.msk [vmem:[%s108] ss:$8 sm:$0xf] %vm107, %v106
  %s110 = scalar_lea.vmem %s1, 71
  %111 = vst.msk [vmem:[%s110] ss:$8 sm:$0xf0] %vm107, %v106
  %s112 = scalar_lea.vmem %s0, 256
  %v113 = vld [vmem:[%s112] ss:$2 sm:$0xff]
  %vm114 = vcmask 523264
  %s115 = scalar_lea.vmem %s1, 128
  %116 = vst.msk [vmem:[%s115] ss:$8 sm:$0xf] %vm114, %v113
  %s117 = scalar_lea.vmem %s1, 97
  %118 = vst.msk [vmem:[%s117] ss:$8 sm:$0xf0] %vm114, %v113
  %s119 = scalar_lea.vmem %s0, 272
  %v120 = vld [vmem:[%s119] ss:$2 sm:$0xff]
  %vm121 = vcmask 523264
  %s122 = scalar_lea.vmem %s1, 130
  %123 = vst.msk [vmem:[%s122] ss:$8 sm:$0xf] %vm121, %v120
  %s124 = scalar_lea.vmem %s1, 99
  %125 = vst.msk [vmem:[%s124] ss:$8 sm:$0xf0] %vm121, %v120
  %s126 = scalar_lea.vmem %s0, 288
  %v127 = vld [vmem:[%s126] ss:$2 sm:$0xff]
  %vm128 = vcmask 523264
  %s129 = scalar_lea.vmem %s1, 132
  %130 = vst.msk [vmem:[%s129] ss:$8 sm:$0xf] %vm128, %v127
  %s131 = scalar_lea.vmem %s1, 101
  %132 = vst.msk [vmem:[%s131] ss:$8 sm:$0xf0] %vm128, %v127
  %s133 = scalar_lea.vmem %s0, 304
  %v134 = vld [vmem:[%s133] ss:$2 sm:$0xff]
  %vm135 = vcmask 523264
  %s136 = scalar_lea.vmem %s1, 134
  %137 = vst.msk [vmem:[%s136] ss:$8 sm:$0xf] %vm135, %v134
  %s138 = scalar_lea.vmem %s1, 103
  %139 = vst.msk [vmem:[%s138] ss:$8 sm:$0xf0] %vm135, %v134
  %s140 = scalar_lea.vmem %s0, 320
  %v141 = vld [vmem:[%s140] ss:$2 sm:$0xff]
  %vm142 = vcmask 523264
  %s143 = scalar_lea.vmem %s1, 160
  %144 = vst.msk [vmem:[%s143] ss:$8 sm:$0xf] %vm142, %v141
  %s145 = scalar_lea.vmem %s1, 129
  %146 = vst.msk [vmem:[%s145] ss:$8 sm:$0xf0] %vm142, %v141
  %s147 = scalar_lea.vmem %s0, 336
  %v148 = vld [vmem:[%s147] ss:$2 sm:$0xff]
  %vm149 = vcmask 523264
  %s150 = scalar_lea.vmem %s1, 162
  %151 = vst.msk [vmem:[%s150] ss:$8 sm:$0xf] %vm149, %v148
  %s152 = scalar_lea.vmem %s1, 131
  %153 = vst.msk [vmem:[%s152] ss:$8 sm:$0xf0] %vm149, %v148
  %s154 = scalar_lea.vmem %s0, 352
  %v155 = vld [vmem:[%s154] ss:$2 sm:$0xff]
  %vm156 = vcmask 523264
  %s157 = scalar_lea.vmem %s1, 164
  %158 = vst.msk [vmem:[%s157] ss:$8 sm:$0xf] %vm156, %v155
  %s159 = scalar_lea.vmem %s1, 133
  %160 = vst.msk [vmem:[%s159] ss:$8 sm:$0xf0] %vm156, %v155
  %s161 = scalar_lea.vmem %s0, 368
  %v162 = vld [vmem:[%s161] ss:$2 sm:$0xff]
  %vm163 = vcmask 523264
  %s164 = scalar_lea.vmem %s1, 166
  %165 = vst.msk [vmem:[%s164] ss:$8 sm:$0xf] %vm163, %v162
  %s166 = scalar_lea.vmem %s1, 135
  %167 = vst.msk [vmem:[%s166] ss:$8 sm:$0xf0] %vm163, %v162
  %s168 = scalar_lea.vmem %s0, 384
  %v169 = vld [vmem:[%s168] ss:$2 sm:$0xff]
  %vm170 = vcmask 523264
  %s171 = scalar_lea.vmem %s1, 192
  %172 = vst.msk [vmem:[%s171] ss:$8 sm:$0xf] %vm170, %v169
  %s173 = scalar_lea.vmem %s1, 161
  %174 = vst.msk [vmem:[%s173] ss:$8 sm:$0xf0] %vm170, %v169
  %s175 = scalar_lea.vmem %s0, 400
  %v176 = vld [vmem:[%s175] ss:$2 sm:$0xff]
  %vm177 = vcmask 523264
  %s178 = scalar_lea.vmem %s1, 194
  %179 = vst.msk [vmem:[%s178] ss:$8 sm:$0xf] %vm177, %v176
  %s180 = scalar_lea.vmem %s1, 163
  %181 = vst.msk [vmem:[%s180] ss:$8 sm:$0xf0] %vm177, %v176
  %s182 = scalar_lea.vmem %s0, 416
  %v183 = vld [vmem:[%s182] ss:$2 sm:$0xff]
  %vm184 = vcmask 523264
  %s185 = scalar_lea.vmem %s1, 196
  %186 = vst.msk [vmem:[%s185] ss:$8 sm:$0xf] %vm184, %v183
  %s187 = scalar_lea.vmem %s1, 165
  %188 = vst.msk [vmem:[%s187] ss:$8 sm:$0xf0] %vm184, %v183
  %s189 = scalar_lea.vmem %s0, 432
  %v190 = vld [vmem:[%s189] ss:$2 sm:$0xff]
  %vm191 = vcmask 523264
  %s192 = scalar_lea.vmem %s1, 198
  %193 = vst.msk [vmem:[%s192] ss:$8 sm:$0xf] %vm191, %v190
  %s194 = scalar_lea.vmem %s1, 167
  %195 = vst.msk [vmem:[%s194] ss:$8 sm:$0xf0] %vm191, %v190
  %s196 = scalar_lea.vmem %s0, 448
  %v197 = vld [vmem:[%s196] ss:$2 sm:$0xff]
  %vm198 = vcmask 523264
  %s199 = scalar_lea.vmem %s1, 224
  %200 = vst.msk [vmem:[%s199] ss:$8 sm:$0xf] %vm198, %v197
  %s201 = scalar_lea.vmem %s1, 193
  %202 = vst.msk [vmem:[%s201] ss:$8 sm:$0xf0] %vm198, %v197
  %s203 = scalar_lea.vmem %s0, 464
  %v204 = vld [vmem:[%s203] ss:$2 sm:$0xff]
  %vm205 = vcmask 523264
  %s206 = scalar_lea.vmem %s1, 226
  %207 = vst.msk [vmem:[%s206] ss:$8 sm:$0xf] %vm205, %v204
  %s208 = scalar_lea.vmem %s1, 195
  %209 = vst.msk [vmem:[%s208] ss:$8 sm:$0xf0] %vm205, %v204
  %s210 = scalar_lea.vmem %s0, 480
  %v211 = vld [vmem:[%s210] ss:$2 sm:$0xff]
  %vm212 = vcmask 523264
  %s213 = scalar_lea.vmem %s1, 228
  %214 = vst.msk [vmem:[%s213] ss:$8 sm:$0xf] %vm212, %v211
  %s215 = scalar_lea.vmem %s1, 197
  %216 = vst.msk [vmem:[%s215] ss:$8 sm:$0xf0] %vm212, %v211
  %s217 = scalar_lea.vmem %s0, 496
  %v218 = vld [vmem:[%s217] ss:$2 sm:$0xff]
  %vm219 = vcmask 523264
  %s220 = scalar_lea.vmem %s1, 230
  %221 = vst.msk [vmem:[%s220] ss:$8 sm:$0xf] %vm219, %v218
  %s222 = scalar_lea.vmem %s1, 199
  %223 = vst.msk [vmem:[%s222] ss:$8 sm:$0xf0] %vm219, %v218
  %s224 = scalar_lea.vmem %s0, 1
  %v225 = vld [vmem:[%s224] ss:$8 sm:$0xf]
  %s226 = scalar_lea.vmem %s0, 1
  %v227 = vld [vmem:[%s226] ss:$8 sm:$0xf0]
  %vm228 = vcmask 1047556
  %v229 = vsel %vm228, %v227, %v225
  %230 = vrot.lane.b32.xlu0 %v229, 64
  %v231 = vpop.permute.xlu0 %230
  %vm232 = vcmask 1048064
  %233 = vst.msk [vmem:[%s1] sm:$0xff] %vm232, %v231
  %s234 = scalar_lea.vmem %s0, 65
  %v235 = vld [vmem:[%s234] ss:$8 sm:$0xf]
  %s236 = scalar_lea.vmem %s0, 65
  %v237 = vld [vmem:[%s236] ss:$8 sm:$0xf0]
  %vm238 = vcmask 1047556
  %v239 = vsel %vm238, %v237, %v235
  %240 = vrot.lane.b32.xlu0 %v239, 64
  %v241 = vpop.permute.xlu0 %240
  %vm242 = vcmask 1048064
  %s243 = scalar_lea.vmem %s1, 32
  %244 = vst.msk [vmem:[%s243] sm:$0xff] %vm242, %v241
  %s245 = scalar_lea.vmem %s0, 129
  %v246 = vld [vmem:[%s245] ss:$8 sm:$0xf]
  %s247 = scalar_lea.vmem %s0, 129
  %v248 = vld [vmem:[%s247] ss:$8 sm:$0xf0]
  %vm249 = vcmask 1047556
  %v250 = vsel %vm249, %v248, %v246
  %251 = vrot.lane.b32.xlu0 %v250, 64
  %v252 = vpop.permute.xlu0 %251
  %vm253 = vcmask 1048064
  %s254 = scalar_lea.vmem %s1, 64
  %255 = vst.msk [vmem:[%s254] sm:$0xff] %vm253, %v252
  %s256 = scalar_lea.vmem %s0, 193
  %v257 = vld [vmem:[%s256] ss:$8 sm:$0xf]
  %s258 = scalar_lea.vmem %s0, 193
  %v259 = vld [vmem:[%s258] ss:$8 sm:$0xf0]
  %vm260 = vcmask 1047556
  %v261 = vsel %vm260, %v259, %v257
  %262 = vrot.lane.b32.xlu0 %v261, 64
  %v263 = vpop.permute.xlu0 %262
  %vm264 = vcmask 1048064
  %s265 = scalar_lea.vmem %s1, 96
  %266 = vst.msk [vmem:[%s265] sm:$0xff] %vm264, %v263
  %s267 = scalar_lea.vmem %s0, 257
  %v268 = vld [vmem:[%s267] ss:$8 sm:$0xf]
  %s269 = scalar_lea.vmem %s0, 257
  %v270 = vld [vmem:[%s269] ss:$8 sm:$0xf0]
  %vm271 = vcmask 1047556
  %v272 = vsel %vm271, %v270, %v268
  %273 = vrot.lane.b32.xlu0 %v272, 64
  %v274 = vpop.permute.xlu0 %273
  %vm275 = vcmask 1048064
  %s276 = scalar_lea.vmem %s1, 128
  %277 = vst.msk [vmem:[%s276] sm:$0xff] %vm275, %v274
  %s278 = scalar_lea.vmem %s0, 321
  %v279 = vld [vmem:[%s278] ss:$8 sm:$0xf]
  %s280 = scalar_lea.vmem %s0, 321
  %v281 = vld [vmem:[%s280] ss:$8 sm:$0xf0]
  %vm282 = vcmask 1047556
  %v283 = vsel %vm282, %v281, %v279
  %284 = vrot.lane.b32.xlu0 %v283, 64
  %v285 = vpop.permute.xlu0 %284
  %vm286 = vcmask 1048064
  %s287 = scalar_lea.vmem %s1, 160
  %288 = vst.msk [vmem:[%s287] sm:$0xff] %vm286, %v285
  %s289 = scalar_lea.vmem %s0, 385
  %v290 = vld [vmem:[%s289] ss:$8 sm:$0xf]
  %s291 = scalar_lea.vmem %s0, 385
  %v292 = vld [vmem:[%s291] ss:$8 sm:$0xf0]
  %vm293 = vcmask 1047556
  %v294 = vsel %vm293, %v292, %v290
  %295 = vrot.lane.b32.xlu0 %v294, 64
  %v296 = vpop.permute.xlu0 %295
  %vm297 = vcmask 1048064
  %s298 = scalar_lea.vmem %s1, 192
  %299 = vst.msk [vmem:[%s298] sm:$0xff] %vm297, %v296
  %s300 = scalar_lea.vmem %s0, 449
  %v301 = vld [vmem:[%s300] ss:$8 sm:$0xf]
  %s302 = scalar_lea.vmem %s0, 449
  %v303 = vld [vmem:[%s302] ss:$8 sm:$0xf0]
  %vm304 = vcmask 1047556
  %v305 = vsel %vm304, %v303, %v301
  %306 = vrot.lane.b32.xlu0 %v305, 64
  %v307 = vpop.permute.xlu0 %306
  %vm308 = vcmask 1048064
  %s309 = scalar_lea.vmem %s1, 224
  %310 = vst.msk [vmem:[%s309] sm:$0xff] %vm308, %v307
  %s311 = scalar_lea.vmem %s0, 3
  %v312 = vld [vmem:[%s311] ss:$8 sm:$0xf]
  %s313 = scalar_lea.vmem %s0, 3
  %v314 = vld [vmem:[%s313] ss:$8 sm:$0xf0]
  %vm315 = vcmask 1047556
  %v316 = vsel %vm315, %v314, %v312
  %317 = vrot.lane.b32.xlu0 %v316, 64
  %v318 = vpop.permute.xlu0 %317
  %vm319 = vcmask 1048064
  %s320 = scalar_lea.vmem %s1, 8
  %321 = vst.msk [vmem:[%s320] sm:$0xff] %vm319, %v318
  %s322 = scalar_lea.vmem %s0, 67
  %v323 = vld [vmem:[%s322] ss:$8 sm:$0xf]
  %s324 = scalar_lea.vmem %s0, 67
  %v325 = vld [vmem:[%s324] ss:$8 sm:$0xf0]
  %vm326 = vcmask 1047556
  %v327 = vsel %vm326, %v325, %v323
  %328 = vrot.lane.b32.xlu0 %v327, 64
  %v329 = vpop.permute.xlu0 %328
  %vm330 = vcmask 1048064
  %s331 = scalar_lea.vmem %s1, 40
  %332 = vst.msk [vmem:[%s331] sm:$0xff] %vm330, %v329
  %s333 = scalar_lea.vmem %s0, 131
  %v334 = vld [vmem:[%s333] ss:$8 sm:$0xf]
  %s335 = scalar_lea.vmem %s0, 131
  %v336 = vld [vmem:[%s335] ss:$8 sm:$0xf0]
  %vm337 = vcmask 1047556
  %v338 = vsel %vm337, %v336, %v334
  %339 = vrot.lane.b32.xlu0 %v338, 64
  %v340 = vpop.permute.xlu0 %339
  %vm341 = vcmask 1048064
  %s342 = scalar_lea.vmem %s1, 72
  %343 = vst.msk [vmem:[%s342] sm:$0xff] %vm341, %v340
  %s344 = scalar_lea.vmem %s0, 195
  %v345 = vld [vmem:[%s344] ss:$8 sm:$0xf]
  %s346 = scalar_lea.vmem %s0, 195
  %v347 = vld [vmem:[%s346] ss:$8 sm:$0xf0]
  %vm348 = vcmask 1047556
  %v349 = vsel %vm348, %v347, %v345
  %350 = vrot.lane.b32.xlu0 %v349, 64
  %v351 = vpop.permute.xlu0 %350
  %vm352 = vcmask 1048064
  %s353 = scalar_lea.vmem %s1, 104
  %354 = vst.msk [vmem:[%s353] sm:$0xff] %vm352, %v351
  %s355 = scalar_lea.vmem %s0, 259
  %v356 = vld [vmem:[%s355] ss:$8 sm:$0xf]
  %s357 = scalar_lea.vmem %s0, 259
  %v358 = vld [vmem:[%s357] ss:$8 sm:$0xf0]
  %vm359 = vcmask 1047556
  %v360 = vsel %vm359, %v358, %v356
  %361 = vrot.lane.b32.xlu0 %v360, 64
  %v362 = vpop.permute.xlu0 %361
  %vm363 = vcmask 1048064
  %s364 = scalar_lea.vmem %s1, 136
  %365 = vst.msk [vmem:[%s364] sm:$0xff] %vm363, %v362
  %s366 = scalar_lea.vmem %s0, 323
  %v367 = vld [vmem:[%s366] ss:$8 sm:$0xf]
  %s368 = scalar_lea.vmem %s0, 323
  %v369 = vld [vmem:[%s368] ss:$8 sm:$0xf0]
  %vm370 = vcmask 1047556
  %v371 = vsel %vm370, %v369, %v367
  %372 = vrot.lane.b32.xlu0 %v371, 64
  %v373 = vpop.permute.xlu0 %372
  %vm374 = vcmask 1048064
  %s375 = scalar_lea.vmem %s1, 168
  %376 = vst.msk [vmem:[%s375] sm:$0xff] %vm374, %v373
  %s377 = scalar_lea.vmem %s0, 387
  %v378 = vld [vmem:[%s377] ss:$8 sm:$0xf]
  %s379 = scalar_lea.vmem %s0, 387
  %v380 = vld [vmem:[%s379] ss:$8 sm:$0xf0]
  %vm381 = vcmask 1047556
  %v382 = vsel %vm381, %v380, %v378
  %383 = vrot.lane.b32.xlu0 %v382, 64
  %v384 = vpop.permute.xlu0 %383
  %vm385 = vcmask 1048064
  %s386 = scalar_lea.vmem %s1, 200
  %387 = vst.msk [vmem:[%s386] sm:$0xff] %vm385, %v384
  %s388 = scalar_lea.vmem %s0, 451
  %v389 = vld [vmem:[%s388] ss:$8 sm:$0xf]
  %s390 = scalar_lea.vmem %s0, 451
  %v391 = vld [vmem:[%s390] ss:$8 sm:$0xf0]
  %vm392 = vcmask 1047556
  %v393 = vsel %vm392, %v391, %v389
  %394 = vrot.lane.b32.xlu0 %v393, 64
  %v395 = vpop.permute.xlu0 %394
  %vm396 = vcmask 1048064
  %s397 = scalar_lea.vmem %s1, 232
  %398 = vst.msk [vmem:[%s397] sm:$0xff] %vm396, %v395
  %s399 = scalar_lea.vmem %s0, 5
  %v400 = vld [vmem:[%s399] ss:$8 sm:$0xf]
  %s401 = scalar_lea.vmem %s0, 5
  %v402 = vld [vmem:[%s401] ss:$8 sm:$0xf0]
  %vm403 = vcmask 1047556
  %v404 = vsel %vm403, %v402, %v400
  %405 = vrot.lane.b32.xlu0 %v404, 64
  %v406 = vpop.permute.xlu0 %405
  %vm407 = vcmask 1048064
  %s408 = scalar_lea.vmem %s1, 16
  %409 = vst.msk [vmem:[%s408] sm:$0xff] %vm407, %v406
  %s410 = scalar_lea.vmem %s0, 69
  %v411 = vld [vmem:[%s410] ss:$8 sm:$0xf]
  %s412 = scalar_lea.vmem %s0, 69
  %v413 = vld [vmem:[%s412] ss:$8 sm:$0xf0]
  %vm414 = vcmask 1047556
  %v415 = vsel %vm414, %v413, %v411
  %416 = vrot.lane.b32.xlu0 %v415, 64
  %v417 = vpop.permute.xlu0 %416
  %vm418 = vcmask 1048064
  %s419 = scalar_lea.vmem %s1, 48
  %420 = vst.msk [vmem:[%s419] sm:$0xff] %vm418, %v417
  %s421 = scalar_lea.vmem %s0, 133
  %v422 = vld [vmem:[%s421] ss:$8 sm:$0xf]
  %s423 = scalar_lea.vmem %s0, 133
  %v424 = vld [vmem:[%s423] ss:$8 sm:$0xf0]
  %vm425 = vcmask 1047556
  %v426 = vsel %vm425, %v424, %v422
  %427 = vrot.lane.b32.xlu0 %v426, 64
  %v428 = vpop.permute.xlu0 %427
  %vm429 = vcmask 1048064
  %s430 = scalar_lea.vmem %s1, 80
  %431 = vst.msk [vmem:[%s430] sm:$0xff] %vm429, %v428
  %s432 = scalar_lea.vmem %s0, 197
  %v433 = vld [vmem:[%s432] ss:$8 sm:$0xf]
  %s434 = scalar_lea.vmem %s0, 197
  %v435 = vld [vmem:[%s434] ss:$8 sm:$0xf0]
  %vm436 = vcmask 1047556
  %v437 = vsel %vm436, %v435, %v433
  %438 = vrot.lane.b32.xlu0 %v437, 64
  %v439 = vpop.permute.xlu0 %438
  %vm440 = vcmask 1048064
  %s441 = scalar_lea.vmem %s1, 112
  %442 = vst.msk [vmem:[%s441] sm:$0xff] %vm440, %v439
  %s443 = scalar_lea.vmem %s0, 261
  %v444 = vld [vmem:[%s443] ss:$8 sm:$0xf]
  %s445 = scalar_lea.vmem %s0, 261
  %v446 = vld [vmem:[%s445] ss:$8 sm:$0xf0]
  %vm447 = vcmask 1047556
  %v448 = vsel %vm447, %v446, %v444
  %449 = vrot.lane.b32.xlu0 %v448, 64
  %v450 = vpop.permute.xlu0 %449
  %vm451 = vcmask 1048064
  %s452 = scalar_lea.vmem %s1, 144
  %453 = vst.msk [vmem:[%s452] sm:$0xff] %vm451, %v450
  %s454 = scalar_lea.vmem %s0, 325
  %v455 = vld [vmem:[%s454] ss:$8 sm:$0xf]
  %s456 = scalar_lea.vmem %s0, 325
  %v457 = vld [vmem:[%s456] ss:$8 sm:$0xf0]
  %vm458 = vcmask 1047556
  %v459 = vsel %vm458, %v457, %v455
  %460 = vrot.lane.b32.xlu0 %v459, 64
  %v461 = vpop.permute.xlu0 %460
  %vm462 = vcmask 1048064
  %s463 = scalar_lea.vmem %s1, 176
  %464 = vst.msk [vmem:[%s463] sm:$0xff] %vm462, %v461
  %s465 = scalar_lea.vmem %s0, 389
  %v466 = vld [vmem:[%s465] ss:$8 sm:$0xf]
  %s467 = scalar_lea.vmem %s0, 389
  %v468 = vld [vmem:[%s467] ss:$8 sm:$0xf0]
  %vm469 = vcmask 1047556
  %v470 = vsel %vm469, %v468, %v466
  %471 = vrot.lane.b32.xlu0 %v470, 64
  %v472 = vpop.permute.xlu0 %471
  %vm473 = vcmask 1048064
  %s474 = scalar_lea.vmem %s1, 208
  %475 = vst.msk [vmem:[%s474] sm:$0xff] %vm473, %v472
  %s476 = scalar_lea.vmem %s0, 453
  %v477 = vld [vmem:[%s476] ss:$8 sm:$0xf]
  %s478 = scalar_lea.vmem %s0, 453
  %v479 = vld [vmem:[%s478] ss:$8 sm:$0xf0]
  %vm480 = vcmask 1047556
  %v481 = vsel %vm480, %v479, %v477
  %482 = vrot.lane.b32.xlu0 %v481, 64
  %v483 = vpop.permute.xlu0 %482
  %vm484 = vcmask 1048064
  %s485 = scalar_lea.vmem %s1, 240
  %486 = vst.msk [vmem:[%s485] sm:$0xff] %vm484, %v483
  %s487 = scalar_lea.vmem %s0, 7
  %v488 = vld [vmem:[%s487] ss:$8 sm:$0xf]
  %s489 = scalar_lea.vmem %s0, 7
  %v490 = vld [vmem:[%s489] ss:$8 sm:$0xf0]
  %vm491 = vcmask 1047556
  %v492 = vsel %vm491, %v490, %v488
  %493 = vrot.lane.b32.xlu0 %v492, 64
  %v494 = vpop.permute.xlu0 %493
  %vm495 = vcmask 1048064
  %s496 = scalar_lea.vmem %s1, 24
  %497 = vst.msk [vmem:[%s496] sm:$0xff] %vm495, %v494
  %s498 = scalar_lea.vmem %s0, 71
  %v499 = vld [vmem:[%s498] ss:$8 sm:$0xf]
  %s500 = scalar_lea.vmem %s0, 71
  %v501 = vld [vmem:[%s500] ss:$8 sm:$0xf0]
  %vm502 = vcmask 1047556
  %v503 = vsel %vm502, %v501, %v499
  %504 = vrot.lane.b32.xlu0 %v503, 64
  %v505 = vpop.permute.xlu0 %504
  %vm506 = vcmask 1048064
  %s507 = scalar_lea.vmem %s1, 56
  %508 = vst.msk [vmem:[%s507] sm:$0xff] %vm506, %v505
  %s509 = scalar_lea.vmem %s0, 135
  %v510 = vld [vmem:[%s509] ss:$8 sm:$0xf]
  %s511 = scalar_lea.vmem %s0, 135
  %v512 = vld [vmem:[%s511] ss:$8 sm:$0xf0]
  %vm513 = vcmask 1047556
  %v514 = vsel %vm513, %v512, %v510
  %515 = vrot.lane.b32.xlu0 %v514, 64
  %v516 = vpop.permute.xlu0 %515
  %vm517 = vcmask 1048064
  %s518 = scalar_lea.vmem %s1, 88
  %519 = vst.msk [vmem:[%s518] sm:$0xff] %vm517, %v516
  %s520 = scalar_lea.vmem %s0, 199
  %v521 = vld [vmem:[%s520] ss:$8 sm:$0xf]
  %s522 = scalar_lea.vmem %s0, 199
  %v523 = vld [vmem:[%s522] ss:$8 sm:$0xf0]
  %vm524 = vcmask 1047556
  %v525 = vsel %vm524, %v523, %v521
  %526 = vrot.lane.b32.xlu0 %v525, 64
  %v527 = vpop.permute.xlu0 %526
  %vm528 = vcmask 1048064
  %s529 = scalar_lea.vmem %s1, 120
  %530 = vst.msk [vmem:[%s529] sm:$0xff] %vm528, %v527
  %s531 = scalar_lea.vmem %s0, 263
  %v532 = vld [vmem:[%s531] ss:$8 sm:$0xf]
  %s533 = scalar_lea.vmem %s0, 263
  %v534 = vld [vmem:[%s533] ss:$8 sm:$0xf0]
  %vm535 = vcmask 1047556
  %v536 = vsel %vm535, %v534, %v532
  %537 = vrot.lane.b32.xlu0 %v536, 64
  %v538 = vpop.permute.xlu0 %537
  %vm539 = vcmask 1048064
  %s540 = scalar_lea.vmem %s1, 152
  %541 = vst.msk [vmem:[%s540] sm:$0xff] %vm539, %v538
  %s542 = scalar_lea.vmem %s0, 327
  %v543 = vld [vmem:[%s542] ss:$8 sm:$0xf]
  %s544 = scalar_lea.vmem %s0, 327
  %v545 = vld [vmem:[%s544] ss:$8 sm:$0xf0]
  %vm546 = vcmask 1047556
  %v547 = vsel %vm546, %v545, %v543
  %548 = vrot.lane.b32.xlu0 %v547, 64
  %v549 = vpop.permute.xlu0 %548
  %vm550 = vcmask 1048064
  %s551 = scalar_lea.vmem %s1, 184
  %552 = vst.msk [vmem:[%s551] sm:$0xff] %vm550, %v549
  %s553 = scalar_lea.vmem %s0, 391
  %v554 = vld [vmem:[%s553] ss:$8 sm:$0xf]
  %s555 = scalar_lea.vmem %s0, 391
  %v556 = vld [vmem:[%s555] ss:$8 sm:$0xf0]
  %vm557 = vcmask 1047556
  %v558 = vsel %vm557, %v556, %v554
  %559 = vrot.lane.b32.xlu0 %v558, 64
  %v560 = vpop.permute.xlu0 %559
  %vm561 = vcmask 1048064
  %s562 = scalar_lea.vmem %s1, 216
  %563 = vst.msk [vmem:[%s562] sm:$0xff] %vm561, %v560
  %s564 = scalar_lea.vmem %s0, 455
  %v565 = vld [vmem:[%s564] ss:$8 sm:$0xf]
  %s566 = scalar_lea.vmem %s0, 455
  %v567 = vld [vmem:[%s566] ss:$8 sm:$0xf0]
  %vm568 = vcmask 1047556
  %v569 = vsel %vm568, %v567, %v565
  %570 = vrot.lane.b32.xlu0 %v569, 64
  %v571 = vpop.permute.xlu0 %570
  %vm572 = vcmask 1048064
  %s573 = scalar_lea.vmem %s1, 248
  %574 = vst.msk [vmem:[%s573] sm:$0xff] %vm572, %v571

// kernel: pnp3d_forward.6
$region0: #{pnp3d_forward.6}
  #allocation0 [shape = 'u32[]', space=smem, size = 0x4, offset = 0x4, fixed_abs, tag = 'smem constant byte address 0x4 - core index']
  #allocation1 [shape = 'u32[144,128]{1,0:T(1,128)}', space=vmem, size = 0x12000, scoped, tag = 'internal scratch']
  %s0 = inlined_call_operand.vmem [shape: f32[32,64], index: 0, kind: input, shape index: {}]
  %s1 = inlined_call_operand.vmem [shape: f32[4,32], index: 1, kind: input, shape index: {}]
  %s2 = inlined_call_operand.vmem [shape: f32[4,32], index: 2, kind: input, shape index: {}]
  %s3 = inlined_call_operand.vmem [shape: f32[4,64], index: 3, kind: output, shape index: {}]
  %s4 = sld [smem:[#allocation0]]
  $region22: #{pnp3d_forward.6} parent=0
    _
  %s6 = ssub.s32 1, %s4
  %s7 = scalar_select 0, %s6, %s4
  // Predicated region
  $region2: #{pnp3d_forward.6} parent=0 // pred_check
    _
  $region3: #{pnp3d_forward.6} parent=0 // pred_check_branch
    %9 = sbr.rel (0) target = $region5
  $region4: #{pnp3d_forward.6} parent=0 // pred_region
    _
  $region5: #{pnp3d_forward.6} parent=0 // pred_fallthru
    _
  // Predicated region
  $region6: #{pnp3d_forward.6} parent=0 // pred_check
    _
  $region7: #{pnp3d_forward.6} parent=0 // pred_check_branch
    %11 = sbr.rel (0) target = $region9
  $region8: #{pnp3d_forward.6} parent=0 // pred_region
    _
  $region9: #{pnp3d_forward.6} parent=0 // pred_fallthru
    _
  // Predicated region
  $region10: #{pnp3d_forward.6} parent=0 // pred_check
    _
  $region11: #{pnp3d_forward.6} parent=0 // pred_check_branch
    %13 = sbr.rel (0) target = $region13
  $region12: #{pnp3d_forward.6} parent=0 // pred_region
    _
  $region13: #{pnp3d_forward.6} parent=0 // pred_fallthru
    _
  %v14 = vld [vmem:[%s0] sm:$0xff]
  %v15 = vld [vmem:[%s0 + $0x8] sm:$0xff]
  %v16 = vld [vmem:[%s0 + $0x10] sm:$0xff]
  %v17 = vld [vmem:[%s0 + $0x18] sm:$0xff]
  %v18 = vld [vmem:[%s1] sm:$0xf]
  %vm19 = vcmask 261120
  %v21 = vsel %vm19, %v18, 0
  %23 = vmatprep.subr.mxu0 0.0
  %24 = vmatpush1.msra.mxu0 %v14
  %25 = vmatprep.subr.mxu0 0.0
  %26 = vmatpush1.msra.mxu0 %v15
  %27 = vmatprep.subr.mxu0 0.0
  %28 = vmatpush1.msra.mxu0 %v16
  %29 = vmatprep.subr.mxu0 0.0
  %30 = vmatpush1.msra.mxu0 %v17
  %31 = vmatprep.subr.mxu0 0.0
  %32 = vmatpush1.msra.mxu0 0.0
  %33 = vmatprep.subr.mxu0 0.0
  %34 = vmatpush1.msra.mxu0 0.0
  %35 = vmatprep.subr.mxu0 0.0
  %36 = vmatpush1.msra.mxu0 0.0
  %37 = vmatprep.subr.mxu0 0.0
  %38 = vmatpush1.msra.mxu0 0.0
  %39 = vmatprep.subr.mxu0 0.0
  %40 = vmatpush1.msra.mxu0 0.0
  %41 = vmatprep.subr.mxu0 0.0
  %42 = vmatpush1.msra.mxu0 0.0
  %43 = vmatprep.subr.mxu0 0.0
  %44 = vmatpush1.msra.mxu0 0.0
  %45 = vmatprep.subr.mxu0 0.0
  %46 = vmatpush1.msra.mxu0 0.0
  %47 = vmatprep.subr.mxu0 0.0
  %48 = vmatpush1.msra.mxu0 0.0
  %49 = vmatprep.subr.mxu0 0.0
  %50 = vmatpush1.msra.mxu0 0.0
  %51 = vmatprep.subr.mxu0 0.0
  %52 = vmatpush1.msra.mxu0 0.0
  %53 = vmatprep.subr.mxu0 0.0
  %54 = vmatpush1.msra.mxu0 0.0
  %55 = vmatprep.subr.mxu0 0.0
  %56 = vmatpush1.msra.mxu0 0.0
  %57 = vmatprep.subr.mxu0 0.0
  %58 = vmatpush1.msra.mxu0 0.0
  %59 = vmatprep.subr.mxu0 0.0
  %60 = vmatpush1.msra.mxu0 0.0
  %61 = vmatprep.subr.mxu0 0.0
  %62 = vmatpush1.msra.mxu0 0.0
  %63 = vmatprep.subr.mxu0 0.0
  %64 = vmatpush1.msra.mxu0 0.0
  %65 = vmatprep.subr.mxu0 0.0
  %66 = vmatpush1.msra.mxu0 0.0
  %67 = vmatprep.subr.mxu0 0.0
  %68 = vmatpush1.msra.mxu0 0.0
  %69 = vmatprep.subr.mxu0 0.0
  %70 = vmatpush1.msra.mxu0 0.0
  %71 = vmatprep.subr.mxu0 0.0
  %72 = vmatpush1.msra.mxu0 0.0
  %73 = vmatprep.subr.mxu0 0.0
  %74 = vmatpush1.msra.mxu0 0.0
  %75 = vmatprep.subr.mxu0 0.0
  %76 = vmatpush1.msra.mxu0 0.0
  %77 = vmatprep.subr.mxu0 0.0
  %78 = vmatpush1.msra.mxu0 0.0
  %79 = vmatprep.subr.mxu0 0.0
  %80 = vmatpush1.msra.mxu0 0.0
  %81 = vmatprep.subr.mxu0 0.0
  %82 = vmatpush1.msra.mxu0 0.0
  %83 = vmatprep.subr.mxu0 0.0
  %84 = vmatpush1.msra.mxu0 0.0
  %85 = vmatprep.subr.mxu0 0.0
  %86 = vmatpush1.msra.mxu0 0.0
  %87 = vmatprep.mubr.f32.mxu0 0.0
  %88 = vmatmul.mubr.f32.gmra.mrb[0].mxu0 %v21
  %v89 = vpop.f32.mrb[0].mxu0
  %v90 = vadd.f32 0.0, %v89
  %v91 = vpop.f32.mrb[0].mxu0
  %92 = vdwg.mxu0
  %v93 = vmax.f32 %v90, 0.0
  %v94 = vld [vmem:[%s2] sm:$0xf]
  %v96 = vsel %vm19, %v94, 0
  %98 = vmatprep.subr.mxu0 0.0
  %99 = vmatpush1.msra.mxu0 %v14
  %100 = vmatprep.subr.mxu0 0.0
  %101 = vmatpush1.msra.mxu0 %v15
  %102 = vmatprep.subr.mxu0 0.0
  %103 = vmatpush1.msra.mxu0 %v16
  %104 = vmatprep.subr.mxu0 0.0
  %105 = vmatpush1.msra.mxu0 %v17
  %106 = vmatprep.subr.mxu0 0.0
  %107 = vmatpush1.msra.mxu0 0.0
  %108 = vmatprep.subr.mxu0 0.0
  %109 = vmatpush1.msra.mxu0 0.0
  %110 = vmatprep.subr.mxu0 0.0
  %111 = vmatpush1.msra.mxu0 0.0
  %112 = vmatprep.subr.mxu0 0.0
  %113 = vmatpush1.msra.mxu0 0.0
  %114 = vmatprep.subr.mxu0 0.0
  %115 = vmatpush1.msra.mxu0 0.0
  %116 = vmatprep.subr.mxu0 0.0
  %117 = vmatpush1.msra.mxu0 0.0
  %118 = vmatprep.subr.mxu0 0.0
  %119 = vmatpush1.msra.mxu0 0.0
  %120 = vmatprep.subr.mxu0 0.0
  %121 = vmatpush1.msra.mxu0 0.0
  %122 = vmatprep.subr.mxu0 0.0
  %123 = vmatpush1.msra.mxu0 0.0
  %124 = vmatprep.subr.mxu0 0.0
  %125 = vmatpush1.msra.mxu0 0.0
  %126 = vmatprep.subr.mxu0 0.0
  %127 = vmatpush1.msra.mxu0 0.0
  %128 = vmatprep.subr.mxu0 0.0
  %129 = vmatpush1.msra.mxu0 0.0
  %130 = vmatprep.subr.mxu0 0.0
  %131 = vmatpush1.msra.mxu0 0.0
  %132 = vmatprep.subr.mxu0 0.0
  %133 = vmatpush1.msra.mxu0 0.0
  %134 = vmatprep.subr.mxu0 0.0
  %135 = vmatpush1.msra.mxu0 0.0
  %136 = vmatprep.subr.mxu0 0.0
  %137 = vmatpush1.msra.mxu0 0.0
  %138 = vmatprep.subr.mxu0 0.0
  %139 = vmatpush1.msra.mxu0 0.0
  %140 = vmatprep.subr.mxu0 0.0
  %141 = vmatpush1.msra.mxu0 0.0
  %142 = vmatprep.subr.mxu0 0.0
  %143 = vmatpush1.msra.mxu0 0.0
  %144 = vmatprep.subr.mxu0 0.0
  %145 = vmatpush1.msra.mxu0 0.0
  %146 = vmatprep.subr.mxu0 0.0
  %147 = vmatpush1.msra.mxu0 0.0
  %148 = vmatprep.subr.mxu0 0.0
  %149 = vmatpush1.msra.mxu0 0.0
  %150 = vmatprep.subr.mxu0 0.0
  %151 = vmatpush1.msra.mxu0 0.0
  %152 = vmatprep.subr.mxu0 0.0
  %153 = vmatpush1.msra.mxu0 0.0
  %154 = vmatprep.subr.mxu0 0.0
  %155 = vmatpush1.msra.mxu0 0.0
  %156 = vmatprep.subr.mxu0 0.0
  %157 = vmatpush1.msra.mxu0 0.0
  %158 = vmatprep.subr.mxu0 0.0
  %159 = vmatpush1.msra.mxu0 0.0
  %160 = vmatprep.subr.mxu0 0.0
  %161 = vmatpush1.msra.mxu0 0.0
  %162 = vmatprep.mubr.f32.mxu0 0.0
  %163 = vmatmul.mubr.f32.gmra.mrb[0].mxu0 %v96
  %v164 = vpop.f32.mrb[0].mxu0
  %v165 = vadd.f32 0.0, %v164
  %v166 = vpop.f32.mrb[0].mxu0
  %167 = vdwg.mxu0
  %v168 = vmax.f32 %v165, 0.0
  %vm169 = vcmask 519168
  %v170 = vsel %vm169, %v93, 0.0
  %171 = vadd.xlane.f32.xlu0 %v170
  %v172 = vpop.xlane.xlu0 %171
  %v173 = vrcp.pop 64.0
  %v174 = vmul.f32 %v172, %v173
  %v175 = vsel %vm169, %v168, 0.0
  %v176 = vrot.slane %v175, 4
  %v177 = vadd.f32 %v175, %v176
  %v178 = vrot.slane %v177, 2
  %v179 = vadd.f32 %v177, %v178
  %v180 = vrot.slane %v179, 1
  %v181 = vadd.f32 %v179, %v180
  %v182 = vrcp.pop 4.0
  %v183 = vmul.f32 %v181, %v182
  %v184 = vmul.f32 %v174, %v183
  %v185 = vadd.f32 %v184, 1e-12
  %v186 = vrsqrt.pop %v185
  %v187 = vmul.f32 %v185, %v186
  %vm188 = vcmp.eq.f32.partialorder %v185, inf
  %v189 = vsel %vm188, %v185, %v187
  %vm190 = vcmp.eq.f32.partialorder %v185, 0.0
  %v191 = vand.u32 %v185, 2147483648
  %v192 = vsel %vm190, %v191, %v189
  %193 = vst.msk [vmem:[%s3] sm:$0xf] %vm169, %v192
  // Predicated region
  $region14: #{pnp3d_forward.6} parent=0 // pred_check
    _
  $region15: #{pnp3d_forward.6} parent=0 // pred_check_branch
    %195 = sbr.rel (0) target = $region17
  $region16: #{pnp3d_forward.6} parent=0 // pred_region
    _
  $region17: #{pnp3d_forward.6} parent=0 // pred_fallthru
    _
  // Predicated region
  $region18: #{pnp3d_forward.6} parent=0 // pred_check
    _
  $region19: #{pnp3d_forward.6} parent=0 // pred_check_branch
    %197 = sbr.rel (0) target = $region21
  $region20: #{pnp3d_forward.6} parent=0 // pred_region
    _
  $region21: #{pnp3d_forward.6} parent=0 // pred_fallthru
    _

// kernel: pnp3d_forward.5
$region0: #{pnp3d_forward.5}
  #allocation0 [shape = 'u32[]', space=smem, size = 0x4, offset = 0x4, fixed_abs, tag = 'smem constant byte address 0x4 - core index']
  #allocation1 [shape = 'u32[144,128]{1,0:T(1,128)}', space=vmem, size = 0x12000, scoped, tag = 'internal scratch']
  %s0 = inlined_call_operand.vmem [shape: f32[2,6,512], index: 0, kind: input, shape index: {}]
  %s1 = inlined_call_operand.vmem [shape: f32[2,64,512], index: 1, kind: input, shape index: {}]
  %s2 = inlined_call_operand.vmem [shape: f32[16,6], index: 2, kind: input, shape index: {}]
  %s3 = inlined_call_operand.vmem [shape: f32[16,1], index: 3, kind: input, shape index: {}]
  %s4 = inlined_call_operand.vmem [shape: f32[16,1], index: 4, kind: input, shape index: {}]
  %s5 = inlined_call_operand.vmem [shape: f32[16,1], index: 5, kind: input, shape index: {}]
  %s6 = inlined_call_operand.vmem [shape: f32[16,64], index: 6, kind: input, shape index: {}]
  %s7 = inlined_call_operand.vmem [shape: f32[16,1], index: 7, kind: input, shape index: {}]
  %s8 = inlined_call_operand.vmem [shape: f32[16,1], index: 8, kind: input, shape index: {}]
  %s9 = inlined_call_operand.vmem [shape: f32[16,1], index: 9, kind: input, shape index: {}]
  %s10 = inlined_call_operand.vmem [shape: f32[2,32,64], index: 10, kind: output, shape index: {}]
  %s11 = sld [smem:[#allocation0]]
  $region73: #{pnp3d_forward.5} parent=0
    _
  %s13 = ssub.s32 1, %s11
  %s14 = scalar_select 0, %s13, %s11
  loop: start=0, step=1, limit=4
  $region2: #{pnp3d_forward.5} parent=0 // loop_pre_header
    _
  $region3: #{pnp3d_forward.5} parent=0 // loop_header
    %s16 = sphi 0, %s20
    %p17 = scmp.ge.s32.totalorder %s16, 4
    %s26 = sphi 0, %s28
    %s29 = sphi 0, %s26
    %s30 = sphi 0, %s29
    %s46 = sphi 0, %s30
    %s52 = sphi 0, %s54
    %s55 = sphi 0, %s52
    %s56 = sphi 0, %s55
    %s72 = sphi 0, %s56
    %s76 = sphi 0, %s76
    %s78 = sphi 0, %s76
    %s79 = sphi 0, %s78
    %s93 = sphi 0, %s79
    %s97 = sphi 0, %s97
    %s99 = sphi 0, %s97
    %s100 = sphi 0, %s99
    %s114 = sphi 0, %s100
    %s118 = sphi 0, %s118
    %s120 = sphi 0, %s118
    %s121 = sphi 0, %s120
    %s135 = sphi 0, %s121
    %s139 = sphi 0, %s139
    %s141 = sphi 0, %s139
    %s142 = sphi 0, %s141
    %s156 = sphi 0, %s142
    %s160 = sphi 0, %s160
    %s162 = sphi 0, %s160
    %s163 = sphi 0, %s162
    %s177 = sphi 0, %s163
    %s181 = sphi 0, %s181
    %s183 = sphi 0, %s181
    %s184 = sphi 0, %s183
    %s198 = sphi 0, %s184
    %s202 = sphi 0, %s202
    %s204 = sphi 0, %s202
    %s205 = sphi 0, %s204
    %s219 = sphi 0, %s205
    %s223 = sphi 0, %s223
    %s225 = sphi 0, %s223
    %s226 = sphi 0, %s225
    %s240 = sphi 0, %s226
    %s246 = sphi 0, %s248
    %s249 = sphi 0, %s246
    %s250 = sphi 0, %s249
    %s266 = sphi 0, %s250
  $region4: #{pnp3d_forward.5} parent=0 // loop_header_branch
    %19 = sbr.rel (%p17) target = $region8
  $region5: #{pnp3d_forward.5} parent=0 // loop_body
    %s21 = ssub.s32 %s16, 1
    %s22 = ssub.s32 %s16, 2
    %s23 = sadd.s32 %s16, 1
    %s24 = ssub.s32 %s16, %s23
    %p25 = scmp.eq.s32.totalorder %s24, 0
    %s27 = sadd.s32 %s26, 1
    %s28 = scalar_select %p25, %s26, %s27
    %p31 = pneg %p25
    %p32 = scmp.eq.s32.totalorder %s16, 1
    %p33 = por %p31, %p32
    %p34 = scmp.ne.s32.totalorder %s26, %s29
    %p35 = scmp.eq.s32.totalorder %s16, 0
    %p36 = por %p34, %p35
    %p37 = scmp.ne.s32.totalorder %s26, %s29
    %p38 = scmp.eq.s32.totalorder %s21, 1
    %p39 = por %p37, %p38
    %p40 = scmp.ne.s32.totalorder %s29, %s30
    %p41 = scmp.eq.s32.totalorder %s21, 0
    %p42 = por %p40, %p41
    %p43 = scmp.ne.s32.totalorder %s29, %s30
    %p44 = scmp.eq.s32.totalorder %s22, 1
    %p45 = por %p43, %p44
    %p47 = scmp.ne.s32.totalorder %s30, %s46
    %p48 = scmp.eq.s32.totalorder %s22, 0
    %p49 = por %p47, %p48
    %s50 = ssub.s32 %s16, %s23
    %p51 = scmp.eq.s32.totalorder %s50, 0
    %s53 = sadd.s32 %s52, 1
    %s54 = scalar_select %p51, %s52, %s53
    %p57 = pneg %p51
    %p58 = scmp.eq.s32.totalorder %s16, 1
    %p59 = por %p57, %p58
    %p60 = scmp.ne.s32.totalorder %s52, %s55
    %p61 = scmp.eq.s32.totalorder %s16, 0
    %p62 = por %p60, %p61
    %p63 = scmp.ne.s32.totalorder %s52, %s55
    %p64 = scmp.eq.s32.totalorder %s21, 1
    %p65 = por %p63, %p64
    %p66 = scmp.ne.s32.totalorder %s55, %s56
    %p67 = scmp.eq.s32.totalorder %s21, 0
    %p68 = por %p66, %p67
    %p69 = scmp.ne.s32.totalorder %s55, %s56
    %p70 = scmp.eq.s32.totalorder %s22, 1
    %p71 = por %p69, %p70
    %p73 = scmp.ne.s32.totalorder %s56, %s72
    %p74 = scmp.eq.s32.totalorder %s22, 0
    %p75 = por %p73, %p74
    %s77 = sadd.s32 %s76, 1
    %p80 = scmp.eq.s32.totalorder %s16, 1
    %p81 = scmp.ne.s32.totalorder %s76, %s78
    %p82 = scmp.eq.s32.totalorder %s16, 0
    %p83 = por %p81, %p82
    %p84 = scmp.ne.s32.totalorder %s76, %s78
    %p85 = scmp.eq.s32.totalorder %s21, 1
    %p86 = por %p84, %p85
    %p87 = scmp.ne.s32.totalorder %s78, %s79
    %p88 = scmp.eq.s32.totalorder %s21, 0
    %p89 = por %p87, %p88
    %p90 = scmp.ne.s32.totalorder %s78, %s79
    %p91 = scmp.eq.s32.totalorder %s22, 1
    %p92 = por %p90, %p91
    %p94 = scmp.ne.s32.totalorder %s79, %s93
    %p95 = scmp.eq.s32.totalorder %s22, 0
    %p96 = por %p94, %p95
    %s98 = sadd.s32 %s97, 1
    %p101 = scmp.eq.s32.totalorder %s16, 1
    %p102 = scmp.ne.s32.totalorder %s97, %s99
    %p103 = scmp.eq.s32.totalorder %s16, 0
    %p104 = por %p102, %p103
    %p105 = scmp.ne.s32.totalorder %s97, %s99
    %p106 = scmp.eq.s32.totalorder %s21, 1
    %p107 = por %p105, %p106
    %p108 = scmp.ne.s32.totalorder %s99, %s100
    %p109 = scmp.eq.s32.totalorder %s21, 0
    %p110 = por %p108, %p109
    %p111 = scmp.ne.s32.totalorder %s99, %s100
    %p112 = scmp.eq.s32.totalorder %s22, 1
    %p113 = por %p111, %p112
    %p115 = scmp.ne.s32.totalorder %s100, %s114
    %p116 = scmp.eq.s32.totalorder %s22, 0
    %p117 = por %p115, %p116
    %s119 = sadd.s32 %s118, 1
    %p122 = scmp.eq.s32.totalorder %s16, 1
    %p123 = scmp.ne.s32.totalorder %s118, %s120
    %p124 = scmp.eq.s32.totalorder %s16, 0
    %p125 = por %p123, %p124
    %p126 = scmp.ne.s32.totalorder %s118, %s120
    %p127 = scmp.eq.s32.totalorder %s21, 1
    %p128 = por %p126, %p127
    %p129 = scmp.ne.s32.totalorder %s120, %s121
    %p130 = scmp.eq.s32.totalorder %s21, 0
    %p131 = por %p129, %p130
    %p132 = scmp.ne.s32.totalorder %s120, %s121
    %p133 = scmp.eq.s32.totalorder %s22, 1
    %p134 = por %p132, %p133
    %p136 = scmp.ne.s32.totalorder %s121, %s135
    %p137 = scmp.eq.s32.totalorder %s22, 0
    %p138 = por %p136, %p137
    %s140 = sadd.s32 %s139, 1
    %p143 = scmp.eq.s32.totalorder %s16, 1
    %p144 = scmp.ne.s32.totalorder %s139, %s141
    %p145 = scmp.eq.s32.totalorder %s16, 0
    %p146 = por %p144, %p145
    %p147 = scmp.ne.s32.totalorder %s139, %s141
    %p148 = scmp.eq.s32.totalorder %s21, 1
    %p149 = por %p147, %p148
    %p150 = scmp.ne.s32.totalorder %s141, %s142
    %p151 = scmp.eq.s32.totalorder %s21, 0
    %p152 = por %p150, %p151
    %p153 = scmp.ne.s32.totalorder %s141, %s142
    %p154 = scmp.eq.s32.totalorder %s22, 1
    %p155 = por %p153, %p154
    %p157 = scmp.ne.s32.totalorder %s142, %s156
    %p158 = scmp.eq.s32.totalorder %s22, 0
    %p159 = por %p157, %p158
    %s161 = sadd.s32 %s160, 1
    %p164 = scmp.eq.s32.totalorder %s16, 1
    %p165 = scmp.ne.s32.totalorder %s160, %s162
    %p166 = scmp.eq.s32.totalorder %s16, 0
    %p167 = por %p165, %p166
    %p168 = scmp.ne.s32.totalorder %s160, %s162
    %p169 = scmp.eq.s32.totalorder %s21, 1
    %p170 = por %p168, %p169
    %p171 = scmp.ne.s32.totalorder %s162, %s163
    %p172 = scmp.eq.s32.totalorder %s21, 0
    %p173 = por %p171, %p172
    %p174 = scmp.ne.s32.totalorder %s162, %s163
    %p175 = scmp.eq.s32.totalorder %s22, 1
    %p176 = por %p174, %p175
    %p178 = scmp.ne.s32.totalorder %s163, %s177
    %p179 = scmp.eq.s32.totalorder %s22, 0
    %p180 = por %p178, %p179
    %s182 = sadd.s32 %s181, 1
    %p185 = scmp.eq.s32.totalorder %s16, 1
    %p186 = scmp.ne.s32.totalorder %s181, %s183
    %p187 = scmp.eq.s32.totalorder %s16, 0
    %p188 = por %p186, %p187
    %p189 = scmp.ne.s32.totalorder %s181, %s183
    %p190 = scmp.eq.s32.totalorder %s21, 1
    %p191 = por %p189, %p190
    %p192 = scmp.ne.s32.totalorder %s183, %s184
    %p193 = scmp.eq.s32.totalorder %s21, 0
    %p194 = por %p192, %p193
    %p195 = scmp.ne.s32.totalorder %s183, %s184
    %p196 = scmp.eq.s32.totalorder %s22, 1
    %p197 = por %p195, %p196
    %p199 = scmp.ne.s32.totalorder %s184, %s198
    %p200 = scmp.eq.s32.totalorder %s22, 0
    %p201 = por %p199, %p200
    %s203 = sadd.s32 %s202, 1
    %p206 = scmp.eq.s32.totalorder %s16, 1
    %p207 = scmp.ne.s32.totalorder %s202, %s204
    %p208 = scmp.eq.s32.totalorder %s16, 0
    %p209 = por %p207, %p208
    %p210 = scmp.ne.s32.totalorder %s202, %s204
    %p211 = scmp.eq.s32.totalorder %s21, 1
    %p212 = por %p210, %p211
    %p213 = scmp.ne.s32.totalorder %s204, %s205
    %p214 = scmp.eq.s32.totalorder %s21, 0
    %p215 = por %p213, %p214
    %p216 = scmp.ne.s32.totalorder %s204, %s205
    %p217 = scmp.eq.s32.totalorder %s22, 1
    %p218 = por %p216, %p217
    %p220 = scmp.ne.s32.totalorder %s205, %s219
    %p221 = scmp.eq.s32.totalorder %s22, 0
    %p222 = por %p220, %p221
    %s224 = sadd.s32 %s223, 1
    %p227 = scmp.eq.s32.totalorder %s16, 1
    %p228 = scmp.ne.s32.totalorder %s223, %s225
    %p229 = scmp.eq.s32.totalorder %s16, 0
    %p230 = por %p228, %p229
    %p231 = scmp.ne.s32.totalorder %s223, %s225
    %p232 = scmp.eq.s32.totalorder %s21, 1
    %p233 = por %p231, %p232
    %p234 = scmp.ne.s32.totalorder %s225, %s226
    %p235 = scmp.eq.s32.totalorder %s21, 0
    %p236 = por %p234, %p235
    %p237 = scmp.ne.s32.totalorder %s225, %s226
    %p238 = scmp.eq.s32.totalorder %s22, 1
    %p239 = por %p237, %p238
    %p241 = scmp.ne.s32.totalorder %s226, %s240
    %p242 = scmp.eq.s32.totalorder %s22, 0
    %p243 = por %p241, %p242
    %s244 = ssub.s32 %s16, %s23
    %p245 = scmp.eq.s32.totalorder %s244, 0
    %s247 = sadd.s32 %s246, 1
    %s248 = scalar_select %p245, %s246, %s247
    %p251 = pneg %p245
    %p252 = scmp.eq.s32.totalorder %s16, 1
    %p253 = por %p251, %p252
    %p254 = scmp.ne.s32.totalorder %s246, %s249
    %p255 = scmp.eq.s32.totalorder %s16, 0
    %p256 = por %p254, %p255
    %p257 = scmp.ne.s32.totalorder %s246, %s249
    %p258 = scmp.eq.s32.totalorder %s21, 1
    %p259 = por %p257, %p258
    %p260 = scmp.ne.s32.totalorder %s249, %s250
    %p261 = scmp.eq.s32.totalorder %s21, 0
    %p262 = por %p260, %p261
    %p263 = scmp.ne.s32.totalorder %s249, %s250
    %p264 = scmp.eq.s32.totalorder %s22, 1
    %p265 = por %p263, %p264
    %p267 = scmp.ne.s32.totalorder %s250, %s266
    %p268 = scmp.eq.s32.totalorder %s22, 0
    %p269 = por %p267, %p268
    %p270 = scmp.le.s32.totalorder 1, %s16
    %p271 = scmp.lt.s32.totalorder %s16, 3
    %p272 = pnand %p270, %p271
    %p273 = pneg %p272
    // Predicated region
    $region9: #{pnp3d_forward.5} parent=5 // pred_check
      _
    $region10: #{pnp3d_forward.5} parent=5 // pred_check_branch
      %275 = sbr.rel (%p272) target = $region12
    $region11: #{pnp3d_forward.5} parent=5 // pred_region
      %s276 = ssub.s32 %s16, 1
      // Predicated region
      $region13: #{pnp3d_forward.5} parent=11 // pred_check
        %p277 = pneg %p89
      $region14: #{pnp3d_forward.5} parent=11 // pred_check_branch
        %279 = sbr.rel (%p277) target = $region16
      $region15: #{pnp3d_forward.5} parent=11 // pred_region
        _
      $region16: #{pnp3d_forward.5} parent=11 // pred_fallthru
        _
      // Predicated region
      $region17: #{pnp3d_forward.5} parent=11 // pred_check
        %p280 = pneg %p110
      $region18: #{pnp3d_forward.5} parent=11 // pred_check_branch
        %282 = sbr.rel (%p280) target = $region20
      $region19: #{pnp3d_forward.5} parent=11 // pred_region
        _
      $region20: #{pnp3d_forward.5} parent=11 // pred_fallthru
        _
      // Predicated region
      $region21: #{pnp3d_forward.5} parent=11 // pred_check
        %p283 = pneg %p131
      $region22: #{pnp3d_forward.5} parent=11 // pred_check_branch
        %285 = sbr.rel (%p283) target = $region24
      $region23: #{pnp3d_forward.5} parent=11 // pred_region
        _
      $region24: #{pnp3d_forward.5} parent=11 // pred_fallthru
        _
      // Predicated region
      $region25: #{pnp3d_forward.5} parent=11 // pred_check
        %p286 = pneg %p152
      $region26: #{pnp3d_forward.5} parent=11 // pred_check_branch
        %288 = sbr.rel (%p286) target = $region28
      $region27: #{pnp3d_forward.5} parent=11 // pred_region
        _
      $region28: #{pnp3d_forward.5} parent=11 // pred_fallthru
        _
      // Predicated region
      $region29: #{pnp3d_forward.5} parent=11 // pred_check
        %p289 = pneg %p173
      $region30: #{pnp3d_forward.5} parent=11 // pred_check_branch
        %291 = sbr.rel (%p289) target = $region32
      $region31: #{pnp3d_forward.5} parent=11 // pred_region
        _
      $region32: #{pnp3d_forward.5} parent=11 // pred_fallthru
        _
      // Predicated region
      $region33: #{pnp3d_forward.5} parent=11 // pred_check
        %p292 = pneg %p194
      $region34: #{pnp3d_forward.5} parent=11 // pred_check_branch
        %294 = sbr.rel (%p292) target = $region36
      $region35: #{pnp3d_forward.5} parent=11 // pred_region
        _
      $region36: #{pnp3d_forward.5} parent=11 // pred_fallthru
        _
      // Predicated region
      $region37: #{pnp3d_forward.5} parent=11 // pred_check
        %p295 = pneg %p215
      $region38: #{pnp3d_forward.5} parent=11 // pred_check_branch
        %297 = sbr.rel (%p295) target = $region40
      $region39: #{pnp3d_forward.5} parent=11 // pred_region
        _
      $region40: #{pnp3d_forward.5} parent=11 // pred_fallthru
        _
      // Predicated region
      $region41: #{pnp3d_forward.5} parent=11 // pred_check
        %p298 = pneg %p236
      $region42: #{pnp3d_forward.5} parent=11 // pred_check_branch
        %300 = sbr.rel (%p298) target = $region44
      $region43: #{pnp3d_forward.5} parent=11 // pred_region
        _
      $region44: #{pnp3d_forward.5} parent=11 // pred_fallthru
        _
    $region12: #{pnp3d_forward.5} parent=5 // pred_fallthru
      _
    %p301 = scmp.lt.s32.totalorder %s16, 2
    // Predicated region
    $region45: #{pnp3d_forward.5} parent=5 // pred_check
      %p302 = pneg %p301
    $region46: #{pnp3d_forward.5} parent=5 // pred_check_branch
      %304 = sbr.rel (%p302) target = $region48
    $region47: #{pnp3d_forward.5} parent=5 // pred_region
      // Predicated region
      $region49: #{pnp3d_forward.5} parent=47 // pred_check
        %p305 = pneg %p36
      $region50: #{pnp3d_forward.5} parent=47 // pred_check_branch
        %307 = sbr.rel (%p305) target = $region52
      $region51: #{pnp3d_forward.5} parent=47 // pred_region
        %p308 = scmp.lt.s32.totalorder %s16, 1
        %s309 = scalar_select %p308, %s16, 1
        %s310 = smul.addr %s309, 4
        %s311 = smul.addr %s310, 8
        %s312 = scalar_lea.vmem %s0, %s311
      $region52: #{pnp3d_forward.5} parent=47 // pred_fallthru
        _
      // Predicated region
      $region53: #{pnp3d_forward.5} parent=47 // pred_check
        %p313 = pneg %p62
      $region54: #{pnp3d_forward.5} parent=47 // pred_check_branch
        %315 = sbr.rel (%p313) target = $region56
      $region55: #{pnp3d_forward.5} parent=47 // pred_region
        %p316 = scmp.lt.s32.totalorder %s16, 1
        %s317 = scalar_select %p316, %s16, 1
        %s318 = smul.addr %s317, 32
        %s319 = smul.addr %s318, 8
        %s320 = scalar_lea.vmem %s1, %s319
      $region56: #{pnp3d_forward.5} parent=47 // pred_fallthru
        _
    $region48: #{pnp3d_forward.5} parent=5 // pred_fallthru
      _
    %p321 = scmp.le.s32.totalorder 1, %s16
    %p322 = scmp.lt.s32.totalorder %s16, 3
    %p323 = pnand %p321, %p322
    %p324 = pneg %p323
    // Predicated region
    $region57: #{pnp3d_forward.5} parent=5 // pred_check
      _
    $region58: #{pnp3d_forward.5} parent=5 // pred_check_branch
      %326 = sbr.rel (%p323) target = $region60
    $region59: #{pnp3d_forward.5} parent=5 // pred_region
      %s327 = ssub.s32 %s16, 1
      %p328 = scmp.lt.s32.totalorder %s21, 1
      %s329 = scalar_select %p328, %s21, 1
      %s330 = smul.addr %s329, 4
      %s331 = smul.addr %s330, 8
      %s332 = scalar_lea.vmem %s0, %s331
      %p333 = pneg %p42
      %p334 = pneg %p39
      %p335 = scmp.lt.s32.totalorder %s21, 1
      %s336 = scalar_select %p335, %s21, 1
      %s337 = smul.addr %s336, 32
      %s338 = smul.addr %s337, 8
      %s339 = scalar_lea.vmem %s1, %s338
      %p340 = pneg %p68
      %p341 = pneg %p65
      %p342 = pneg %p89
      %p343 = pneg %p86
      %p344 = pneg %p110
      %p345 = pneg %p107
      %p346 = pneg %p131
      %p347 = pneg %p128
      %p348 = pneg %p152
      %p349 = pneg %p149
      %p350 = pneg %p173
      %p351 = pneg %p170
      %p352 = pneg %p194
      %p353 = pneg %p191
      %p354 = pneg %p215
      %p355 = pneg %p212
      %p356 = pneg %p236
      %p357 = pneg %p233
      %p358 = pneg %p262
      %p359 = pneg %p259
      %p360 = scmp.lt.s32.totalorder %s21, 1
      %s361 = scalar_select %p360, %s21, 1
      %s362 = smul.addr %s361, 4
      %s363 = smul.addr %s362, 8
      %s364 = scalar_lea.vmem %s10, %s363
      %p365 = scmp.lt.s32.totalorder %s21, 1
      %s366 = scalar_select %p365, %s21, 1
      %s367 = smul.addr %s366, 4
      %s368 = smul.addr %s367, 8
      %s369 = scalar_lea.vmem %s0, %s368
      %p370 = scmp.lt.s32.totalorder %s21, 1
      %s371 = scalar_select %p370, %s21, 1
      %s372 = smul.addr %s371, 32
      %s373 = smul.addr %s372, 8
      %s374 = scalar_lea.vmem %s1, %s373
      %p375 = scmp.lt.s32.totalorder %s21, 1
      %s376 = scalar_select %p375, %s21, 1
      %s377 = smul.addr %s376, 4
      %s378 = smul.addr %s377, 8
      %s379 = scalar_lea.vmem %s10, %s378
      %v380 = vld [vmem:[%s2] sm:$0xff]
      %v381 = vld [vmem:[%s2 + $0x8] sm:$0xff]
      %v382 = vld [vmem:[%s3] sm:$0xff]
      %v383 = vld [vmem:[%s3 + $0x8] sm:$0xff]
      %v384 = vld [vmem:[%s4] sm:$0xff]
      %v385 = vld [vmem:[%s4 + $0x8] sm:$0xff]
      %v386 = vld [vmem:[%s5] sm:$0xff]
      %v387 = vld [vmem:[%s5 + $0x8] sm:$0xff]
      %v388 = vld [vmem:[%s369] sm:$0x3f]
      %v389 = vld [vmem:[%s369 + $0x8] sm:$0x3f]
      %v390 = vld [vmem:[%s369 + $0x10] sm:$0x3f]
      %v391 = vld [vmem:[%s369 + $0x18] sm:$0x3f]
      %393 = vset.pattern.permute.xlu0 0
      %394 = vperm.xlu0 %393, %v382
      %v395 = vpop.permute.xlu0 %394
      %398 = vset.pattern.permute.xlu0 0
      %399 = vperm.xlu0 %398, %v383
      %v400 = vpop.permute.xlu0 %399
      %vm402 = vcmask 48128
      %v404 = vsel %vm402, %v380, 0
      %v407 = vsel %vm402, %v381, 0
      %vm409 = vcmask 1045504
      %v411 = vsel %vm409, %v388, 0
      %v414 = vsel %vm409, %v389, 0
      %v417 = vsel %vm409, %v390, 0
      %v420 = vsel %vm409, %v391, 0
      %422 = vmatprep.subr.mxu0 %v414
      %423 = vmatpush1.msra.mxu0 %v411
      %424 = vmatprep.subr.mxu0 0.0
      %425 = vmatpush1.msra.mxu0 0.0
      %426 = vmatprep.subr.mxu0 0.0
      %427 = vmatpush1.msra.mxu0 0.0
      %428 = vmatprep.subr.mxu0 0.0
      %429 = vmatpush1.msra.mxu0 0.0
      %430 = vmatprep.subr.mxu0 0.0
      %431 = vmatpush1.msra.mxu0 0.0
      %432 = vmatprep.subr.mxu0 0.0
      %433 = vmatpush1.msra.mxu0 0.0
      %434 = vmatprep.subr.mxu0 0.0
      %435 = vmatpush1.msra.mxu0 0.0
      %436 = vmatprep.subr.mxu0 0.0
      %437 = vmatpush1.msra.mxu0 0.0
      %438 = vmatprep.subr.mxu0 0.0
      %439 = vmatpush1.msra.mxu0 0.0
      %440 = vmatprep.subr.mxu0 0.0
      %441 = vmatpush1.msra.mxu0 0.0
      %442 = vmatprep.subr.mxu0 0.0
      %443 = vmatpush1.msra.mxu0 0.0
      %444 = vmatprep.subr.mxu0 0.0
      %445 = vmatpush1.msra.mxu0 0.0
      %446 = vmatprep.subr.mxu0 0.0
      %447 = vmatpush1.msra.mxu0 0.0
      %448 = vmatprep.subr.mxu0 0.0
      %449 = vmatpush1.msra.mxu0 0.0
      %450 = vmatprep.subr.mxu0 0.0
      %451 = vmatpush1.msra.mxu0 0.0
      %452 = vmatprep.subr.mxu0 0.0
      %453 = vmatpush1.msra.mxu0 0.0
      %454 = vmatprep.subr.mxu0 0.0
      %455 = vmatpush1.msra.mxu0 0.0
      %456 = vmatprep.subr.mxu0 0.0
      %457 = vmatpush1.msra.mxu0 0.0
      %458 = vmatprep.subr.mxu0 0.0
      %459 = vmatpush1.msra.mxu0 0.0
      %460 = vmatprep.subr.mxu0 0.0
      %461 = vmatpush1.msra.mxu0 0.0
      %462 = vmatprep.subr.mxu0 0.0
      %463 = vmatpush1.msra.mxu0 0.0
      %464 = vmatprep.subr.mxu0 0.0
      %465 = vmatpush1.msra.mxu0 0.0
      %466 = vmatprep.subr.mxu0 0.0
      %467 = vmatpush1.msra.mxu0 0.0
      %468 = vmatprep.subr.mxu0 0.0
      %469 = vmatpush1.msra.mxu0 0.0
      %470 = vmatprep.subr.mxu0 0.0
      %471 = vmatpush1.msra.mxu0 0.0
      %472 = vmatprep.subr.mxu0 0.0
      %473 = vmatpush1.msra.mxu0 0.0
      %474 = vmatprep.subr.mxu0 0.0
      %475 = vmatpush1.msra.mxu0 0.0
      %476 = vmatprep.subr.mxu0 0.0
      %477 = vmatpush1.msra.mxu0 0.0
      %478 = vmatprep.subr.mxu0 0.0
      %479 = vmatpush1.msra.mxu0 0.0
      %480 = vmatprep.subr.mxu0 0.0
      %481 = vmatpush1.msra.mxu0 0.0
      %482 = vmatprep.subr.mxu0 0.0
      %483 = vmatpush1.msra.mxu0 0.0
      %484 = vmatprep.subr.mxu0 0.0
      %485 = vmatpush1.msra.mxu0 0.0
      %486 = vmatprep.mubr.f32.mxu0 0.0
      %487 = vmatmul.mubr.f32.gmra.mrb[0].mxu0 %v404
      %v488 = vpop.f32.mrb[0].mxu0
      %v489 = vadd.f32 %v395, %v488
      %v490 = vpop.f32.mrb[0].mxu0
      %v491 = vadd.f32 %v395, %v490
      %492 = vmatprep.mubr.f32.mxu0 0.0
      %493 = vmatmul.mubr.f32.gmra.mrb[0].mxu0 %v407
      %v494 = vpop.f32.mrb[0].mxu0
      %v495 = vadd.f32 %v400, %v494
      %v496 = vpop.f32.mrb[0].mxu0
      %v497 = vadd.f32 %v400, %v496
      %498 = vdwg.mxu0
      %499 = vmatprep.subr.mxu0 %v420
      %500 = vmatpush1.msra.mxu0 %v417
      %501 = vmatprep.subr.mxu0 0.0
      %502 = vmatpush1.msra.mxu0 0.0
      %503 = vmatprep.subr.mxu0 0.0
      %504 = vmatpush1.msra.mxu0 0.0
      %505 = vmatprep.subr.mxu0 0.0
      %506 = vmatpush1.msra.mxu0 0.0
      %507 = vmatprep.subr.mxu0 0.0
      %508 = vmatpush1.msra.mxu0 0.0
      %509 = vmatprep.subr.mxu0 0.0
      %510 = vmatpush1.msra.mxu0 0.0
      %511 = vmatprep.subr.mxu0 0.0
      %512 = vmatpush1.msra.mxu0 0.0
      %513 = vmatprep.subr.mxu0 0.0
      %514 = vmatpush1.msra.mxu0 0.0
      %515 = vmatprep.subr.mxu0 0.0
      %516 = vmatpush1.msra.mxu0 0.0
      %517 = vmatprep.subr.mxu0 0.0
      %518 = vmatpush1.msra.mxu0 0.0
      %519 = vmatprep.subr.mxu0 0.0
      %520 = vmatpush1.msra.mxu0 0.0
      %521 = vmatprep.subr.mxu0 0.0
      %522 = vmatpush1.msra.mxu0 0.0
      %523 = vmatprep.subr.mxu0 0.0
      %524 = vmatpush1.msra.mxu0 0.0
      %525 = vmatprep.subr.mxu0 0.0
      %526 = vmatpush1.msra.mxu0 0.0
      %527 = vmatprep.subr.mxu0 0.0
      %528 = vmatpush1.msra.mxu0 0.0
      %529 = vmatprep.subr.mxu0 0.0
      %530 = vmatpush1.msra.mxu0 0.0
      %531 = vmatprep.subr.mxu0 0.0
      %532 = vmatpush1.msra.mxu0 0.0
      %533 = vmatprep.subr.mxu0 0.0
      %534 = vmatpush1.msra.mxu0 0.0
      %535 = vmatprep.subr.mxu0 0.0
      %536 = vmatpush1.msra.mxu0 0.0
      %537 = vmatprep.subr.mxu0 0.0
      %538 = vmatpush1.msra.mxu0 0.0
      %539 = vmatprep.subr.mxu0 0.0
      %540 = vmatpush1.msra.mxu0 0.0
      %541 = vmatprep.subr.mxu0 0.0
      %542 = vmatpush1.msra.mxu0 0.0
      %543 = vmatprep.subr.mxu0 0.0
      %544 = vmatpush1.msra.mxu0 0.0
      %545 = vmatprep.subr.mxu0 0.0
      %546 = vmatpush1.msra.mxu0 0.0
      %547 = vmatprep.subr.mxu0 0.0
      %548 = vmatpush1.msra.mxu0 0.0
      %549 = vmatprep.subr.mxu0 0.0
      %550 = vmatpush1.msra.mxu0 0.0
      %551 = vmatprep.subr.mxu0 0.0
      %552 = vmatpush1.msra.mxu0 0.0
      %553 = vmatprep.subr.mxu0 0.0
      %554 = vmatpush1.msra.mxu0 0.0
      %555 = vmatprep.subr.mxu0 0.0
      %556 = vmatpush1.msra.mxu0 0.0
      %557 = vmatprep.subr.mxu0 0.0
      %558 = vmatpush1.msra.mxu0 0.0
      %559 = vmatprep.subr.mxu0 0.0
      %560 = vmatpush1.msra.mxu0 0.0
      %561 = vmatprep.subr.mxu0 0.0
      %562 = vmatpush1.msra.mxu0 0.0
      %563 = vmatprep.mubr.f32.mxu0 0.0
      %564 = vmatmul.mubr.f32.gmra.mrb[0].mxu0 %v404
      %v565 = vpop.f32.mrb[0].mxu0
      %v566 = vadd.f32 %v395, %v565
      %v567 = vpop.f32.mrb[0].mxu0
      %v568 = vadd.f32 %v395, %v567
      %569 = vmatprep.mubr.f32.mxu0 0.0
      %570 = vmatmul.mubr.f32.gmra.mrb[0].mxu0 %v407
      %v571 = vpop.f32.mrb[0].mxu0
      %v572 = vadd.f32 %v400, %v571
      %v573 = vpop.f32.mrb[0].mxu0
      %v574 = vadd.f32 %v400, %v573
      %575 = vdwg.mxu0
      %577 = vset.pattern.permute.xlu0 0
      %578 = vperm.xlu0 %577, %v384
      %v579 = vpop.permute.xlu0 %578
      %582 = vset.pattern.permute.xlu0 0
      %583 = vperm.xlu0 %582, %v385
      %v584 = vpop.permute.xlu0 %583
      %v586 = vmul.f32 %v489, %v579
      %v587 = vmul.f32 %v491, %v579
      %v588 = vmul.f32 %v566, %v579
      %v589 = vmul.f32 %v568, %v579
      %v590 = vmul.f32 %v495, %v584
      %v591 = vmul.f32 %v497, %v584
      %v592 = vmul.f32 %v572, %v584
      %v593 = vmul.f32 %v574, %v584
      %595 = vset.pattern.permute.xlu0 0
      %596 = vperm.xlu0 %595, %v386
      %v597 = vpop.permute.xlu0 %596
      %600 = vset.pattern.permute.xlu0 0
      %601 = vperm.xlu0 %600, %v387
      %v602 = vpop.permute.xlu0 %601
      %v604 = vadd.f32 %v586, %v597
      %v605 = vadd.f32 %v587, %v597
      %v606 = vadd.f32 %v588, %v597
      %v607 = vadd.f32 %v589, %v597
      %v608 = vadd.f32 %v590, %v602
      %v609 = vadd.f32 %v591, %v602
      %v610 = vadd.f32 %v592, %v602
      %v611 = vadd.f32 %v593, %v602
      %v612 = vmax.f32 %v604, 0.0
      %v613 = vmax.f32 %v605, 0.0
      %v614 = vmax.f32 %v606, 0.0
      %v615 = vmax.f32 %v607, 0.0
      %v616 = vmax.f32 %v608, 0.0
      %v617 = vmax.f32 %v609, 0.0
      %v618 = vmax.f32 %v610, 0.0
      %v619 = vmax.f32 %v611, 0.0
      %622 = vrot.lane.b32.xlu0 %v612, 64
      %v623 = vpop.permute.xlu0 %622
      %624 = vrot.lane.b32.xlu0 %v616, 64
      %v625 = vpop.permute.xlu0 %624
      %v628 = vmax.f32 %v612, %v623
      %v629 = vmax.f32 %v616, %v625
      %v630 = vmax.f32 %v628, %v613
      %v631 = vmax.f32 %v629, %v617
      %634 = vrot.lane.b32.xlu0 %v613, 64
      %v635 = vpop.permute.xlu0 %634
      %636 = vrot.lane.b32.xlu0 %v617, 64
      %v637 = vpop.permute.xlu0 %636
      %v640 = vmax.f32 %v630, %v635
      %v641 = vmax.f32 %v631, %v637
      %v642 = vmax.f32 %v640, %v614
      %v643 = vmax.f32 %v641, %v618
      %646 = vrot.lane.b32.xlu0 %v614, 64
      %v647 = vpop.permute.xlu0 %646
      %648 = vrot.lane.b32.xlu0 %v618, 64
      %v649 = vpop.permute.xlu0 %648
      %v652 = vmax.f32 %v642, %v647
      %v653 = vmax.f32 %v643, %v649
      %v654 = vmax.f32 %v652, %v615
      %v655 = vmax.f32 %v653, %v619
      %658 = vrot.lane.b32.xlu0 %v615, 64
      %v659 = vpop.permute.xlu0 %658
      %660 = vrot.lane.b32.xlu0 %v619, 64
      %v661 = vpop.permute.xlu0 %660
      %v664 = vmax.f32 %v654, %v659
      %v665 = vmax.f32 %v655, %v661
      %v666 = vld [vmem:[%s6] sm:$0xff]
      %v667 = vld [vmem:[%s6 + $0x8] sm:$0xff]
      %v668 = vld [vmem:[%s7] sm:$0xff]
      %v669 = vld [vmem:[%s7 + $0x8] sm:$0xff]
      %v670 = vld [vmem:[%s8] sm:$0xff]
      %v671 = vld [vmem:[%s8 + $0x8] sm:$0xff]
      %v672 = vld [vmem:[%s9] sm:$0xff]
      %v673 = vld [vmem:[%s9 + $0x8] sm:$0xff]
      %v674 = vld [vmem:[%s374] sm:$0xff]
      %v675 = vld [vmem:[%s374 + $0x8] sm:$0xff]
      %v676 = vld [vmem:[%s374 + $0x10] sm:$0xff]
      %v677 = vld [vmem:[%s374 + $0x18] sm:$0xff]
      %v678 = vld [vmem:[%s374 + $0x20] sm:$0xff]
      %v679 = vld [vmem:[%s374 + $0x28] sm:$0xff]
      %v680 = vld [vmem:[%s374 + $0x30] sm:$0xff]
      %v681 = vld [vmem:[%s374 + $0x38] sm:$0xff]
      %v682 = vld [vmem:[%s374 + $0x40] sm:$0xff]
      %v683 = vld [vmem:[%s374 + $0x48] sm:$0xff]
      %v684 = vld [vmem:[%s374 + $0x50] sm:$0xff]
      %v685 = vld [vmem:[%s374 + $0x58] sm:$0xff]
      %v686 = vld [vmem:[%s374 + $0x60] sm:$0xff]
      %v687 = vld [vmem:[%s374 + $0x68] sm:$0xff]
      %v688 = vld [vmem:[%s374 + $0x70] sm:$0xff]
      %v689 = vld [vmem:[%s374 + $0x78] sm:$0xff]
      %v690 = vld [vmem:[%s374 + $0x80] sm:$0xff]
      %v691 = vld [vmem:[%s374 + $0x88] sm:$0xff]
      %v692 = vld [vmem:[%s374 + $0x90] sm:$0xff]
      %v693 = vld [vmem:[%s374 + $0x98] sm:$0xff]
      %v694 = vld [vmem:[%s374 + $0xa0] sm:$0xff]
      %v695 = vld [vmem:[%s374 + $0xa8] sm:$0xff]
      %v696 = vld [vmem:[%s374 + $0xb0] sm:$0xff]
      %v697 = vld [vmem:[%s374 + $0xb8] sm:$0xff]
      %v698 = vld [vmem:[%s374 + $0xc0] sm:$0xff]
      %v699 = vld [vmem:[%s374 + $0xc8] sm:$0xff]
      %v700 = vld [vmem:[%s374 + $0xd0] sm:$0xff]
      %v701 = vld [vmem:[%s374 + $0xd8] sm:$0xff]
      %v702 = vld [vmem:[%s374 + $0xe0] sm:$0xff]
      %v703 = vld [vmem:[%s374 + $0xe8] sm:$0xff]
      %v704 = vld [vmem:[%s374 + $0xf0] sm:$0xff]
      %v705 = vld [vmem:[%s374 + $0xf8] sm:$0xff]
      %707 = vset.pattern.permute.xlu0 0
      %708 = vperm.xlu0 %707, %v668
      %v709 = vpop.permute.xlu0 %708
      %712 = vset.pattern.permute.xlu0 0
      %713 = vperm.xlu0 %712, %v669
      %v714 = vpop.permute.xlu0 %713
      %vm716 = vcmask 523264
      %v718 = vsel %vm716, %v666, 0
      %v721 = vsel %vm716, %v667, 0
      %723 = vmatprep.subr.mxu0 %v675
      %724 = vmatpush1.msra.mxu0 %v674
      %725 = vmatprep.subr.mxu0 %v679
      %726 = vmatpush1.msra.mxu0 %v678
      %727 = vmatprep.subr.mxu0 %v683
      %728 = vmatpush1.msra.mxu0 %v682
      %729 = vmatprep.subr.mxu0 %v687
      %730 = vmatpush1.msra.mxu0 %v686
      %731 = vmatprep.subr.mxu0 %v691
      %732 = vmatpush1.msra.mxu0 %v690
      %733 = vmatprep.subr.mxu0 %v695
      %734 = vmatpush1.msra.mxu0 %v694
      %735 = vmatprep.subr.mxu0 %v699
      %736 = vmatpush1.msra.mxu0 %v698
      %737 = vmatprep.subr.mxu0 %v703
      %738 = vmatpush1.msra.mxu0 %v702
      %739 = vmatprep.subr.mxu0 0.0
      %740 = vmatpush1.msra.mxu0 0.0
      %741 = vmatprep.subr.mxu0 0.0
      %742 = vmatpush1.msra.mxu0 0.0
      %743 = vmatprep.subr.mxu0 0.0
      %744 = vmatpush1.msra.mxu0 0.0
      %745 = vmatprep.subr.mxu0 0.0
      %746 = vmatpush1.msra.mxu0 0.0
      %747 = vmatprep.subr.mxu0 0.0
      %748 = vmatpush1.msra.mxu0 0.0
      %749 = vmatprep.subr.mxu0 0.0
      %750 = vmatpush1.msra.mxu0 0.0
      %751 = vmatprep.subr.mxu0 0.0
      %752 = vmatpush1.msra.mxu0 0.0
      %753 = vmatprep.subr.mxu0 0.0
      %754 = vmatpush1.msra.mxu0 0.0
      %755 = vmatprep.subr.mxu0 0.0
      %756 = vmatpush1.msra.mxu0 0.0
      %757 = vmatprep.subr.mxu0 0.0
      %758 = vmatpush1.msra.mxu0 0.0
      %759 = vmatprep.subr.mxu0 0.0
      %760 = vmatpush1.msra.mxu0 0.0
      %761 = vmatprep.subr.mxu0 0.0
      %762 = vmatpush1.msra.mxu0 0.0
      %763 = vmatprep.subr.mxu0 0.0
      %764 = vmatpush1.msra.mxu0 0.0
      %765 = vmatprep.subr.mxu0 0.0
      %766 = vmatpush1.msra.mxu0 0.0
      %767 = vmatprep.subr.mxu0 0.0
      %768 = vmatpush1.msra.mxu0 0.0
      %769 = vmatprep.subr.mxu0 0.0
      %770 = vmatpush1.msra.mxu0 0.0
      %771 = vmatprep.subr.mxu0 0.0
      %772 = vmatpush1.msra.mxu0 0.0
      %773 = vmatprep.subr.mxu0 0.0
      %774 = vmatpush1.msra.mxu0 0.0
      %775 = vmatprep.subr.mxu0 0.0
      %776 = vmatpush1.msra.mxu0 0.0
      %777 = vmatprep.subr.mxu0 0.0
      %778 = vmatpush1.msra.mxu0 0.0
      %779 = vmatprep.subr.mxu0 0.0
      %780 = vmatpush1.msra.mxu0 0.0
      %781 = vmatprep.subr.mxu0 0.0
      %782 = vmatpush1.msra.mxu0 0.0
      %783 = vmatprep.subr.mxu0 0.0
      %784 = vmatpush1.msra.mxu0 0.0
      %785 = vmatprep.subr.mxu0 0.0
      %786 = vmatpush1.msra.mxu0 0.0
      %787 = vmatprep.mubr.f32.mxu0 0.0
      %788 = vmatmul.mubr.f32.gmra.mrb[0].mxu0 %v718
      %v789 = vpop.f32.mrb[0].mxu0
      %v790 = vadd.f32 %v709, %v789
      %v791 = vpop.f32.mrb[0].mxu0
      %v792 = vadd.f32 %v709, %v791
      %793 = vmatprep.mubr.f32.mxu0 0.0
      %794 = vmatmul.mubr.f32.gmra.mrb[0].mxu0 %v721
      %v795 = vpop.f32.mrb[0].mxu0
      %v796 = vadd.f32 %v714, %v795
      %v797 = vpop.f32.mrb[0].mxu0
      %v798 = vadd.f32 %v714, %v797
      %799 = vdwg.mxu0
      %800 = vmatprep.subr.mxu0 %v677
      %801 = vmatpush1.msra.mxu0 %v676
      %802 = vmatprep.subr.mxu0 %v681
      %803 = vmatpush1.msra.mxu0 %v680
      %804 = vmatprep.subr.mxu0 %v685
      %805 = vmatpush1.msra.mxu0 %v684
      %806 = vmatprep.subr.mxu0 %v689
      %807 = vmatpush1.msra.mxu0 %v688
      %808 = vmatprep.subr.mxu0 %v693
      %809 = vmatpush1.msra.mxu0 %v692
      %810 = vmatprep.subr.mxu0 %v697
      %811 = vmatpush1.msra.mxu0 %v696
      %812 = vmatprep.subr.mxu0 %v701
      %813 = vmatpush1.msra.mxu0 %v700
      %814 = vmatprep.subr.mxu0 %v705
      %815 = vmatpush1.msra.mxu0 %v704
      %816 = vmatprep.subr.mxu0 0.0
      %817 = vmatpush1.msra.mxu0 0.0
      %818 = vmatprep.subr.mxu0 0.0
      %819 = vmatpush1.msra.mxu0 0.0
      %820 = vmatprep.subr.mxu0 0.0
      %821 = vmatpush1.msra.mxu0 0.0
      %822 = vmatprep.subr.mxu0 0.0
      %823 = vmatpush1.msra.mxu0 0.0
      %824 = vmatprep.subr.mxu0 0.0
      %825 = vmatpush1.msra.mxu0 0.0
      %826 = vmatprep.subr.mxu0 0.0
      %827 = vmatpush1.msra.mxu0 0.0
      %828 = vmatprep.subr.mxu0 0.0
      %829 = vmatpush1.msra.mxu0 0.0
      %830 = vmatprep.subr.mxu0 0.0
      %831 = vmatpush1.msra.mxu0 0.0
      %832 = vmatprep.subr.mxu0 0.0
      %833 = vmatpush1.msra.mxu0 0.0
      %834 = vmatprep.subr.mxu0 0.0
      %835 = vmatpush1.msra.mxu0 0.0
      %836 = vmatprep.subr.mxu0 0.0
      %837 = vmatpush1.msra.mxu0 0.0
      %838 = vmatprep.subr.mxu0 0.0
      %839 = vmatpush1.msra.mxu0 0.0
      %840 = vmatprep.subr.mxu0 0.0
      %841 = vmatpush1.msra.mxu0 0.0
      %842 = vmatprep.subr.mxu0 0.0
      %843 = vmatpush1.msra.mxu0 0.0
      %844 = vmatprep.subr.mxu0 0.0
      %845 = vmatpush1.msra.mxu0 0.0
      %846 = vmatprep.subr.mxu0 0.0
      %847 = vmatpush1.msra.mxu0 0.0
      %848 = vmatprep.subr.mxu0 0.0
      %849 = vmatpush1.msra.mxu0 0.0
      %850 = vmatprep.subr.mxu0 0.0
      %851 = vmatpush1.msra.mxu0 0.0
      %852 = vmatprep.subr.mxu0 0.0
      %853 = vmatpush1.msra.mxu0 0.0
      %854 = vmatprep.subr.mxu0 0.0
      %855 = vmatpush1.msra.mxu0 0.0
      %856 = vmatprep.subr.mxu0 0.0
      %857 = vmatpush1.msra.mxu0 0.0
      %858 = vmatprep.subr.mxu0 0.0
      %859 = vmatpush1.msra.mxu0 0.0
      %860 = vmatprep.subr.mxu0 0.0
      %861 = vmatpush1.msra.mxu0 0.0
      %862 = vmatprep.subr.mxu0 0.0
      %863 = vmatpush1.msra.mxu0 0.0
      %864 = vmatprep.mubr.f32.mxu0 0.0
      %865 = vmatmul.mubr.f32.gmra.mrb[0].mxu0 %v718
      %v866 = vpop.f32.mrb[0].mxu0
      %v867 = vadd.f32 %v709, %v866
      %v868 = vpop.f32.mrb[0].mxu0
      %v869 = vadd.f32 %v709, %v868
      %870 = vmatprep.mubr.f32.mxu0 0.0
      %871 = vmatmul.mubr.f32.gmra.mrb[0].mxu0 %v721
      %v872 = vpop.f32.mrb[0].mxu0
      %v873 = vadd.f32 %v714, %v872
      %v874 = vpop.f32.mrb[0].mxu0
      %v875 = vadd.f32 %v714, %v874
      %876 = vdwg.mxu0
      %878 = vset.pattern.permute.xlu0 0
      %879 = vperm.xlu0 %878, %v670
      %v880 = vpop.permute.xlu0 %879
      %883 = vset.pattern.permute.xlu0 0
      %884 = vperm.xlu0 %883, %v671
      %v885 = vpop.permute.xlu0 %884
      %v887 = vmul.f32 %v790, %v880
      %v888 = vmul.f32 %v792, %v880
      %v889 = vmul.f32 %v867, %v880
      %v890 = vmul.f32 %v869, %v880
      %v891 = vmul.f32 %v796, %v885
      %v892 = vmul.f32 %v798, %v885
      %v893 = vmul.f32 %v873, %v885
      %v894 = vmul.f32 %v875, %v885
      %896 = vset.pattern.permute.xlu0 0
      %897 = vperm.xlu0 %896, %v672
      %v898 = vpop.permute.xlu0 %897
      %901 = vset.pattern.permute.xlu0 0
      %902 = vperm.xlu0 %901, %v673
      %v903 = vpop.permute.xlu0 %902
      %v905 = vadd.f32 %v887, %v898
      %v906 = vadd.f32 %v888, %v898
      %v907 = vadd.f32 %v889, %v898
      %v908 = vadd.f32 %v890, %v898
      %v909 = vadd.f32 %v891, %v903
      %v910 = vadd.f32 %v892, %v903
      %v911 = vadd.f32 %v893, %v903
      %v912 = vadd.f32 %v894, %v903
      %v913 = vmax.f32 %v905, 0.0
      %v914 = vmax.f32 %v906, 0.0
      %v915 = vmax.f32 %v907, 0.0
      %v916 = vmax.f32 %v908, 0.0
      %v917 = vmax.f32 %v909, 0.0
      %v918 = vmax.f32 %v910, 0.0
      %v919 = vmax.f32 %v911, 0.0
      %v920 = vmax.f32 %v912, 0.0
      %923 = vrot.lane.b32.xlu0 %v913, 64
      %v924 = vpop.permute.xlu0 %923
      %925 = vrot.lane.b32.xlu0 %v917, 64
      %v926 = vpop.permute.xlu0 %925
      %v929 = vmax.f32 %v913, %v924
      %v930 = vmax.f32 %v917, %v926
      %v931 = vmax.f32 %v929, %v914
      %v932 = vmax.f32 %v930, %v918
      %935 = vrot.lane.b32.xlu0 %v914, 64
      %v936 = vpop.permute.xlu0 %935
      %937 = vrot.lane.b32.xlu0 %v918, 64
      %v938 = vpop.permute.xlu0 %937
      %v941 = vmax.f32 %v931, %v936
      %v942 = vmax.f32 %v932, %v938
      %v943 = vmax.f32 %v941, %v915
      %v944 = vmax.f32 %v942, %v919
      %947 = vrot.lane.b32.xlu0 %v915, 64
      %v948 = vpop.permute.xlu0 %947
      %949 = vrot.lane.b32.xlu0 %v919, 64
      %v950 = vpop.permute.xlu0 %949
      %v953 = vmax.f32 %v943, %v948
      %v954 = vmax.f32 %v944, %v950
      %v955 = vmax.f32 %v953, %v916
      %v956 = vmax.f32 %v954, %v920
      %959 = vrot.lane.b32.xlu0 %v916, 64
      %v960 = vpop.permute.xlu0 %959
      %961 = vrot.lane.b32.xlu0 %v920, 64
      %v962 = vpop.permute.xlu0 %961
      %v965 = vmax.f32 %v955, %v960
      %v966 = vmax.f32 %v956, %v962
      %967 = vst.msk [vmem:[%s379] sm:$0xff] %vm716, %v664
      %968 = vst.msk [vmem:[%s379 + $0x8] sm:$0xff] %vm716, %v665
      %969 = vst.msk [vmem:[%s379 + $0x10] sm:$0xff] %vm716, %v965
      %970 = vst.msk [vmem:[%s379 + $0x18] sm:$0xff] %vm716, %v966
      %p971 = scmp.lt.s32.totalorder %s21, 1
      %s972 = scalar_select %p971, %s21, 1
      %s973 = smul.addr %s972, 4
      %s974 = smul.addr %s973, 8
      %s975 = scalar_lea.vmem %s10, %s974
      // Predicated region
      $region61: #{pnp3d_forward.5} parent=59 // pred_check
        %p976 = pneg %p259
      $region62: #{pnp3d_forward.5} parent=59 // pred_check_branch
        %978 = sbr.rel (%p976) target = $region64
      $region63: #{pnp3d_forward.5} parent=59 // pred_region
        _
      $region64: #{pnp3d_forward.5} parent=59 // pred_fallthru
        _
    $region60: #{pnp3d_forward.5} parent=5 // pred_fallthru
      _
    %p979 = scmp.le.s32.totalorder 2, %s16
    // Predicated region
    $region65: #{pnp3d_forward.5} parent=5 // pred_check
      %p980 = pneg %p979
    $region66: #{pnp3d_forward.5} parent=5 // pred_check_branch
      %982 = sbr.rel (%p980) target = $region68
    $region67: #{pnp3d_forward.5} parent=5 // pred_region
      %s983 = ssub.s32 %s16, 2
      // Predicated region
      $region69: #{pnp3d_forward.5} parent=67 // pred_check
        %p984 = pneg %p265
      $region70: #{pnp3d_forward.5} parent=67 // pred_check_branch
        %986 = sbr.rel (%p984) target = $region72
      $region71: #{pnp3d_forward.5} parent=67 // pred_region
        %p987 = scmp.lt.s32.totalorder %s22, 1
        %s988 = scalar_select %p987, %s22, 1
        %s989 = smul.addr %s988, 4
        %s990 = smul.addr %s989, 8
        %s991 = scalar_lea.vmem %s10, %s990
      $region72: #{pnp3d_forward.5} parent=67 // pred_fallthru
        _
    $region68: #{pnp3d_forward.5} parent=5 // pred_fallthru
      _
  $region6: #{pnp3d_forward.5} parent=0 // loop_footer
    %s20 = sadd.s32 1, %s16
  $region7: #{pnp3d_forward.5} parent=0 // loop_footer_branch
    %15 = sbr.rel target = $region3
  $region8: #{pnp3d_forward.5} parent=0 // loop_exit
    _

// kernel: pnp3d_forward.7
$region0: #{pnp3d_forward.7}
  #allocation0 [shape = 'u32[]', space=smem, size = 0x4, offset = 0x4, fixed_abs, tag = 'smem constant byte address 0x4 - core index']
  #allocation1 [shape = 'u32[144,128]{1,0:T(1,128)}', space=vmem, size = 0x12000, scoped, tag = 'internal scratch']
  %s0 = inlined_call_operand.vmem [shape: f32[2,32,64], index: 0, kind: input, shape index: {}]
  %s1 = inlined_call_operand.vmem [shape: f32[4,64], index: 1, kind: input, shape index: {}]
  %s2 = inlined_call_operand.vmem [shape: f32[4,32], index: 2, kind: input, shape index: {}]
  %s3 = inlined_call_operand.vmem [shape: f32[4,32], index: 3, kind: input, shape index: {}]
  %s4 = inlined_call_operand.vmem [shape: f32[32,4], index: 4, kind: input, shape index: {}]
  %s5 = inlined_call_operand.vmem [shape: f32[32,1], index: 5, kind: input, shape index: {}]
  %s6 = inlined_call_operand.vmem [shape: f32[32,1], index: 6, kind: input, shape index: {}]
  %s7 = inlined_call_operand.vmem [shape: f32[32,1], index: 7, kind: input, shape index: {}]
  %s8 = inlined_call_operand.hbm [shape: f32[2,32,64], index: 8, kind: output, shape index: {}]
  %s9 = sld [smem:[#allocation0]]
  $region65: #{pnp3d_forward.7} parent=0
    _
  %s11 = ssub.s32 1, %s9
  %s12 = scalar_select 0, %s11, %s9
  $region1: #{pnp3d_forward.7} parent=0
    #allocation2 [shape = 'u8[32768]{0}', space=vmem, size = 0x8000, scoped, tag = 'output window, operand 0']
    #allocation3 [shape = 's32[2]{0}', space=sflag, size = 0x8, scoped, tag = 'scoped memory for pnp3d_forward.7']
    %13 = vsyncpa [#allocation3], 0
    %s14 = scalar_lea.sflag [#allocation3], 1
    %15 = vsyncpa %s14, 0
    loop: start=0, step=1, limit=4
    $region2: #{pnp3d_forward.7} parent=1 // loop_pre_header
      _
    $region3: #{pnp3d_forward.7} parent=1 // loop_header
      %s17 = sphi 0, %s21
      %p18 = scmp.ge.s32.totalorder %s17, 4
      %s24 = sphi 0, %s36
      %s25 = sphi 0, %s32
      %s26 = sphi 0, %s24
      %s27 = sphi 0, %s25
      %s28 = sphi 0, %s26
      %s29 = sphi 0, %s27
      %s41 = sphi 0, %s43
      %s44 = sphi 0, %s41
      %s45 = sphi 0, %s44
      %s61 = sphi 0, %s45
      %s67 = sphi 0, %s69
      %s70 = sphi 0, %s67
      %s71 = sphi 0, %s70
      %s87 = sphi 0, %s71
      %s91 = sphi 0, %s91
      %s93 = sphi 0, %s91
      %s94 = sphi 0, %s93
      %s108 = sphi 0, %s94
      %s112 = sphi 0, %s112
      %s114 = sphi 0, %s112
      %s115 = sphi 0, %s114
      %s129 = sphi 0, %s115
      %s133 = sphi 0, %s133
      %s135 = sphi 0, %s133
      %s136 = sphi 0, %s135
      %s150 = sphi 0, %s136
      %s154 = sphi 0, %s154
      %s156 = sphi 0, %s154
      %s157 = sphi 0, %s156
      %s171 = sphi 0, %s157
      %s175 = sphi 0, %s175
      %s177 = sphi 0, %s175
      %s178 = sphi 0, %s177
      %s192 = sphi 0, %s178
      %s196 = sphi 0, %s196
      %s198 = sphi 0, %s196
      %s199 = sphi 0, %s198
      %s213 = sphi 0, %s199
      %s221 = sphi 0, %s223
      %s224 = sphi 0, %s221
      %s225 = sphi 0, %s224
      %s241 = sphi 0, %s225
    $region4: #{pnp3d_forward.7} parent=1 // loop_header_branch
      %20 = sbr.rel (%p18) target = $region8
    $region5: #{pnp3d_forward.7} parent=1 // loop_body
      %s22 = ssub.s32 %s17, 1
      %s23 = ssub.s32 %s17, 2
      %s30 = sadd.s32 1, %s25
      %p31 = scmp.ge.s32.totalorder %s30, 1
      %s32 = scalar_select %p31, 0, %s30
      %s33 = sadd.s32 1, %s24
      %s34 = scalar_select %p31, %s33, %s24
      %p35 = scmp.ge.s32.totalorder %s34, 2
      %s36 = scalar_select %p35, 0, %s34
      %s37 = ssub.s32 %s24, %s36
      %s38 = ssub.s32 %s25, %s32
      %s39 = sor.u32 %s37, %s38
      %p40 = scmp.eq.s32.totalorder %s39, 0
      %s42 = sadd.s32 %s41, 1
      %s43 = scalar_select %p40, %s41, %s42
      %p46 = pneg %p40
      %p47 = scmp.eq.s32.totalorder %s17, 1
      %p48 = por %p46, %p47
      %p49 = scmp.ne.s32.totalorder %s41, %s44
      %p50 = scmp.eq.s32.totalorder %s17, 0
      %p51 = por %p49, %p50
      %p52 = scmp.ne.s32.totalorder %s41, %s44
      %p53 = scmp.eq.s32.totalorder %s22, 1
      %p54 = por %p52, %p53
      %p55 = scmp.ne.s32.totalorder %s44, %s45
      %p56 = scmp.eq.s32.totalorder %s22, 0
      %p57 = por %p55, %p56
      %p58 = scmp.ne.s32.totalorder %s44, %s45
      %p59 = scmp.eq.s32.totalorder %s23, 1
      %p60 = por %p58, %p59
      %p62 = scmp.ne.s32.totalorder %s45, %s61
      %p63 = scmp.eq.s32.totalorder %s23, 0
      %p64 = por %p62, %p63
      %s65 = ssub.s32 %s25, %s32
      %p66 = scmp.eq.s32.totalorder %s65, 0
      %s68 = sadd.s32 %s67, 1
      %s69 = scalar_select %p66, %s67, %s68
      %p72 = pneg %p66
      %p73 = scmp.eq.s32.totalorder %s17, 1
      %p74 = por %p72, %p73
      %p75 = scmp.ne.s32.totalorder %s67, %s70
      %p76 = scmp.eq.s32.totalorder %s17, 0
      %p77 = por %p75, %p76
      %p78 = scmp.ne.s32.totalorder %s67, %s70
      %p79 = scmp.eq.s32.totalorder %s22, 1
      %p80 = por %p78, %p79
      %p81 = scmp.ne.s32.totalorder %s70, %s71
      %p82 = scmp.eq.s32.totalorder %s22, 0
      %p83 = por %p81, %p82
      %p84 = scmp.ne.s32.totalorder %s70, %s71
      %p85 = scmp.eq.s32.totalorder %s23, 1
      %p86 = por %p84, %p85
      %p88 = scmp.ne.s32.totalorder %s71, %s87
      %p89 = scmp.eq.s32.totalorder %s23, 0
      %p90 = por %p88, %p89
      %s92 = sadd.s32 %s91, 1
      %p95 = scmp.eq.s32.totalorder %s17, 1
      %p96 = scmp.ne.s32.totalorder %s91, %s93
      %p97 = scmp.eq.s32.totalorder %s17, 0
      %p98 = por %p96, %p97
      %p99 = scmp.ne.s32.totalorder %s91, %s93
      %p100 = scmp.eq.s32.totalorder %s22, 1
      %p101 = por %p99, %p100
      %p102 = scmp.ne.s32.totalorder %s93, %s94
      %p103 = scmp.eq.s32.totalorder %s22, 0
      %p104 = por %p102, %p103
      %p105 = scmp.ne.s32.totalorder %s93, %s94
      %p106 = scmp.eq.s32.totalorder %s23, 1
      %p107 = por %p105, %p106
      %p109 = scmp.ne.s32.totalorder %s94, %s108
      %p110 = scmp.eq.s32.totalorder %s23, 0
      %p111 = por %p109, %p110
      %s113 = sadd.s32 %s112, 1
      %p116 = scmp.eq.s32.totalorder %s17, 1
      %p117 = scmp.ne.s32.totalorder %s112, %s114
      %p118 = scmp.eq.s32.totalorder %s17, 0
      %p119 = por %p117, %p118
      %p120 = scmp.ne.s32.totalorder %s112, %s114
      %p121 = scmp.eq.s32.totalorder %s22, 1
      %p122 = por %p120, %p121
      %p123 = scmp.ne.s32.totalorder %s114, %s115
      %p124 = scmp.eq.s32.totalorder %s22, 0
      %p125 = por %p123, %p124
      %p126 = scmp.ne.s32.totalorder %s114, %s115
      %p127 = scmp.eq.s32.totalorder %s23, 1
      %p128 = por %p126, %p127
      %p130 = scmp.ne.s32.totalorder %s115, %s129
      %p131 = scmp.eq.s32.totalorder %s23, 0
      %p132 = por %p130, %p131
      %s134 = sadd.s32 %s133, 1
      %p137 = scmp.eq.s32.totalorder %s17, 1
      %p138 = scmp.ne.s32.totalorder %s133, %s135
      %p139 = scmp.eq.s32.totalorder %s17, 0
      %p140 = por %p138, %p139
      %p141 = scmp.ne.s32.totalorder %s133, %s135
      %p142 = scmp.eq.s32.totalorder %s22, 1
      %p143 = por %p141, %p142
      %p144 = scmp.ne.s32.totalorder %s135, %s136
      %p145 = scmp.eq.s32.totalorder %s22, 0
      %p146 = por %p144, %p145
      %p147 = scmp.ne.s32.totalorder %s135, %s136
      %p148 = scmp.eq.s32.totalorder %s23, 1
      %p149 = por %p147, %p148
      %p151 = scmp.ne.s32.totalorder %s136, %s150
      %p152 = scmp.eq.s32.totalorder %s23, 0
      %p153 = por %p151, %p152
      %s155 = sadd.s32 %s154, 1
      %p158 = scmp.eq.s32.totalorder %s17, 1
      %p159 = scmp.ne.s32.totalorder %s154, %s156
      %p160 = scmp.eq.s32.totalorder %s17, 0
      %p161 = por %p159, %p160
      %p162 = scmp.ne.s32.totalorder %s154, %s156
      %p163 = scmp.eq.s32.totalorder %s22, 1
      %p164 = por %p162, %p163
      %p165 = scmp.ne.s32.totalorder %s156, %s157
      %p166 = scmp.eq.s32.totalorder %s22, 0
      %p167 = por %p165, %p166
      %p168 = scmp.ne.s32.totalorder %s156, %s157
      %p169 = scmp.eq.s32.totalorder %s23, 1
      %p170 = por %p168, %p169
      %p172 = scmp.ne.s32.totalorder %s157, %s171
      %p173 = scmp.eq.s32.totalorder %s23, 0
      %p174 = por %p172, %p173
      %s176 = sadd.s32 %s175, 1
      %p179 = scmp.eq.s32.totalorder %s17, 1
      %p180 = scmp.ne.s32.totalorder %s175, %s177
      %p181 = scmp.eq.s32.totalorder %s17, 0
      %p182 = por %p180, %p181
      %p183 = scmp.ne.s32.totalorder %s175, %s177
      %p184 = scmp.eq.s32.totalorder %s22, 1
      %p185 = por %p183, %p184
      %p186 = scmp.ne.s32.totalorder %s177, %s178
      %p187 = scmp.eq.s32.totalorder %s22, 0
      %p188 = por %p186, %p187
      %p189 = scmp.ne.s32.totalorder %s177, %s178
      %p190 = scmp.eq.s32.totalorder %s23, 1
      %p191 = por %p189, %p190
      %p193 = scmp.ne.s32.totalorder %s178, %s192
      %p194 = scmp.eq.s32.totalorder %s23, 0
      %p195 = por %p193, %p194
      %s197 = sadd.s32 %s196, 1
      %p200 = scmp.eq.s32.totalorder %s17, 1
      %p201 = scmp.ne.s32.totalorder %s196, %s198
      %p202 = scmp.eq.s32.totalorder %s17, 0
      %p203 = por %p201, %p202
      %p204 = scmp.ne.s32.totalorder %s196, %s198
      %p205 = scmp.eq.s32.totalorder %s22, 1
      %p206 = por %p204, %p205
      %p207 = scmp.ne.s32.totalorder %s198, %s199
      %p208 = scmp.eq.s32.totalorder %s22, 0
      %p209 = por %p207, %p208
      %p210 = scmp.ne.s32.totalorder %s198, %s199
      %p211 = scmp.eq.s32.totalorder %s23, 1
      %p212 = por %p210, %p211
      %p214 = scmp.ne.s32.totalorder %s199, %s213
      %p215 = scmp.eq.s32.totalorder %s23, 0
      %p216 = por %p214, %p215
      %s217 = ssub.s32 %s24, %s36
      %s218 = ssub.s32 %s25, %s32
      %s219 = sor.u32 %s217, %s218
      %p220 = scmp.eq.s32.totalorder %s219, 0
      %s222 = sadd.s32 %s221, 1
      %s223 = scalar_select %p220, %s221, %s222
      %p226 = pneg %p220
      %p227 = scmp.eq.s32.totalorder %s17, 1
      %p228 = por %p226, %p227
      %p229 = scmp.ne.s32.totalorder %s221, %s224
      %p230 = scmp.eq.s32.totalorder %s17, 0
      %p231 = por %p229, %p230
      %p232 = scmp.ne.s32.totalorder %s221, %s224
      %p233 = scmp.eq.s32.totalorder %s22, 1
      %p234 = por %p232, %p233
      %p235 = scmp.ne.s32.totalorder %s224, %s225
      %p236 = scmp.eq.s32.totalorder %s22, 0
      %p237 = por %p235, %p236
      %p238 = scmp.ne.s32.totalorder %s224, %s225
      %p239 = scmp.eq.s32.totalorder %s23, 1
      %p240 = por %p238, %p239
      %p242 = scmp.ne.s32.totalorder %s225, %s241
      %p243 = scmp.eq.s32.totalorder %s23, 0
      %p244 = por %p242, %p243
      %p245 = scmp.le.s32.totalorder 1, %s17
      %p246 = scmp.lt.s32.totalorder %s17, 3
      %p247 = pnand %p245, %p246
      %p248 = pneg %p247
      // Predicated region
      $region9: #{pnp3d_forward.7} parent=5 // pred_check
        _
      $region10: #{pnp3d_forward.7} parent=5 // pred_check_branch
        %250 = sbr.rel (%p247) target = $region12
      $region11: #{pnp3d_forward.7} parent=5 // pred_region
        %s251 = ssub.s32 %s17, 1
        // Predicated region
        $region13: #{pnp3d_forward.7} parent=11 // pred_check
          %p252 = pneg %p83
        $region14: #{pnp3d_forward.7} parent=11 // pred_check_branch
          %254 = sbr.rel (%p252) target = $region16
        $region15: #{pnp3d_forward.7} parent=11 // pred_region
          %p255 = scmp.lt.s32.totalorder %s27, 0
          %s256 = scalar_select %p255, %s27, 0
          %s257 = smul.addr %s256, 4
          %s258 = scalar_lea.vmem %s1, %s257
        $region16: #{pnp3d_forward.7} parent=11 // pred_fallthru
          _
        // Predicated region
        $region17: #{pnp3d_forward.7} parent=11 // pred_check
          %p259 = pneg %p104
        $region18: #{pnp3d_forward.7} parent=11 // pred_check_branch
          %261 = sbr.rel (%p259) target = $region20
        $region19: #{pnp3d_forward.7} parent=11 // pred_region
          _
        $region20: #{pnp3d_forward.7} parent=11 // pred_fallthru
          _
        // Predicated region
        $region21: #{pnp3d_forward.7} parent=11 // pred_check
          %p262 = pneg %p125
        $region22: #{pnp3d_forward.7} parent=11 // pred_check_branch
          %264 = sbr.rel (%p262) target = $region24
        $region23: #{pnp3d_forward.7} parent=11 // pred_region
          _
        $region24: #{pnp3d_forward.7} parent=11 // pred_fallthru
          _
        // Predicated region
        $region25: #{pnp3d_forward.7} parent=11 // pred_check
          %p265 = pneg %p146
        $region26: #{pnp3d_forward.7} parent=11 // pred_check_branch
          %267 = sbr.rel (%p265) target = $region28
        $region27: #{pnp3d_forward.7} parent=11 // pred_region
          _
        $region28: #{pnp3d_forward.7} parent=11 // pred_fallthru
          _
        // Predicated region
        $region29: #{pnp3d_forward.7} parent=11 // pred_check
          %p268 = pneg %p167
        $region30: #{pnp3d_forward.7} parent=11 // pred_check_branch
          %270 = sbr.rel (%p268) target = $region32
        $region31: #{pnp3d_forward.7} parent=11 // pred_region
          _
        $region32: #{pnp3d_forward.7} parent=11 // pred_fallthru
          _
        // Predicated region
        $region33: #{pnp3d_forward.7} parent=11 // pred_check
          %p271 = pneg %p188
        $region34: #{pnp3d_forward.7} parent=11 // pred_check_branch
          %273 = sbr.rel (%p271) target = $region36
        $region35: #{pnp3d_forward.7} parent=11 // pred_region
          _
        $region36: #{pnp3d_forward.7} parent=11 // pred_fallthru
          _
        // Predicated region
        $region37: #{pnp3d_forward.7} parent=11 // pred_check
          %p274 = pneg %p209
        $region38: #{pnp3d_forward.7} parent=11 // pred_check_branch
          %276 = sbr.rel (%p274) target = $region40
        $region39: #{pnp3d_forward.7} parent=11 // pred_region
          _
        $region40: #{pnp3d_forward.7} parent=11 // pred_fallthru
          _
      $region12: #{pnp3d_forward.7} parent=5 // pred_fallthru
        _
      %p277 = scmp.lt.s32.totalorder %s17, 2
      // Predicated region
      $region41: #{pnp3d_forward.7} parent=5 // pred_check
        %p278 = pneg %p277
      $region42: #{pnp3d_forward.7} parent=5 // pred_check_branch
        %280 = sbr.rel (%p278) target = $region44
      $region43: #{pnp3d_forward.7} parent=5 // pred_region
        // Predicated region
        $region45: #{pnp3d_forward.7} parent=43 // pred_check
          %p281 = pneg %p51
        $region46: #{pnp3d_forward.7} parent=43 // pred_check_branch
          %283 = sbr.rel (%p281) target = $region48
        $region47: #{pnp3d_forward.7} parent=43 // pred_region
          %p284 = scmp.lt.s32.totalorder %s24, 1
          %s285 = scalar_select %p284, %s24, 1
          %p286 = scmp.lt.s32.totalorder %s25, 0
          %s287 = scalar_select %p286, %s25, 0
          %s288 = smul.addr %s285, 4
          %s289 = sadd.s32 %s287, %s288
          %s290 = smul.addr %s289, 8
          %s291 = scalar_lea.vmem %s0, %s290
        $region48: #{pnp3d_forward.7} parent=43 // pred_fallthru
          _
      $region44: #{pnp3d_forward.7} parent=5 // pred_fallthru
        _
      %p292 = scmp.le.s32.totalorder 1, %s17
      %p293 = scmp.lt.s32.totalorder %s17, 3
      %p294 = pnand %p292, %p293
      %p295 = pneg %p294
      // Predicated region
      $region49: #{pnp3d_forward.7} parent=5 // pred_check
        _
      $region50: #{pnp3d_forward.7} parent=5 // pred_check_branch
        %297 = sbr.rel (%p294) target = $region52
      $region51: #{pnp3d_forward.7} parent=5 // pred_region
        %s298 = ssub.s32 %s17, 1
        %p299 = scmp.lt.s32.totalorder %s26, 1
        %s300 = scalar_select %p299, %s26, 1
        %p301 = scmp.lt.s32.totalorder %s27, 0
        %s302 = scalar_select %p301, %s27, 0
        %s303 = smul.addr %s300, 4
        %s304 = sadd.s32 %s302, %s303
        %s305 = smul.addr %s304, 8
        %s306 = scalar_lea.vmem %s0, %s305
        %p307 = pneg %p57
        %p308 = pneg %p54
        %p309 = scmp.lt.s32.totalorder %s27, 0
        %s310 = scalar_select %p309, %s27, 0
        %s311 = smul.addr %s310, 4
        %s312 = scalar_lea.vmem %s1, %s311
        %p313 = pneg %p83
        %p314 = pneg %p80
        %p315 = pneg %p104
        %p316 = pneg %p101
        %p317 = pneg %p125
        %p318 = pneg %p122
        %p319 = pneg %p146
        %p320 = pneg %p143
        %p321 = pneg %p167
        %p322 = pneg %p164
        %p323 = pneg %p188
        %p324 = pneg %p185
        %p325 = pneg %p209
        %p326 = pneg %p206
        %p327 = pneg %p237
        %p328 = pneg %p234
        %s329 = sand.u32 %s224, 1
        %s330 = scalar_lea.sflag [#allocation3], %s329
        %s331 = sand.u32 %s224, 1
        %s332 = smul.addr %s331, 32
        %s333 = scalar_lea.vmem [#allocation2], %s332
        %p334 = scmp.lt.s32.totalorder %s26, 1
        %s335 = scalar_select %p334, %s26, 1
        %p336 = scmp.lt.s32.totalorder %s27, 0
        %s337 = scalar_select %p336, %s27, 0
        %s338 = smul.addr %s335, 4
        %s339 = sadd.s32 %s337, %s338
        %s340 = smul.addr %s339, 8
        %s341 = scalar_lea.vmem %s0, %s340
        %p342 = scmp.lt.s32.totalorder %s27, 0
        %s343 = scalar_select %p342, %s27, 0
        %s344 = smul.addr %s343, 4
        %s345 = scalar_lea.vmem %s1, %s344
        %v346 = vld [vmem:[%s341] sm:$0xff]
        %v347 = vld [vmem:[%s341 + $0x8] sm:$0xff]
        %v348 = vld [vmem:[%s341 + $0x10] sm:$0xff]
        %v349 = vld [vmem:[%s341 + $0x18] sm:$0xff]
        %v350 = vld [vmem:[%s2] sm:$0xf]
        %vm351 = vcmask 261120
        %v353 = vsel %vm351, %v350, 0
        %355 = vmatprep.subr.mxu0 0.0
        %356 = vmatpush1.msra.mxu0 %v346
        %357 = vmatprep.subr.mxu0 0.0
        %358 = vmatpush1.msra.mxu0 %v347
        %359 = vmatprep.subr.mxu0 0.0
        %360 = vmatpush1.msra.mxu0 %v348
        %361 = vmatprep.subr.mxu0 0.0
        %362 = vmatpush1.msra.mxu0 %v349
        %363 = vmatprep.subr.mxu0 0.0
        %364 = vmatpush1.msra.mxu0 0.0
        %365 = vmatprep.subr.mxu0 0.0
        %366 = vmatpush1.msra.mxu0 0.0
        %367 = vmatprep.subr.mxu0 0.0
        %368 = vmatpush1.msra.mxu0 0.0
        %369 = vmatprep.subr.mxu0 0.0
        %370 = vmatpush1.msra.mxu0 0.0
        %371 = vmatprep.subr.mxu0 0.0
        %372 = vmatpush1.msra.mxu0 0.0
        %373 = vmatprep.subr.mxu0 0.0
        %374 = vmatpush1.msra.mxu0 0.0
        %375 = vmatprep.subr.mxu0 0.0
        %376 = vmatpush1.msra.mxu0 0.0
        %377 = vmatprep.subr.mxu0 0.0
        %378 = vmatpush1.msra.mxu0 0.0
        %379 = vmatprep.subr.mxu0 0.0
        %380 = vmatpush1.msra.mxu0 0.0
        %381 = vmatprep.subr.mxu0 0.0
        %382 = vmatpush1.msra.mxu0 0.0
        %383 = vmatprep.subr.mxu0 0.0
        %384 = vmatpush1.msra.mxu0 0.0
        %385 = vmatprep.subr.mxu0 0.0
        %386 = vmatpush1.msra.mxu0 0.0
        %387 = vmatprep.subr.mxu0 0.0
        %388 = vmatpush1.msra.mxu0 0.0
        %389 = vmatprep.subr.mxu0 0.0
        %390 = vmatpush1.msra.mxu0 0.0
        %391 = vmatprep.subr.mxu0 0.0
        %392 = vmatpush1.msra.mxu0 0.0
        %393 = vmatprep.subr.mxu0 0.0
        %394 = vmatpush1.msra.mxu0 0.0
        %395 = vmatprep.subr.mxu0 0.0
        %396 = vmatpush1.msra.mxu0 0.0
        %397 = vmatprep.subr.mxu0 0.0
        %398 = vmatpush1.msra.mxu0 0.0
        %399 = vmatprep.subr.mxu0 0.0
        %400 = vmatpush1.msra.mxu0 0.0
        %401 = vmatprep.subr.mxu0 0.0
        %402 = vmatpush1.msra.mxu0 0.0
        %403 = vmatprep.subr.mxu0 0.0
        %404 = vmatpush1.msra.mxu0 0.0
        %405 = vmatprep.subr.mxu0 0.0
        %406 = vmatpush1.msra.mxu0 0.0
        %407 = vmatprep.subr.mxu0 0.0
        %408 = vmatpush1.msra.mxu0 0.0
        %409 = vmatprep.subr.mxu0 0.0
        %410 = vmatpush1.msra.mxu0 0.0
        %411 = vmatprep.subr.mxu0 0.0
        %412 = vmatpush1.msra.mxu0 0.0
        %413 = vmatprep.subr.mxu0 0.0
        %414 = vmatpush1.msra.mxu0 0.0
        %415 = vmatprep.subr.mxu0 0.0
        %416 = vmatpush1.msra.mxu0 0.0
        %417 = vmatprep.subr.mxu0 0.0
        %418 = vmatpush1.msra.mxu0 0.0
        %419 = vmatprep.mubr.f32.mxu0 0.0
        %420 = vmatmul.mubr.f32.gmra.mrb[0].mxu0 %v353
        %v421 = vpop.f32.mrb[0].mxu0
        %v422 = vadd.f32 0.0, %v421
        %v423 = vpop.f32.mrb[0].mxu0
        %424 = vdwg.mxu0
        %v425 = vmax.f32 %v422, 0.0
        %v426 = vld [vmem:[%s3] sm:$0xf]
        %v428 = vsel %vm351, %v426, 0
        %430 = vmatprep.subr.mxu0 0.0
        %431 = vmatpush1.msra.mxu0 %v346
        %432 = vmatprep.subr.mxu0 0.0
        %433 = vmatpush1.msra.mxu0 %v347
        %434 = vmatprep.subr.mxu0 0.0
        %435 = vmatpush1.msra.mxu0 %v348
        %436 = vmatprep.subr.mxu0 0.0
        %437 = vmatpush1.msra.mxu0 %v349
        %438 = vmatprep.subr.mxu0 0.0
        %439 = vmatpush1.msra.mxu0 0.0
        %440 = vmatprep.subr.mxu0 0.0
        %441 = vmatpush1.msra.mxu0 0.0
        %442 = vmatprep.subr.mxu0 0.0
        %443 = vmatpush1.msra.mxu0 0.0
        %444 = vmatprep.subr.mxu0 0.0
        %445 = vmatpush1.msra.mxu0 0.0
        %446 = vmatprep.subr.mxu0 0.0
        %447 = vmatpush1.msra.mxu0 0.0
        %448 = vmatprep.subr.mxu0 0.0
        %449 = vmatpush1.msra.mxu0 0.0
        %450 = vmatprep.subr.mxu0 0.0
        %451 = vmatpush1.msra.mxu0 0.0
        %452 = vmatprep.subr.mxu0 0.0
        %453 = vmatpush1.msra.mxu0 0.0
        %454 = vmatprep.subr.mxu0 0.0
        %455 = vmatpush1.msra.mxu0 0.0
        %456 = vmatprep.subr.mxu0 0.0
        %457 = vmatpush1.msra.mxu0 0.0
        %458 = vmatprep.subr.mxu0 0.0
        %459 = vmatpush1.msra.mxu0 0.0
        %460 = vmatprep.subr.mxu0 0.0
        %461 = vmatpush1.msra.mxu0 0.0
        %462 = vmatprep.subr.mxu0 0.0
        %463 = vmatpush1.msra.mxu0 0.0
        %464 = vmatprep.subr.mxu0 0.0
        %465 = vmatpush1.msra.mxu0 0.0
        %466 = vmatprep.subr.mxu0 0.0
        %467 = vmatpush1.msra.mxu0 0.0
        %468 = vmatprep.subr.mxu0 0.0
        %469 = vmatpush1.msra.mxu0 0.0
        %470 = vmatprep.subr.mxu0 0.0
        %471 = vmatpush1.msra.mxu0 0.0
        %472 = vmatprep.subr.mxu0 0.0
        %473 = vmatpush1.msra.mxu0 0.0
        %474 = vmatprep.subr.mxu0 0.0
        %475 = vmatpush1.msra.mxu0 0.0
        %476 = vmatprep.subr.mxu0 0.0
        %477 = vmatpush1.msra.mxu0 0.0
        %478 = vmatprep.subr.mxu0 0.0
        %479 = vmatpush1.msra.mxu0 0.0
        %480 = vmatprep.subr.mxu0 0.0
        %481 = vmatpush1.msra.mxu0 0.0
        %482 = vmatprep.subr.mxu0 0.0
        %483 = vmatpush1.msra.mxu0 0.0
        %484 = vmatprep.subr.mxu0 0.0
        %485 = vmatpush1.msra.mxu0 0.0
        %486 = vmatprep.subr.mxu0 0.0
        %487 = vmatpush1.msra.mxu0 0.0
        %488 = vmatprep.subr.mxu0 0.0
        %489 = vmatpush1.msra.mxu0 0.0
        %490 = vmatprep.subr.mxu0 0.0
        %491 = vmatpush1.msra.mxu0 0.0
        %492 = vmatprep.subr.mxu0 0.0
        %493 = vmatpush1.msra.mxu0 0.0
        %494 = vmatprep.mubr.f32.mxu0 0.0
        %495 = vmatmul.mubr.f32.gmra.mrb[0].mxu0 %v428
        %v496 = vpop.f32.mrb[0].mxu0
        %v497 = vadd.f32 0.0, %v496
        %v498 = vpop.f32.mrb[0].mxu0
        %499 = vdwg.mxu0
        %v500 = vmax.f32 %v497, 0.0
        %v501 = vld [vmem:[%s345] sm:$0xf]
        %v502 = vadd.f32 %v501, %v425
        %v503 = vadd.f32 %v502, %v500
        %v504 = vld [vmem:[%s4] sm:$0xff]
        %v505 = vld [vmem:[%s4 + $0x8] sm:$0xff]
        %v506 = vld [vmem:[%s4 + $0x10] sm:$0xff]
        %v507 = vld [vmem:[%s4 + $0x18] sm:$0xff]
        %v508 = vld [vmem:[%s5] sm:$0xff]
        %v509 = vld [vmem:[%s5 + $0x8] sm:$0xff]
        %v510 = vld [vmem:[%s5 + $0x10] sm:$0xff]
        %v511 = vld [vmem:[%s5 + $0x18] sm:$0xff]
        %513 = vset.pattern.permute.xlu0 0
        %514 = vperm.xlu0 %513, %v508
        %v515 = vpop.permute.xlu0 %514
        %518 = vset.pattern.permute.xlu0 0
        %519 = vperm.xlu0 %518, %v509
        %v520 = vpop.permute.xlu0 %519
        %523 = vset.pattern.permute.xlu0 0
        %524 = vperm.xlu0 %523, %v510
        %v525 = vpop.permute.xlu0 %524
        %528 = vset.pattern.permute.xlu0 0
        %529 = vperm.xlu0 %528, %v511
        %v530 = vpop.permute.xlu0 %529
        %vm532 = vcmask 31744
        %v534 = vsel %vm532, %v504, 0
        %v537 = vsel %vm532, %v505, 0
        %v540 = vsel %vm532, %v506, 0
        %v543 = vsel %vm532, %v507, 0
        %vm545 = vcmask 1043456
        %v547 = vsel %vm545, %v503, 0
        %549 = vmatprep.subr.mxu0 0.0
        %550 = vmatpush1.msra.mxu0 %v547
        %551 = vmatprep.subr.mxu0 0.0
        %552 = vmatpush1.msra.mxu0 0.0
        %553 = vmatprep.subr.mxu0 0.0
        %554 = vmatpush1.msra.mxu0 0.0
        %555 = vmatprep.subr.mxu0 0.0
        %556 = vmatpush1.msra.mxu0 0.0
        %557 = vmatprep.subr.mxu0 0.0
        %558 = vmatpush1.msra.mxu0 0.0
        %559 = vmatprep.subr.mxu0 0.0
        %560 = vmatpush1.msra.mxu0 0.0
        %561 = vmatprep.subr.mxu0 0.0
        %562 = vmatpush1.msra.mxu0 0.0
        %563 = vmatprep.subr.mxu0 0.0
        %564 = vmatpush1.msra.mxu0 0.0
        %565 = vmatprep.subr.mxu0 0.0
        %566 = vmatpush1.msra.mxu0 0.0
        %567 = vmatprep.subr.mxu0 0.0
        %568 = vmatpush1.msra.mxu0 0.0
        %569 = vmatprep.subr.mxu0 0.0
        %570 = vmatpush1.msra.mxu0 0.0
        %571 = vmatprep.subr.mxu0 0.0
        %572 = vmatpush1.msra.mxu0 0.0
        %573 = vmatprep.subr.mxu0 0.0
        %574 = vmatpush1.msra.mxu0 0.0
        %575 = vmatprep.subr.mxu0 0.0
        %576 = vmatpush1.msra.mxu0 0.0
        %577 = vmatprep.subr.mxu0 0.0
        %578 = vmatpush1.msra.mxu0 0.0
        %579 = vmatprep.subr.mxu0 0.0
        %580 = vmatpush1.msra.mxu0 0.0
        %581 = vmatprep.subr.mxu0 0.0
        %582 = vmatpush1.msra.mxu0 0.0
        %583 = vmatprep.subr.mxu0 0.0
        %584 = vmatpush1.msra.mxu0 0.0
        %585 = vmatprep.subr.mxu0 0.0
        %586 = vmatpush1.msra.mxu0 0.0
        %587 = vmatprep.subr.mxu0 0.0
        %588 = vmatpush1.msra.mxu0 0.0
        %589 = vmatprep.subr.mxu0 0.0
        %590 = vmatpush1.msra.mxu0 0.0
        %591 = vmatprep.subr.mxu0 0.0
        %592 = vmatpush1.msra.mxu0 0.0
        %593 = vmatprep.subr.mxu0 0.0
        %594 = vmatpush1.msra.mxu0 0.0
        %595 = vmatprep.subr.mxu0 0.0
        %596 = vmatpush1.msra.mxu0 0.0
        %597 = vmatprep.subr.mxu0 0.0
        %598 = vmatpush1.msra.mxu0 0.0
        %599 = vmatprep.subr.mxu0 0.0
        %600 = vmatpush1.msra.mxu0 0.0
        %601 = vmatprep.subr.mxu0 0.0
        %602 = vmatpush1.msra.mxu0 0.0
        %603 = vmatprep.subr.mxu0 0.0
        %604 = vmatpush1.msra.mxu0 0.0
        %605 = vmatprep.subr.mxu0 0.0
        %606 = vmatpush1.msra.mxu0 0.0
        %607 = vmatprep.subr.mxu0 0.0
        %608 = vmatpush1.msra.mxu0 0.0
        %609 = vmatprep.subr.mxu0 0.0
        %610 = vmatpush1.msra.mxu0 0.0
        %611 = vmatprep.subr.mxu0 0.0
        %612 = vmatpush1.msra.mxu0 0.0
        %613 = vmatprep.mubr.f32.mxu0 0.0
        %614 = vmatmul.mubr.f32.gmra.mrb[0].mxu0 %v534
        %v615 = vpop.f32.mrb[0].mxu0
        %v616 = vadd.f32 %v515, %v615
        %v617 = vpop.f32.mrb[0].mxu0
        %618 = vmatprep.mubr.f32.mxu0 0.0
        %619 = vmatmul.mubr.f32.gmra.mrb[0].mxu0 %v537
        %v620 = vpop.f32.mrb[0].mxu0
        %v621 = vadd.f32 %v520, %v620
        %v622 = vpop.f32.mrb[0].mxu0
        %623 = vmatprep.mubr.f32.mxu0 0.0
        %624 = vmatmul.mubr.f32.gmra.mrb[0].mxu0 %v540
        %v625 = vpop.f32.mrb[0].mxu0
        %v626 = vadd.f32 %v525, %v625
        %v627 = vpop.f32.mrb[0].mxu0
        %628 = vmatprep.mubr.f32.mxu0 0.0
        %629 = vmatmul.mubr.f32.gmra.mrb[0].mxu0 %v543
        %v630 = vpop.f32.mrb[0].mxu0
        %v631 = vadd.f32 %v530, %v630
        %v632 = vpop.f32.mrb[0].mxu0
        %633 = vdwg.mxu0
        %v634 = vld [vmem:[%s6] sm:$0xff]
        %v635 = vld [vmem:[%s6 + $0x8] sm:$0xff]
        %v636 = vld [vmem:[%s6 + $0x10] sm:$0xff]
        %v637 = vld [vmem:[%s6 + $0x18] sm:$0xff]
        %639 = vset.pattern.permute.xlu0 0
        %640 = vperm.xlu0 %639, %v634
        %v641 = vpop.permute.xlu0 %640
        %644 = vset.pattern.permute.xlu0 0
        %645 = vperm.xlu0 %644, %v635
        %v646 = vpop.permute.xlu0 %645
        %649 = vset.pattern.permute.xlu0 0
        %650 = vperm.xlu0 %649, %v636
        %v651 = vpop.permute.xlu0 %650
        %654 = vset.pattern.permute.xlu0 0
        %655 = vperm.xlu0 %654, %v637
        %v656 = vpop.permute.xlu0 %655
        %v658 = vmul.f32 %v616, %v641
        %v659 = vmul.f32 %v621, %v646
        %v660 = vmul.f32 %v626, %v651
        %v661 = vmul.f32 %v631, %v656
        %v662 = vld [vmem:[%s7] sm:$0xff]
        %v663 = vld [vmem:[%s7 + $0x8] sm:$0xff]
        %v664 = vld [vmem:[%s7 + $0x10] sm:$0xff]
        %v665 = vld [vmem:[%s7 + $0x18] sm:$0xff]
        %667 = vset.pattern.permute.xlu0 0
        %668 = vperm.xlu0 %667, %v662
        %v669 = vpop.permute.xlu0 %668
        %672 = vset.pattern.permute.xlu0 0
        %673 = vperm.xlu0 %672, %v663
        %v674 = vpop.permute.xlu0 %673
        %677 = vset.pattern.permute.xlu0 0
        %678 = vperm.xlu0 %677, %v664
        %v679 = vpop.permute.xlu0 %678
        %682 = vset.pattern.permute.xlu0 0
        %683 = vperm.xlu0 %682, %v665
        %v684 = vpop.permute.xlu0 %683
        %v686 = vadd.f32 %v658, %v669
        %v687 = vadd.f32 %v659, %v674
        %v688 = vadd.f32 %v660, %v679
        %v689 = vadd.f32 %v661, %v684
        %v690 = vmax.f32 %v686, 0.0
        %v691 = vmax.f32 %v687, 0.0
        %v692 = vmax.f32 %v688, 0.0
        %v693 = vmax.f32 %v689, 0.0
        %v694 = vsub.f32 %v346, %v690
        %v695 = vsub.f32 %v347, %v691
        %v696 = vsub.f32 %v348, %v692
        %v697 = vsub.f32 %v349, %v693
        %v698 = vmax.f32 %v694, 0.0
        %v699 = vmax.f32 %v695, 0.0
        %v700 = vmax.f32 %v696, 0.0
        %v701 = vmax.f32 %v697, 0.0
        %v702 = vand.u32 2147483647, %v694
        %v703 = vand.u32 2147483647, %v695
        %v704 = vand.u32 2147483647, %v696
        %v705 = vand.u32 2147483647, %v697
        %v706 = vsub.f32 0.0, %v702
        %v707 = vsub.f32 0.0, %v703
        %v708 = vsub.f32 0.0, %v704
        %v709 = vsub.f32 0.0, %v705
        %v710 = vmul.f32 %v706, 1.442695
        %v711 = vpow.pop %v710
        %v712 = vmul.f32 %v707, 1.442695
        %v713 = vpow.pop %v712
        %v714 = vmul.f32 %v708, 1.442695
        %v715 = vpow.pop %v714
        %v716 = vmul.f32 %v709, 1.442695
        %v717 = vpow.pop %v716
        %v718 = vadd.f32 %v711, 1.0
        %v719 = vlog2.pop %v718
        %v720 = vmul.f32 %v719, 0.6931472
        %v721 = vmul.f32 -0.5, %v711
        %v722 = vadd.f32 %v721, 1.0
        %v723 = vmul.f32 %v722, %v711
        %v724 = vand.u32 2147483647, %v711
        %vm725 = vcmp.lt.f32.partialorder %v724, 0.0004427343
        %v726 = vsel %vm725, %v723, %v720
        %v727 = vadd.f32 %v713, 1.0
        %v728 = vlog2.pop %v727
        %v729 = vmul.f32 %v728, 0.6931472
        %v730 = vmul.f32 -0.5, %v713
        %v731 = vadd.f32 %v730, 1.0
        %v732 = vmul.f32 %v731, %v713
        %v733 = vand.u32 2147483647, %v713
        %vm734 = vcmp.lt.f32.partialorder %v733, 0.0004427343
        %v735 = vsel %vm734, %v732, %v729
        %v736 = vadd.f32 %v715, 1.0
        %v737 = vlog2.pop %v736
        %v738 = vmul.f32 %v737, 0.6931472
        %v739 = vmul.f32 -0.5, %v715
        %v740 = vadd.f32 %v739, 1.0
        %v741 = vmul.f32 %v740, %v715
        %v742 = vand.u32 2147483647, %v715
        %vm743 = vcmp.lt.f32.partialorder %v742, 0.0004427343
        %v744 = vsel %vm743, %v741, %v738
        %v745 = vadd.f32 %v717, 1.0
        %v746 = vlog2.pop %v745
        %v747 = vmul.f32 %v746, 0.6931472
        %v748 = vmul.f32 -0.5, %v717
        %v749 = vadd.f32 %v748, 1.0
        %v750 = vmul.f32 %v749, %v717
        %v751 = vand.u32 2147483647, %v717
        %vm752 = vcmp.lt.f32.partialorder %v751, 0.0004427343
        %v753 = vsel %vm752, %v750, %v747
        %v754 = vadd.f32 %v698, %v726
        %v755 = vadd.f32 %v699, %v735
        %v756 = vadd.f32 %v700, %v744
        %v757 = vadd.f32 %v701, %v753
        %v758 = vtanh.pop %v754
        %v759 = vtanh.pop %v755
        %v760 = vtanh.pop %v756
        %v761 = vtanh.pop %v757
        %v762 = vmul.f32 %v694, %v758
        %v763 = vmul.f32 %v695, %v759
        %v764 = vmul.f32 %v696, %v760
        %v765 = vmul.f32 %v697, %v761
        %vm766 = vcmask 523264
        %767 = vst.msk [vmem:[%s333] sm:$0xff] %vm766, %v762
        %768 = vst.msk [vmem:[%s333 + $0x8] sm:$0xff] %vm766, %v763
        %769 = vst.msk [vmem:[%s333 + $0x10] sm:$0xff] %vm766, %v764
        %770 = vst.msk [vmem:[%s333 + $0x18] sm:$0xff] %vm766, %v765
        %s771 = sand.u32 %s224, 1
        %s772 = scalar_lea.sflag [#allocation3], %s771
        %s773 = sand.u32 %s224, 1
        %s774 = smul.addr %s773, 32
        %s775 = scalar_lea.vmem [#allocation2], %s774
        // Predicated region
        $region53: #{pnp3d_forward.7} parent=51 // pred_check
          %p776 = pneg %p234
        $region54: #{pnp3d_forward.7} parent=51 // pred_check_branch
          %778 = sbr.rel (%p776) target = $region56
        $region55: #{pnp3d_forward.7} parent=51 // pred_region
          %s780 = ssub.s32 512, 512
          %781 = vsyncadd %s772, %s780
          %s782 = smul.addr %s26, 4
          %s783 = sadd.s32 %s27, %s782
          %s784 = smul.addr %s783, 128
          %s785 = scalar_lea.hbm %s8, %s784
          %s786 = sshll.u32 %s775, 4
          %s787 = int_to_ptr.vmem [resolvable:$true] %s786
          %792 = dma.vmem_to_hbm [thread:$0]  %s787, 512, %s785, %s772, 128, 128, 8
        $region56: #{pnp3d_forward.7} parent=51 // pred_fallthru
          _
      $region52: #{pnp3d_forward.7} parent=5 // pred_fallthru
        _
      %p793 = scmp.le.s32.totalorder 2, %s17
      // Predicated region
      $region57: #{pnp3d_forward.7} parent=5 // pred_check
        %p794 = pneg %p793
      $region58: #{pnp3d_forward.7} parent=5 // pred_check_branch
        %796 = sbr.rel (%p794) target = $region60
      $region59: #{pnp3d_forward.7} parent=5 // pred_region
        %s797 = ssub.s32 %s17, 2
        // Predicated region
        $region61: #{pnp3d_forward.7} parent=59 // pred_check
          %p798 = pneg %p240
        $region62: #{pnp3d_forward.7} parent=59 // pred_check_branch
          %800 = sbr.rel (%p798) target = $region64
        $region63: #{pnp3d_forward.7} parent=59 // pred_region
          %s801 = sand.u32 %s225, 1
          %s802 = scalar_lea.sflag [#allocation3], %s801
          %s803 = sand.u32 %s225, 1
          %s804 = smul.addr %s803, 32
          %s805 = scalar_lea.vmem [#allocation2], %s804
          %806 = dma.done %s802, 512
        $region64: #{pnp3d_forward.7} parent=59 // pred_fallthru
          _
      $region60: #{pnp3d_forward.7} parent=5 // pred_fallthru
        _
    $region6: #{pnp3d_forward.7} parent=1 // loop_footer
      %s21 = sadd.s32 1, %s17
    $region7: #{pnp3d_forward.7} parent=1 // loop_footer_branch
      %16 = sbr.rel target = $region3
    $region8: #{pnp3d_forward.7} parent=1 // loop_exit
      _
    %807 = vsyncpa [#allocation3], 1
    %s808 = scalar_lea.sflag [#allocation3], 1
    %809 = vsyncpa %s808, 1

</llo_original>
